<compile_context>
chip_gen: v6e
topology: v6e:2x2x1
jax: 0.10.0
libtpu: 0.0.40
codegen_flags: <defaults>
</compile_context>

<pallas_src>
import functools

import jax
import jax.numpy as jnp
import numpy as np
from jax.experimental import pallas as pl
from jax.experimental.pallas import tpu as pltpu


# ----------------------------------------------------------------------------
# Pallas conv2d kernel: zero-pad in VMEM -> batched im2col -> one MXU matmul
# ----------------------------------------------------------------------------
def _conv2d_kernel(x_ref, w_ref, b_ref, o_ref, xpad_ref, col_ref, *,
                   B, H, W, Ho, Wo, KH, KW, dil, pad, cin, cin_pad,
                   zero_border, zero_col):
    M = Ho * Wo

    # One-time zero fill of the regions that are never overwritten afterwards:
    #   * the zero-padding border of the padded image
    #   * the im2col rows belonging to the padded (dead) input channels
    # Scratch persists across grid steps and the grid axis is sequential
    # ("arbitrary"), so step 0 is guaranteed to run first.
    if zero_border or zero_col:
        @pl.when(pl.program_id(0) == 0)
        def _init():
            if zero_border:
                xpad_ref[...] = jnp.zeros_like(xpad_ref)
            if zero_col:
                col_ref[...] = jnp.zeros_like(col_ref)

    # f32 -> bf16 cast happens here (in-kernel, rides the free VPU slot); the
    # interior of the padded image is refreshed every step, the zero border
    # persists from step 0.
    for b in range(B):
        xpad_ref[b, :, pad:pad + H, pad:pad + W] = x_ref[b].astype(jnp.bfloat16)

    # im2col into VMEM scratch:
    #   col[t*cin_pad + c, b*M + h*Wo + w] = xpad[b, c, h + ky*dil, w + kx*dil]
    # with t = ky*KW + kx (matches the (Cout, KH, KW, Cin_pad) weight flatten).
    for b in range(B):
        for ky in range(KH):
            for kx in range(KW):
                t = ky * KW + kx
                tap = xpad_ref[b, :,
                               ky * dil:ky * dil + Ho,
                               kx * dil:kx * dil + Wo]
                col_ref[t * cin_pad:t * cin_pad + cin, b * M:(b + 1) * M] = (
                    tap.reshape(cin, M))

    # One MXU matmul for the whole batch block, f32 accumulation, f32 bias.
    acc = jnp.dot(w_ref[...], col_ref[...], preferred_element_type=jnp.float32)
    acc = acc + b_ref[...]                      # (Cout, 1) broadcasts over cols
    for b in range(B):                          # lane-dense (Cout, M) stores
        o_ref[b] = acc[:, b * M:(b + 1) * M].astype(o_ref.dtype)


# ----------------------------------------------------------------------------
# Host-side helpers
# ----------------------------------------------------------------------------
def _cin_padded(cin):
    # bf16 packs 16 rows per vreg sublane group -> keep im2col row blocks
    # 16-aligned so tap writes are plain packed copies.
    return ((cin + 15) // 16) * 16


def prep_conv_weights(w, b):
    """w: (Cout, Cin, KH, KW) f32 OIHW; b: (Cout,) f32 ->
       wb: (Cout, KH*KW*Cin_pad) bf16; bb: (Cout, 1) f32."""
    Cout, Cin, KH, KW = w.shape
    cin_pad = _cin_padded(Cin)
    w_r = jnp.transpose(w, (0, 2, 3, 1))                     # (Cout, KH, KW, Cin)
    if cin_pad != Cin:
        w_r = jnp.pad(w_r, ((0, 0), (0, 0), (0, 0), (0, cin_pad - Cin)))
    wb = w_r.reshape(Cout, KH * KW * cin_pad).astype(jnp.bfloat16)
    bb = b.reshape(Cout, 1).astype(jnp.float32)
    return wb, bb


def conv2d_pallas(x, wb, bb, *, cin, kh, kw, stride=1, dilation=1, padding=1):
    """x: (N, Cin, H, W) f32 NCHW; wb/bb: prepped by prep_conv_weights."""
    N, Cin, H, W = x.shape
    assert Cin == cin
    Cout, K = wb.shape
    cin_pad = K // (kh * kw)
    Hp, Wp = H + 2 * padding, W + 2 * padding
    # Stride-1 output extent; a strided conv is an exact subsample of it.
    Ho = Hp - dilation * (kh - 1)
    Wo = Wp - dilation * (kw - 1)
    assert Ho > 0 and Wo > 0, "conv output would be empty"
    M = Ho * Wo

    # ---- pick the batch block: largest divisor of N fitting a VMEM budget ----
    per_img = (cin * Hp * Wp * 2          # padded image (bf16)
               + K * M * 2                # im2col columns (bf16)
               + 2 * cin * H * W * 4      # double-buffered f32 input block
               + 2 * Cout * M * 4)        # double-buffered f32 output block
    budget = 24 * 1024 * 1024
    cap = max(1, min(N, budget // max(per_img, 1)))
    B_blk = 1
    for blk in range(cap, 0, -1):
        if N % blk == 0:
            B_blk = blk
            break
    nb = N // B_blk

    vmem_need = (B_blk * per_img + Cout * K * 2 * 2 + Cout * 4 * 2)
    # 32 MiB floor (safe everywhere), grow with block size, cap at 64 MiB so we
    # stay within v7x physical VMEM; v5e/v6e (128 MiB) could go higher once the
    # strip-tiling TODO lands and blocks get big.
    vmem_limit = int(min(max(32 * 1024 * 1024, 2 * vmem_need), 64 * 1024 * 1024))

    kern = functools.partial(
        _conv2d_kernel,
        B=B_blk, H=H, W=W, Ho=Ho, Wo=Wo, KH=kh, KW=kw,
        dil=dilation, pad=padding, cin=cin, cin_pad=cin_pad,
        zero_border=(padding > 0), zero_col=(cin_pad != cin))

    out = pl.pallas_call(
        kern,
        out_shape=jax.ShapeDtypeStruct((N, Cout, M), jnp.float32),
        grid=(nb,),
        in_specs=[
            pl.BlockSpec((B_blk, cin, H, W), lambda n: (n, 0, 0, 0)),
            pl.BlockSpec((Cout, K), lambda n: (0, 0)),
            pl.BlockSpec((Cout, 1), lambda n: (0, 0)),
        ],
        out_specs=pl.BlockSpec((B_blk, Cout, M), lambda n: (n, 0, 0)),
        scratch_shapes=[
            pltpu.VMEM((B_blk, cin, Hp, Wp), jnp.bfloat16),   # zero-padded images
            pltpu.VMEM((K, B_blk * M), jnp.bfloat16),         # im2col buffer
        ],
        compiler_params=pltpu.CompilerParams(
            # "arbitrary": the one-time zero fill at program_id==0 relies on
            # sequential grid execution over the persistent scratch.
            dimension_semantics=("arbitrary",),
            vmem_limit_bytes=vmem_limit,
        ),
    )(x, wb, bb)

    out = out.reshape(N, Cout, Ho, Wo)                 # lane-dense -> NCHW
    if stride > 1:
        # TODO(synk): move the stride into the in-kernel im2col (strided window
        # extraction) to avoid computing and writing the full stride-1 output.
        out = out[:, :, ::stride, ::stride]
    return out


# ----------------------------------------------------------------------------
# Drop-in module wrapper mirroring the PyTorch `conv` class (NCHW in/out)
# ----------------------------------------------------------------------------
class PallasConv2d:
    def __init__(self, key, in_channel, out_channel, kernel_size,
                 dilation_rate=1, padding=1, stride=1):
        self.cin, self.k = in_channel, kernel_size
        self.dil, self.pad, self.stride = dilation_rate, padding, stride
        kw, kb = jax.random.split(key)
        fan_in = in_channel * kernel_size * kernel_size
        bound = 1.0 / np.sqrt(fan_in)                  # PyTorch Conv2d default init
        self.w = jax.random.uniform(
            kw, (out_channel, in_channel, kernel_size, kernel_size),
            jnp.float32, -bound, bound)                # OIHW, like PyTorch
        self.b = jax.random.uniform(kb, (out_channel,), jnp.float32, -bound, bound)
        # Hoisted per-call weight prep: cached (Cout, K) bf16 + (Cout, 1) f32.
        self.wb, self.bb = prep_conv_weights(self.w, self.b)

    def __call__(self, x):
        return conv2d_pallas(x, self.wb, self.bb, cin=self.cin, kh=self.k,
                             kw=self.k, stride=self.stride,
                             dilation=self.dil, padding=self.pad)


# ----------------------------------------------------------------------------
# Reference (XLA conv on the same bf16-rounded operands)
# ----------------------------------------------------------------------------
def _conv_reference(x, w, b, *, stride, dilation, padding):
    xq = x.astype(jnp.bfloat16).astype(jnp.float32)
    wq = w.astype(jnp.bfloat16).astype(jnp.float32)
    out = jax.lax.conv_general_dilated(
        xq, wq,
        window_strides=(stride, stride),
        padding=[(padding, padding), (padding, padding)],
        rhs_dilation=(dilation, dilation),
        dimension_numbers=("NCHW", "OIHW", "NCHW"),
        preferred_element_type=jnp.float32)
    return out + b[None, :, None, None]


# ----------------------------------------------------------------------------
# Demo
# ----------------------------------------------------------------------------
if __name__ == "__main__":
    key = jax.random.PRNGKey(0)
    kx, kp1, kp2, kp3 = jax.random.split(key, 4)

    N, Cin, H, W = 2, 4, 16, 16
    Cout = 8
    x = jax.random.normal(kx, (N, Cin, H, W), jnp.float32)

    # k=3, dilation=1, padding=1, stride=1 (the common SGMNet configuration)
    m1 = PallasConv2d(kp1, Cin, Cout, 3, dilation_rate=1, padding=1, stride=1)
    y1 = m1(x)
    # dilated branch: k=3, dilation=2, padding=2
    m2 = PallasConv2d(kp2, Cin, Cout, 3, dilation_rate=2, padding=2, stride=1)
    y2 = m2(x)
    # strided conv
    m3 = PallasConv2d(kp3, Cin, Cout, 3, dilation_rate=1, padding=1, stride=2)
    y3 = m3(x)
    jax.block_until_ready((y1, y2, y3))

    assert y1.shape == (N, Cout, 16, 16)
    assert y2.shape == (N, Cout, 16, 16)
    assert y3.shape == (N, Cout, 8, 8)

    for m, y in ((m1, y1), (m2, y2), (m3, y3)):
        ref = _conv_reference(x, m.w, m.b, stride=m.stride,
                              dilation=m.dil, padding=m.pad)
        np.testing.assert_allclose(np.asarray(y), np.asarray(ref),
                                   rtol=2e-2, atol=2e-2)

    print("KERNEL_OK")
</pallas_src>

<mosaic_0001>
module attributes {stable_mosaic.version = 11 : i64} {
  func.func @_conv2d_kernel(%arg0: i32, %arg1: memref<2x4x16x16xf32, #tpu.memory_space<vmem>>, %arg2: memref<8x144xbf16, #tpu.memory_space<vmem>>, %arg3: memref<8x1xf32, #tpu.memory_space<vmem>>, %arg4: memref<2x8x256xf32, #tpu.memory_space<vmem>>, %arg5: memref<2x4x18x18xbf16, #tpu.memory_space<vmem>>, %arg6: memref<144x512xbf16, #tpu.memory_space<vmem>>) attributes {dimension_semantics = [#tpu.dimension_semantics<arbitrary>], iteration_bounds = array<i64: 1>, scalar_prefetch = 0 : i64, scratch_operands = 2 : i64, tpu.core_type = #tpu.core_type<tc>, window_params = [{transform_indices = @transform_0, window_bounds = array<i64: 2, 4, 16, 16>}, {pipeline_mode = #tpu.pipeline_mode<synchronous>, transform_indices = @transform_1, window_bounds = array<i64: 8, 144>}, {pipeline_mode = #tpu.pipeline_mode<synchronous>, transform_indices = @transform_2, window_bounds = array<i64: 8, 1>}, {transform_indices = @transform_3, window_bounds = array<i64: 2, 8, 256>}]} {
    %c0_i32 = arith.constant 0 : i32
    %0 = arith.cmpi eq, %arg0, %c0_i32 : i32
    %1 = arith.extui %0 : i1 to i32
    %c0_i32_0 = arith.constant 0 : i32
    %2 = arith.cmpi ne, %1, %c0_i32_0 : i32
    scf.if %2 {
      %cst_125 = arith.constant 0.000000e+00 : bf16
      %101 = vector.broadcast %cst_125 : bf16 to vector<2x4x18x18xbf16>
      %c0_126 = arith.constant 0 : index
      %c0_127 = arith.constant 0 : index
      %c0_128 = arith.constant 0 : index
      %c0_129 = arith.constant 0 : index
      %102 = vector.load %arg5[%c0_126, %c0_127, %c0_128, %c0_129] : memref<2x4x18x18xbf16, #tpu.memory_space<vmem>>, vector<2x4x18x18xbf16>
      tpu.vector_store %arg5[%c0_126, %c0_127, %c0_128, %c0_129], %101 {strides = array<i32>} : memref<2x4x18x18xbf16, #tpu.memory_space<vmem>>, vector<2x4x18x18xbf16>,
      %cst_130 = arith.constant 0.000000e+00 : bf16
      %103 = vector.broadcast %cst_130 : bf16 to vector<144x512xbf16>
      %c0_131 = arith.constant 0 : index
      %c0_132 = arith.constant 0 : index
      %104 = vector.load %arg6[%c0_131, %c0_132] : memref<144x512xbf16, #tpu.memory_space<vmem>>, vector<144x512xbf16>
      tpu.vector_store %arg6[%c0_131, %c0_132], %103 {strides = array<i32>} : memref<144x512xbf16, #tpu.memory_space<vmem>>, vector<144x512xbf16>,
    } else {
    }
    %c0 = arith.constant 0 : index
    %c0_1 = arith.constant 0 : index
    %c0_2 = arith.constant 0 : index
    %c0_3 = arith.constant 0 : index
    %3 = vector.load %arg1[%c0, %c0_1, %c0_2, %c0_3] : memref<2x4x16x16xf32, #tpu.memory_space<vmem>>, vector<1x4x16x16xf32>
    %4 = vector.shape_cast %3 : vector<1x4x16x16xf32> to vector<4x16x16xf32>
    %5 = arith.truncf %4 : vector<4x16x16xf32> to vector<4x16x16xbf16>
    %c0_4 = arith.constant 0 : index
    %c0_5 = arith.constant 0 : index
    %c1 = arith.constant 1 : index
    %c1_6 = arith.constant 1 : index
    %6 = vector.load %arg5[%c0_4, %c0_5, %c1, %c1_6] : memref<2x4x18x18xbf16, #tpu.memory_space<vmem>>, vector<1x4x16x16xbf16>
    %7 = vector.shape_cast %6 : vector<1x4x16x16xbf16> to vector<4x16x16xbf16>
    %8 = vector.shape_cast %5 : vector<4x16x16xbf16> to vector<1x4x16x16xbf16>
    tpu.vector_store %arg5[%c0_4, %c0_5, %c1, %c1_6], %8 {strides = array<i32>} : memref<2x4x18x18xbf16, #tpu.memory_space<vmem>>, vector<1x4x16x16xbf16>,
    %c1_7 = arith.constant 1 : index
    %c0_8 = arith.constant 0 : index
    %c0_9 = arith.constant 0 : index
    %c0_10 = arith.constant 0 : index
    %9 = vector.load %arg1[%c1_7, %c0_8, %c0_9, %c0_10] : memref<2x4x16x16xf32, #tpu.memory_space<vmem>>, vector<1x4x16x16xf32>
    %10 = vector.shape_cast %9 : vector<1x4x16x16xf32> to vector<4x16x16xf32>
    %11 = arith.truncf %10 : vector<4x16x16xf32> to vector<4x16x16xbf16>
    %c1_11 = arith.constant 1 : index
    %c0_12 = arith.constant 0 : index
    %c1_13 = arith.constant 1 : index
    %c1_14 = arith.constant 1 : index
    %12 = vector.load %arg5[%c1_11, %c0_12, %c1_13, %c1_14] : memref<2x4x18x18xbf16, #tpu.memory_space<vmem>>, vector<1x4x16x16xbf16>
    %13 = vector.shape_cast %12 : vector<1x4x16x16xbf16> to vector<4x16x16xbf16>
    %14 = vector.shape_cast %11 : vector<4x16x16xbf16> to vector<1x4x16x16xbf16>
    tpu.vector_store %arg5[%c1_11, %c0_12, %c1_13, %c1_14], %14 {strides = array<i32>} : memref<2x4x18x18xbf16, #tpu.memory_space<vmem>>, vector<1x4x16x16xbf16>,
    %c0_15 = arith.constant 0 : index
    %c0_16 = arith.constant 0 : index
    %c0_17 = arith.constant 0 : index
    %c0_18 = arith.constant 0 : index
    %15 = vector.load %arg5[%c0_15, %c0_16, %c0_17, %c0_18] : memref<2x4x18x18xbf16, #tpu.memory_space<vmem>>, vector<1x4x16x16xbf16>
    %16 = vector.shape_cast %15 : vector<1x4x16x16xbf16> to vector<4x16x16xbf16>
    %17 = vector.shape_cast %16 : vector<4x16x16xbf16> to vector<4x256xbf16>
    %c0_19 = arith.constant 0 : index
    %c0_20 = arith.constant 0 : index
    %18 = vector.load %arg6[%c0_19, %c0_20] : memref<144x512xbf16, #tpu.memory_space<vmem>>, vector<4x256xbf16>
    tpu.vector_store %arg6[%c0_19, %c0_20], %17 {strides = array<i32>} : memref<144x512xbf16, #tpu.memory_space<vmem>>, vector<4x256xbf16>,
    %c0_21 = arith.constant 0 : index
    %c0_22 = arith.constant 0 : index
    %c0_23 = arith.constant 0 : index
    %c1_24 = arith.constant 1 : index
    %19 = vector.load %arg5[%c0_21, %c0_22, %c0_23, %c1_24] : memref<2x4x18x18xbf16, #tpu.memory_space<vmem>>, vector<1x4x16x16xbf16>
    %20 = vector.shape_cast %19 : vector<1x4x16x16xbf16> to vector<4x16x16xbf16>
    %21 = vector.shape_cast %20 : vector<4x16x16xbf16> to vector<4x256xbf16>
    %c16 = arith.constant 16 : index
    %c0_25 = arith.constant 0 : index
    %22 = vector.load %arg6[%c16, %c0_25] : memref<144x512xbf16, #tpu.memory_space<vmem>>, vector<4x256xbf16>
    tpu.vector_store %arg6[%c16, %c0_25], %21 {strides = array<i32>} : memref<144x512xbf16, #tpu.memory_space<vmem>>, vector<4x256xbf16>,
    %c0_26 = arith.constant 0 : index
    %c0_27 = arith.constant 0 : index
    %c0_28 = arith.constant 0 : index
    %c2 = arith.constant 2 : index
    %23 = vector.load %arg5[%c0_26, %c0_27, %c0_28, %c2] : memref<2x4x18x18xbf16, #tpu.memory_space<vmem>>, vector<1x4x16x16xbf16>
    %24 = vector.shape_cast %23 : vector<1x4x16x16xbf16> to vector<4x16x16xbf16>
    %25 = vector.shape_cast %24 : vector<4x16x16xbf16> to vector<4x256xbf16>
    %c32 = arith.constant 32 : index
    %c0_29 = arith.constant 0 : index
    %26 = vector.load %arg6[%c32, %c0_29] : memref<144x512xbf16, #tpu.memory_space<vmem>>, vector<4x256xbf16>
    tpu.vector_store %arg6[%c32, %c0_29], %25 {strides = array<i32>} : memref<144x512xbf16, #tpu.memory_space<vmem>>, vector<4x256xbf16>,
    %c0_30 = arith.constant 0 : index
    %c0_31 = arith.constant 0 : index
    %c1_32 = arith.constant 1 : index
    %c0_33 = arith.constant 0 : index
    %27 = vector.load %arg5[%c0_30, %c0_31, %c1_32, %c0_33] : memref<2x4x18x18xbf16, #tpu.memory_space<vmem>>, vector<1x4x16x16xbf16>
    %28 = vector.shape_cast %27 : vector<1x4x16x16xbf16> to vector<4x16x16xbf16>
    %29 = vector.shape_cast %28 : vector<4x16x16xbf16> to vector<4x256xbf16>
    %c48 = arith.constant 48 : index
    %c0_34 = arith.constant 0 : index
    %30 = vector.load %arg6[%c48, %c0_34] : memref<144x512xbf16, #tpu.memory_space<vmem>>, vector<4x256xbf16>
    tpu.vector_store %arg6[%c48, %c0_34], %29 {strides = array<i32>} : memref<144x512xbf16, #tpu.memory_space<vmem>>, vector<4x256xbf16>,
    %c0_35 = arith.constant 0 : index
    %c0_36 = arith.constant 0 : index
    %c1_37 = arith.constant 1 : index
    %c1_38 = arith.constant 1 : index
    %31 = vector.load %arg5[%c0_35, %c0_36, %c1_37, %c1_38] : memref<2x4x18x18xbf16, #tpu.memory_space<vmem>>, vector<1x4x16x16xbf16>
    %32 = vector.shape_cast %31 : vector<1x4x16x16xbf16> to vector<4x16x16xbf16>
    %33 = vector.shape_cast %32 : vector<4x16x16xbf16> to vector<4x256xbf16>
    %c64 = arith.constant 64 : index
    %c0_39 = arith.constant 0 : index
    %34 = vector.load %arg6[%c64, %c0_39] : memref<144x512xbf16, #tpu.memory_space<vmem>>, vector<4x256xbf16>
    tpu.vector_store %arg6[%c64, %c0_39], %33 {strides = array<i32>} : memref<144x512xbf16, #tpu.memory_space<vmem>>, vector<4x256xbf16>,
    %c0_40 = arith.constant 0 : index
    %c0_41 = arith.constant 0 : index
    %c1_42 = arith.constant 1 : index
    %c2_43 = arith.constant 2 : index
    %35 = vector.load %arg5[%c0_40, %c0_41, %c1_42, %c2_43] : memref<2x4x18x18xbf16, #tpu.memory_space<vmem>>, vector<1x4x16x16xbf16>
    %36 = vector.shape_cast %35 : vector<1x4x16x16xbf16> to vector<4x16x16xbf16>
    %37 = vector.shape_cast %36 : vector<4x16x16xbf16> to vector<4x256xbf16>
    %c80 = arith.constant 80 : index
    %c0_44 = arith.constant 0 : index
    %38 = vector.load %arg6[%c80, %c0_44] : memref<144x512xbf16, #tpu.memory_space<vmem>>, vector<4x256xbf16>
    tpu.vector_store %arg6[%c80, %c0_44], %37 {strides = array<i32>} : memref<144x512xbf16, #tpu.memory_space<vmem>>, vector<4x256xbf16>,
    %c0_45 = arith.constant 0 : index
    %c0_46 = arith.constant 0 : index
    %c2_47 = arith.constant 2 : index
    %c0_48 = arith.constant 0 : index
    %39 = vector.load %arg5[%c0_45, %c0_46, %c2_47, %c0_48] : memref<2x4x18x18xbf16, #tpu.memory_space<vmem>>, vector<1x4x16x16xbf16>
    %40 = vector.shape_cast %39 : vector<1x4x16x16xbf16> to vector<4x16x16xbf16>
    %41 = vector.shape_cast %40 : vector<4x16x16xbf16> to vector<4x256xbf16>
    %c96 = arith.constant 96 : index
    %c0_49 = arith.constant 0 : index
    %42 = vector.load %arg6[%c96, %c0_49] : memref<144x512xbf16, #tpu.memory_space<vmem>>, vector<4x256xbf16>
    tpu.vector_store %arg6[%c96, %c0_49], %41 {strides = array<i32>} : memref<144x512xbf16, #tpu.memory_space<vmem>>, vector<4x256xbf16>,
    %c0_50 = arith.constant 0 : index
    %c0_51 = arith.constant 0 : index
    %c2_52 = arith.constant 2 : index
    %c1_53 = arith.constant 1 : index
    %43 = vector.load %arg5[%c0_50, %c0_51, %c2_52, %c1_53] : memref<2x4x18x18xbf16, #tpu.memory_space<vmem>>, vector<1x4x16x16xbf16>
    %44 = vector.shape_cast %43 : vector<1x4x16x16xbf16> to vector<4x16x16xbf16>
    %45 = vector.shape_cast %44 : vector<4x16x16xbf16> to vector<4x256xbf16>
    %c112 = arith.constant 112 : index
    %c0_54 = arith.constant 0 : index
    %46 = vector.load %arg6[%c112, %c0_54] : memref<144x512xbf16, #tpu.memory_space<vmem>>, vector<4x256xbf16>
    tpu.vector_store %arg6[%c112, %c0_54], %45 {strides = array<i32>} : memref<144x512xbf16, #tpu.memory_space<vmem>>, vector<4x256xbf16>,
    %c0_55 = arith.constant 0 : index
    %c0_56 = arith.constant 0 : index
    %c2_57 = arith.constant 2 : index
    %c2_58 = arith.constant 2 : index
    %47 = vector.load %arg5[%c0_55, %c0_56, %c2_57, %c2_58] : memref<2x4x18x18xbf16, #tpu.memory_space<vmem>>, vector<1x4x16x16xbf16>
    %48 = vector.shape_cast %47 : vector<1x4x16x16xbf16> to vector<4x16x16xbf16>
    %49 = vector.shape_cast %48 : vector<4x16x16xbf16> to vector<4x256xbf16>
    %c128 = arith.constant 128 : index
    %c0_59 = arith.constant 0 : index
    %50 = vector.load %arg6[%c128, %c0_59] : memref<144x512xbf16, #tpu.memory_space<vmem>>, vector<4x256xbf16>
    tpu.vector_store %arg6[%c128, %c0_59], %49 {strides = array<i32>} : memref<144x512xbf16, #tpu.memory_space<vmem>>, vector<4x256xbf16>,
    %c1_60 = arith.constant 1 : index
    %c0_61 = arith.constant 0 : index
    %c0_62 = arith.constant 0 : index
    %c0_63 = arith.constant 0 : index
    %51 = vector.load %arg5[%c1_60, %c0_61, %c0_62, %c0_63] : memref<2x4x18x18xbf16, #tpu.memory_space<vmem>>, vector<1x4x16x16xbf16>
    %52 = vector.shape_cast %51 : vector<1x4x16x16xbf16> to vector<4x16x16xbf16>
    %53 = vector.shape_cast %52 : vector<4x16x16xbf16> to vector<4x256xbf16>
    %c0_64 = arith.constant 0 : index
    %c256 = arith.constant 256 : index
    %54 = vector.load %arg6[%c0_64, %c256] : memref<144x512xbf16, #tpu.memory_space<vmem>>, vector<4x256xbf16>
    tpu.vector_store %arg6[%c0_64, %c256], %53 {strides = array<i32>} : memref<144x512xbf16, #tpu.memory_space<vmem>>, vector<4x256xbf16>,
    %c1_65 = arith.constant 1 : index
    %c0_66 = arith.constant 0 : index
    %c0_67 = arith.constant 0 : index
    %c1_68 = arith.constant 1 : index
    %55 = vector.load %arg5[%c1_65, %c0_66, %c0_67, %c1_68] : memref<2x4x18x18xbf16, #tpu.memory_space<vmem>>, vector<1x4x16x16xbf16>
    %56 = vector.shape_cast %55 : vector<1x4x16x16xbf16> to vector<4x16x16xbf16>
    %57 = vector.shape_cast %56 : vector<4x16x16xbf16> to vector<4x256xbf16>
    %c16_69 = arith.constant 16 : index
    %c256_70 = arith.constant 256 : index
    %58 = vector.load %arg6[%c16_69, %c256_70] : memref<144x512xbf16, #tpu.memory_space<vmem>>, vector<4x256xbf16>
    tpu.vector_store %arg6[%c16_69, %c256_70], %57 {strides = array<i32>} : memref<144x512xbf16, #tpu.memory_space<vmem>>, vector<4x256xbf16>,
    %c1_71 = arith.constant 1 : index
    %c0_72 = arith.constant 0 : index
    %c0_73 = arith.constant 0 : index
    %c2_74 = arith.constant 2 : index
    %59 = vector.load %arg5[%c1_71, %c0_72, %c0_73, %c2_74] : memref<2x4x18x18xbf16, #tpu.memory_space<vmem>>, vector<1x4x16x16xbf16>
    %60 = vector.shape_cast %59 : vector<1x4x16x16xbf16> to vector<4x16x16xbf16>
    %61 = vector.shape_cast %60 : vector<4x16x16xbf16> to vector<4x256xbf16>
    %c32_75 = arith.constant 32 : index
    %c256_76 = arith.constant 256 : index
    %62 = vector.load %arg6[%c32_75, %c256_76] : memref<144x512xbf16, #tpu.memory_space<vmem>>, vector<4x256xbf16>
    tpu.vector_store %arg6[%c32_75, %c256_76], %61 {strides = array<i32>} : memref<144x512xbf16, #tpu.memory_space<vmem>>, vector<4x256xbf16>,
    %c1_77 = arith.constant 1 : index
    %c0_78 = arith.constant 0 : index
    %c1_79 = arith.constant 1 : index
    %c0_80 = arith.constant 0 : index
    %63 = vector.load %arg5[%c1_77, %c0_78, %c1_79, %c0_80] : memref<2x4x18x18xbf16, #tpu.memory_space<vmem>>, vector<1x4x16x16xbf16>
    %64 = vector.shape_cast %63 : vector<1x4x16x16xbf16> to vector<4x16x16xbf16>
    %65 = vector.shape_cast %64 : vector<4x16x16xbf16> to vector<4x256xbf16>
    %c48_81 = arith.constant 48 : index
    %c256_82 = arith.constant 256 : index
    %66 = vector.load %arg6[%c48_81, %c256_82] : memref<144x512xbf16, #tpu.memory_space<vmem>>, vector<4x256xbf16>
    tpu.vector_store %arg6[%c48_81, %c256_82], %65 {strides = array<i32>} : memref<144x512xbf16, #tpu.memory_space<vmem>>, vector<4x256xbf16>,
    %c1_83 = arith.constant 1 : index
    %c0_84 = arith.constant 0 : index
    %c1_85 = arith.constant 1 : index
    %c1_86 = arith.constant 1 : index
    %67 = vector.load %arg5[%c1_83, %c0_84, %c1_85, %c1_86] : memref<2x4x18x18xbf16, #tpu.memory_space<vmem>>, vector<1x4x16x16xbf16>
    %68 = vector.shape_cast %67 : vector<1x4x16x16xbf16> to vector<4x16x16xbf16>
    %69 = vector.shape_cast %68 : vector<4x16x16xbf16> to vector<4x256xbf16>
    %c64_87 = arith.constant 64 : index
    %c256_88 = arith.constant 256 : index
    %70 = vector.load %arg6[%c64_87, %c256_88] : memref<144x512xbf16, #tpu.memory_space<vmem>>, vector<4x256xbf16>
    tpu.vector_store %arg6[%c64_87, %c256_88], %69 {strides = array<i32>} : memref<144x512xbf16, #tpu.memory_space<vmem>>, vector<4x256xbf16>,
    %c1_89 = arith.constant 1 : index
    %c0_90 = arith.constant 0 : index
    %c1_91 = arith.constant 1 : index
    %c2_92 = arith.constant 2 : index
    %71 = vector.load %arg5[%c1_89, %c0_90, %c1_91, %c2_92] : memref<2x4x18x18xbf16, #tpu.memory_space<vmem>>, vector<1x4x16x16xbf16>
    %72 = vector.shape_cast %71 : vector<1x4x16x16xbf16> to vector<4x16x16xbf16>
    %73 = vector.shape_cast %72 : vector<4x16x16xbf16> to vector<4x256xbf16>
    %c80_93 = arith.constant 80 : index
    %c256_94 = arith.constant 256 : index
    %74 = vector.load %arg6[%c80_93, %c256_94] : memref<144x512xbf16, #tpu.memory_space<vmem>>, vector<4x256xbf16>
    tpu.vector_store %arg6[%c80_93, %c256_94], %73 {strides = array<i32>} : memref<144x512xbf16, #tpu.memory_space<vmem>>, vector<4x256xbf16>,
    %c1_95 = arith.constant 1 : index
    %c0_96 = arith.constant 0 : index
    %c2_97 = arith.constant 2 : index
    %c0_98 = arith.constant 0 : index
    %75 = vector.load %arg5[%c1_95, %c0_96, %c2_97, %c0_98] : memref<2x4x18x18xbf16, #tpu.memory_space<vmem>>, vector<1x4x16x16xbf16>
    %76 = vector.shape_cast %75 : vector<1x4x16x16xbf16> to vector<4x16x16xbf16>
    %77 = vector.shape_cast %76 : vector<4x16x16xbf16> to vector<4x256xbf16>
    %c96_99 = arith.constant 96 : index
    %c256_100 = arith.constant 256 : index
    %78 = vector.load %arg6[%c96_99, %c256_100] : memref<144x512xbf16, #tpu.memory_space<vmem>>, vector<4x256xbf16>
    tpu.vector_store %arg6[%c96_99, %c256_100], %77 {strides = array<i32>} : memref<144x512xbf16, #tpu.memory_space<vmem>>, vector<4x256xbf16>,
    %c1_101 = arith.constant 1 : index
    %c0_102 = arith.constant 0 : index
    %c2_103 = arith.constant 2 : index
    %c1_104 = arith.constant 1 : index
    %79 = vector.load %arg5[%c1_101, %c0_102, %c2_103, %c1_104] : memref<2x4x18x18xbf16, #tpu.memory_space<vmem>>, vector<1x4x16x16xbf16>
    %80 = vector.shape_cast %79 : vector<1x4x16x16xbf16> to vector<4x16x16xbf16>
    %81 = vector.shape_cast %80 : vector<4x16x16xbf16> to vector<4x256xbf16>
    %c112_105 = arith.constant 112 : index
    %c256_106 = arith.constant 256 : index
    %82 = vector.load %arg6[%c112_105, %c256_106] : memref<144x512xbf16, #tpu.memory_space<vmem>>, vector<4x256xbf16>
    tpu.vector_store %arg6[%c112_105, %c256_106], %81 {strides = array<i32>} : memref<144x512xbf16, #tpu.memory_space<vmem>>, vector<4x256xbf16>,
    %c1_107 = arith.constant 1 : index
    %c0_108 = arith.constant 0 : index
    %c2_109 = arith.constant 2 : index
    %c2_110 = arith.constant 2 : index
    %83 = vector.load %arg5[%c1_107, %c0_108, %c2_109, %c2_110] : memref<2x4x18x18xbf16, #tpu.memory_space<vmem>>, vector<1x4x16x16xbf16>
    %84 = vector.shape_cast %83 : vector<1x4x16x16xbf16> to vector<4x16x16xbf16>
    %85 = vector.shape_cast %84 : vector<4x16x16xbf16> to vector<4x256xbf16>
    %c128_111 = arith.constant 128 : index
    %c256_112 = arith.constant 256 : index
    %86 = vector.load %arg6[%c128_111, %c256_112] : memref<144x512xbf16, #tpu.memory_space<vmem>>, vector<4x256xbf16>
    tpu.vector_store %arg6[%c128_111, %c256_112], %85 {strides = array<i32>} : memref<144x512xbf16, #tpu.memory_space<vmem>>, vector<4x256xbf16>,
    %c0_113 = arith.constant 0 : index
    %c0_114 = arith.constant 0 : index
    %87 = vector.load %arg2[%c0_113, %c0_114] : memref<8x144xbf16, #tpu.memory_space<vmem>>, vector<8x144xbf16>
    %c0_115 = arith.constant 0 : index
    %c0_116 = arith.constant 0 : index
    %88 = vector.load %arg6[%c0_115, %c0_116] : memref<144x512xbf16, #tpu.memory_space<vmem>>, vector<144x512xbf16>
    %cst = arith.constant dense<0.000000e+00> : vector<8x512xf32>
    %89 = tpu.matmul %87, %88, %cst {dimension_numbers = #tpu.dot_dimension_numbers<[1], [0], [0], [1], [0, 0, 1, 1], [], []>} : vector<8x144xbf16>, vector<144x512xbf16>, vector<8x512xf32> -> vector<8x512xf32>
    %c0_117 = arith.constant 0 : index
    %c0_118 = arith.constant 0 : index
    %90 = vector.load %arg3[%c0_117, %c0_118] : memref<8x1xf32, #tpu.memory_space<vmem>>, vector<8x1xf32>
    %91 = vector.broadcast %90 : vector<8x1xf32> to vector<8x512xf32>
    %92 = arith.addf %89, %91 : vector<8x512xf32>
    %93 = vector.extract_strided_slice %92 {offsets = [0, 0], sizes = [8, 256], strides = [1, 1]} : vector<8x512xf32> to vector<8x256xf32>
    %c0_119 = arith.constant 0 : index
    %c0_120 = arith.constant 0 : index
    %c0_121 = arith.constant 0 : index
    %94 = vector.load %arg4[%c0_119, %c0_120, %c0_121] : memref<2x8x256xf32, #tpu.memory_space<vmem>>, vector<1x8x256xf32>
    %95 = vector.shape_cast %94 : vector<1x8x256xf32> to vector<8x256xf32>
    %96 = vector.shape_cast %93 : vector<8x256xf32> to vector<1x8x256xf32>
    tpu.vector_store %arg4[%c0_119, %c0_120, %c0_121], %96 {strides = array<i32>} : memref<2x8x256xf32, #tpu.memory_space<vmem>>, vector<1x8x256xf32>,
    %97 = vector.extract_strided_slice %92 {offsets = [0, 256], sizes = [8, 256], strides = [1, 1]} : vector<8x512xf32> to vector<8x256xf32>
    %c1_122 = arith.constant 1 : index
    %c0_123 = arith.constant 0 : index
    %c0_124 = arith.constant 0 : index
    %98 = vector.load %arg4[%c1_122, %c0_123, %c0_124] : memref<2x8x256xf32, #tpu.memory_space<vmem>>, vector<1x8x256xf32>
    %99 = vector.shape_cast %98 : vector<1x8x256xf32> to vector<8x256xf32>
    %100 = vector.shape_cast %97 : vector<8x256xf32> to vector<1x8x256xf32>
    tpu.vector_store %arg4[%c1_122, %c0_123, %c0_124], %100 {strides = array<i32>} : memref<2x8x256xf32, #tpu.memory_space<vmem>>, vector<1x8x256xf32>,
    return
  }
  func.func @transform_0(%arg0: i32) -> (i32, i32, i32, i32) {
    %c0_i32 = arith.constant 0 : i32
    %c0_i32_0 = arith.constant 0 : i32
    %c0_i32_1 = arith.constant 0 : i32
    %c0_i32_2 = arith.constant 0 : i32
    return %arg0, %c0_i32, %c0_i32_0, %c0_i32_1 : i32, i32, i32, i32
  }
  func.func @transform_1(%arg0: i32) -> (i32, i32) {
    %c0_i32 = arith.constant 0 : i32
    %c0_i32_0 = arith.constant 0 : i32
    %c0_i32_1 = arith.constant 0 : i32
    return %c0_i32, %c0_i32_0 : i32, i32
  }
  func.func @transform_2(%arg0: i32) -> (i32, i32) {
    %c0_i32 = arith.constant 0 : i32
    %c0_i32_0 = arith.constant 0 : i32
    %c0_i32_1 = arith.constant 0 : i32
    return %c0_i32, %c0_i32_0 : i32, i32
  }
  func.func @transform_3(%arg0: i32) -> (i32, i32, i32) {
    %c0_i32 = arith.constant 0 : i32
    %c0_i32_0 = arith.constant 0 : i32
    %c0_i32_1 = arith.constant 0 : i32
    return %arg0, %c0_i32, %c0_i32_0 : i32, i32, i32
  }
}

</mosaic_0001>

<llo_original>
// kernel: tpu_custom_call.1
$region0: #{tpu_custom_call.1}
  #allocation0 [shape = 'u32[]', space=smem, size = 0x4, offset = 0x4, fixed_abs, tag = 'smem constant byte address 0x4 - core index']
  #allocation1 [shape = 'u32[144,128]{1,0:T(1,128)}', space=vmem, size = 0x12000, scoped, tag = 'internal scratch']
  #allocation2 [shape = 'bf16[2,4,18,18]{3,2,1,0:T(8,128)(2,1)}', space=vmem, size = 0xc000, scoped, tag = 'scratch operand']
  #allocation3 [shape = 'bf16[144,512]{1,0:T(8,128)(2,1)}', space=vmem, size = 0x24000, scoped, tag = 'scratch operand']
  %s0 = inlined_call_operand.hbm [shape: f32[2,4,16,16], index: 0, kind: input, shape index: {}]
  %s1 = inlined_call_operand.vmem [shape: bf16[8,144], index: 1, kind: input, shape index: {}]
  %s2 = inlined_call_operand.vmem [shape: f32[8,1], index: 2, kind: input, shape index: {}]
  %s3 = inlined_call_operand.hbm [shape: f32[2,8,256], index: 3, kind: output, shape index: {}]
  %s4 = sld [smem:[#allocation0]]
  $region30: #{tpu_custom_call.1} parent=0
    _
  %s6 = ssub.s32 1, %s4
  %s7 = scalar_select 0, %s6, %s4
  $region1: #{tpu_custom_call.1} parent=0
    #allocation4 [shape = 'u8[65536]{0}', space=vmem, size = 0x10000, scoped, tag = 'input window, operand 0, single buffered']
    #allocation5 [shape = 's32[1]{0}', space=sflag, size = 0x4, scoped, tag = 'scoped memory for tpu_custom_call.1']
    #allocation6 [shape = 's32[1]{0}', space=sflag, size = 0x4, scoped, tag = 'scoped memory for tpu_custom_call.1']
    #allocation7 [shape = 'u8[16384]{0}', space=vmem, size = 0x4000, scoped, tag = 'output window, operand 0, single buffered']
    %8 = vsyncpa [#allocation5], 0
    %9 = vsyncpa [#allocation6], 0
    // Predicated region
    $region2: #{tpu_custom_call.1} parent=1 // pred_check
      _
    $region3: #{tpu_custom_call.1} parent=1 // pred_check_branch
      %11 = sbr.rel (0) target = $region5
    $region4: #{tpu_custom_call.1} parent=1 // pred_region
      %s13 = ssub.s32 2048, 2048
      %14 = vsyncadd [#allocation5], %s13
      %s15 = sshll.u32 [#allocation4], 4
      %s16 = int_to_ptr.vmem [resolvable:$true] %s15
      %21 = dma.hbm_to_vmem [thread:$0]  %s0, 2048, %s16, [#allocation5], 128, 128, 8
    $region5: #{tpu_custom_call.1} parent=1 // pred_fallthru
      _
    // Predicated region
    $region6: #{tpu_custom_call.1} parent=1 // pred_check
      _
    $region7: #{tpu_custom_call.1} parent=1 // pred_check_branch
      %23 = sbr.rel (0) target = $region9
    $region8: #{tpu_custom_call.1} parent=1 // pred_region
      _
    $region9: #{tpu_custom_call.1} parent=1 // pred_fallthru
      _
    // Predicated region
    $region10: #{tpu_custom_call.1} parent=1 // pred_check
      _
    $region11: #{tpu_custom_call.1} parent=1 // pred_check_branch
      %25 = sbr.rel (0) target = $region13
    $region12: #{tpu_custom_call.1} parent=1 // pred_region
      _
    $region13: #{tpu_custom_call.1} parent=1 // pred_fallthru
      _
    // Predicated region
    $region14: #{tpu_custom_call.1} parent=1 // pred_check
      _
    $region15: #{tpu_custom_call.1} parent=1 // pred_check_branch
      %27 = sbr.rel (0) target = $region17
    $region16: #{tpu_custom_call.1} parent=1 // pred_region
      %28 = dma.done [#allocation5], 2048
    $region17: #{tpu_custom_call.1} parent=1 // pred_fallthru
      _
    %p30 = scmp.eq.s32.totalorder 0, 0
    // Predicated region
    $region18: #{tpu_custom_call.1} parent=1 // pred_check
      %p31 = pneg %p30
    $region19: #{tpu_custom_call.1} parent=1 // pred_check_branch
      %33 = sbr.rel (%p31) target = $region21
    $region20: #{tpu_custom_call.1} parent=1 // pred_region
      %vm34 = vcmask 142336
      %35 = vst.msk [vmem:[#allocation2] sm:$0xf] %vm34, 0
      %36 = vst.msk [vmem:[#allocation2 + $0x4] sm:$0xf] %vm34, 0
      %vm37 = vcmask 139264
      %38 = vst.msk [vmem:[#allocation2 + $0x8] sm:$0x1] %vm37, 0
      %39 = vst.msk [vmem:[#allocation2 + $0xc] sm:$0xf] %vm34, 0
      %40 = vst.msk [vmem:[#allocation2 + $0x10] sm:$0xf] %vm34, 0
      %41 = vst.msk [vmem:[#allocation2 + $0x14] sm:$0x1] %vm37, 0
      %42 = vst.msk [vmem:[#allocation2 + $0x18] sm:$0xf] %vm34, 0
      %43 = vst.msk [vmem:[#allocation2 + $0x1c] sm:$0xf] %vm34, 0
      %44 = vst.msk [vmem:[#allocation2 + $0x20] sm:$0x1] %vm37, 0
      %45 = vst.msk [vmem:[#allocation2 + $0x24] sm:$0xf] %vm34, 0
      %46 = vst.msk [vmem:[#allocation2 + $0x28] sm:$0xf] %vm34, 0
      %47 = vst.msk [vmem:[#allocation2 + $0x2c] sm:$0x1] %vm37, 0
      %48 = vst.msk [vmem:[#allocation2 + $0x30] sm:$0xf] %vm34, 0
      %49 = vst.msk [vmem:[#allocation2 + $0x34] sm:$0xf] %vm34, 0
      %50 = vst.msk [vmem:[#allocation2 + $0x38] sm:$0x1] %vm37, 0
      %51 = vst.msk [vmem:[#allocation2 + $0x3c] sm:$0xf] %vm34, 0
      %52 = vst.msk [vmem:[#allocation2 + $0x40] sm:$0xf] %vm34, 0
      %53 = vst.msk [vmem:[#allocation2 + $0x44] sm:$0x1] %vm37, 0
      %54 = vst.msk [vmem:[#allocation2 + $0x48] sm:$0xf] %vm34, 0
      %55 = vst.msk [vmem:[#allocation2 + $0x4c] sm:$0xf] %vm34, 0
      %56 = vst.msk [vmem:[#allocation2 + $0x50] sm:$0x1] %vm37, 0
      %57 = vst.msk [vmem:[#allocation2 + $0x54] sm:$0xf] %vm34, 0
      %58 = vst.msk [vmem:[#allocation2 + $0x58] sm:$0xf] %vm34, 0
      %59 = vst.msk [vmem:[#allocation2 + $0x5c] sm:$0x1] %vm37, 0
      %60 = vst [vmem:[#allocation3] sm:$0xff] 0
      %61 = vst [vmem:[#allocation3 + $0x8] sm:$0xff] 0
      %62 = vst [vmem:[#allocation3 + $0x10] sm:$0xff] 0
      %63 = vst [vmem:[#allocation3 + $0x18] sm:$0xff] 0
      %64 = vst [vmem:[#allocation3 + $0x20] sm:$0xff] 0
      %65 = vst [vmem:[#allocation3 + $0x28] sm:$0xff] 0
      %66 = vst [vmem:[#allocation3 + $0x30] sm:$0xff] 0
      %67 = vst [vmem:[#allocation3 + $0x38] sm:$0xff] 0
      %68 = vst [vmem:[#allocation3 + $0x40] sm:$0xff] 0
      %69 = vst [vmem:[#allocation3 + $0x48] sm:$0xff] 0
      %70 = vst [vmem:[#allocation3 + $0x50] sm:$0xff] 0
      %71 = vst [vmem:[#allocation3 + $0x58] sm:$0xff] 0
      %72 = vst [vmem:[#allocation3 + $0x60] sm:$0xff] 0
      %73 = vst [vmem:[#allocation3 + $0x68] sm:$0xff] 0
      %74 = vst [vmem:[#allocation3 + $0x70] sm:$0xff] 0
      %75 = vst [vmem:[#allocation3 + $0x78] sm:$0xff] 0
      %76 = vst [vmem:[#allocation3 + $0x80] sm:$0xff] 0
      %77 = vst [vmem:[#allocation3 + $0x88] sm:$0xff] 0
      %78 = vst [vmem:[#allocation3 + $0x90] sm:$0xff] 0
      %79 = vst [vmem:[#allocation3 + $0x98] sm:$0xff] 0
      %80 = vst [vmem:[#allocation3 + $0xa0] sm:$0xff] 0
      %81 = vst [vmem:[#allocation3 + $0xa8] sm:$0xff] 0
      %82 = vst [vmem:[#allocation3 + $0xb0] sm:$0xff] 0
      %83 = vst [vmem:[#allocation3 + $0xb8] sm:$0xff] 0
      %84 = vst [vmem:[#allocation3 + $0xc0] sm:$0xff] 0
      %85 = vst [vmem:[#allocation3 + $0xc8] sm:$0xff] 0
      %86 = vst [vmem:[#allocation3 + $0xd0] sm:$0xff] 0
      %87 = vst [vmem:[#allocation3 + $0xd8] sm:$0xff] 0
      %88 = vst [vmem:[#allocation3 + $0xe0] sm:$0xff] 0
      %89 = vst [vmem:[#allocation3 + $0xe8] sm:$0xff] 0
      %90 = vst [vmem:[#allocation3 + $0xf0] sm:$0xff] 0
      %91 = vst [vmem:[#allocation3 + $0xf8] sm:$0xff] 0
      %92 = vst [vmem:[#allocation3 + $0x100] sm:$0xff] 0
      %93 = vst [vmem:[#allocation3 + $0x108] sm:$0xff] 0
      %94 = vst [vmem:[#allocation3 + $0x110] sm:$0xff] 0
      %95 = vst [vmem:[#allocation3 + $0x118] sm:$0xff] 0
    $region21: #{tpu_custom_call.1} parent=1 // pred_fallthru
      _
    %v96 = vld [vmem:[#allocation4] sm:$0xff]
    %v97 = vld [vmem:[#allocation4 + $0x8] sm:$0xff]
    %v98 = vld [vmem:[#allocation4 + $0x10] sm:$0xff]
    %v99 = vld [vmem:[#allocation4 + $0x18] sm:$0xff]
    %v100 = vld [vmem:[#allocation4 + $0x20] sm:$0xff]
    %v101 = vld [vmem:[#allocation4 + $0x28] sm:$0xff]
    %v102 = vld [vmem:[#allocation4 + $0x30] sm:$0xff]
    %v103 = vld [vmem:[#allocation4 + $0x38] sm:$0xff]
    %v104 = vpack.c.bf16 %v97, %v96
    %v105 = vpack.c.bf16 %v99, %v98
    %v106 = vpack.c.bf16 %v101, %v100
    %v107 = vpack.c.bf16 %v103, %v102
    %v112 = vunpack.c.l.b16 %v104
    %v113 = vunpack.c.h.b16 %v104
    %v114 = vunpack.c.l.b16 %v105
    %v115 = vunpack.c.h.b16 %v105
    %v116 = vunpack.c.l.b16 %v106
    %v117 = vunpack.c.h.b16 %v106
    %v118 = vunpack.c.l.b16 %v107
    %v119 = vunpack.c.h.b16 %v107
    %v120 = vpack.c.b16 %v112, %v112
    %v121 = vpack.c.b16 %v113, %v113
    %v122 = vpack.c.b16 %v114, %v114
    %v123 = vpack.c.b16 %v115, %v115
    %v124 = vpack.c.b16 %v116, %v116
    %v125 = vpack.c.b16 %v117, %v117
    %v126 = vpack.c.b16 %v118, %v118
    %v127 = vpack.c.b16 %v119, %v119
    %vm128 = vsmask.f32 256
    %vm129 = vsmask.f32 4368
    %vm130 = vmor %vm128, %vm129
    %v132 = vshrl.u32 %v120, 16
    %v134 = vrot.slane %v132, 7
    %v135 = vshll.u32 %v120, 16
    %v137 = vor.u32 %v134, %v135
    %v138 = vrot.slane %v134, 4
    %v140 = vshrl.u32 %v121, 16
    %v142 = vrot.slane %v140, 7
    %v143 = vshll.u32 %v121, 16
    %v145 = vor.u32 %v142, %v143
    %v146 = vsel %vm130, %v138, %v145
    %v147 = vrot.slane %v142, 4
    %v149 = vshrl.u32 %v122, 16
    %v151 = vrot.slane %v149, 7
    %v152 = vshll.u32 %v122, 16
    %v154 = vor.u32 %v151, %v152
    %v155 = vrot.slane %v151, 4
    %v157 = vshrl.u32 %v123, 16
    %v159 = vrot.slane %v157, 7
    %v160 = vshll.u32 %v123, 16
    %v162 = vor.u32 %v159, %v160
    %v163 = vsel %vm130, %v155, %v162
    %v164 = vrot.slane %v159, 4
    %v166 = vshrl.u32 %v124, 16
    %v168 = vrot.slane %v166, 7
    %v169 = vshll.u32 %v124, 16
    %v171 = vor.u32 %v168, %v169
    %v172 = vrot.slane %v168, 4
    %v174 = vshrl.u32 %v125, 16
    %v176 = vrot.slane %v174, 7
    %v177 = vshll.u32 %v125, 16
    %v179 = vor.u32 %v176, %v177
    %v180 = vsel %vm130, %v172, %v179
    %v181 = vrot.slane %v176, 4
    %v183 = vshrl.u32 %v126, 16
    %v185 = vrot.slane %v183, 7
    %v186 = vshll.u32 %v126, 16
    %v188 = vor.u32 %v185, %v186
    %v189 = vrot.slane %v185, 4
    %v191 = vshrl.u32 %v127, 16
    %v193 = vrot.slane %v191, 7
    %v194 = vshll.u32 %v127, 16
    %v196 = vor.u32 %v193, %v194
    %v197 = vsel %vm130, %v189, %v196
    %v198 = vrot.slane %v193, 4
    %199 = vrot.lane.b32.xlu0 %v137, 1
    %v200 = vpop.permute.xlu0 %199
    %201 = vrot.lane.b32.xlu0 %v146, 1
    %v202 = vpop.permute.xlu0 %201
    %203 = vrot.lane.b32.xlu0 %v147, 1
    %v204 = vpop.permute.xlu0 %203
    %205 = vrot.lane.b32.xlu0 %v154, 1
    %v206 = vpop.permute.xlu0 %205
    %207 = vrot.lane.b32.xlu0 %v163, 1
    %v208 = vpop.permute.xlu0 %207
    %209 = vrot.lane.b32.xlu0 %v164, 1
    %v210 = vpop.permute.xlu0 %209
    %211 = vrot.lane.b32.xlu0 %v171, 1
    %v212 = vpop.permute.xlu0 %211
    %213 = vrot.lane.b32.xlu0 %v180, 1
    %v214 = vpop.permute.xlu0 %213
    %215 = vrot.lane.b32.xlu0 %v181, 1
    %v216 = vpop.permute.xlu0 %215
    %217 = vrot.lane.b32.xlu0 %v188, 1
    %v218 = vpop.permute.xlu0 %217
    %219 = vrot.lane.b32.xlu0 %v197, 1
    %v220 = vpop.permute.xlu0 %219
    %221 = vrot.lane.b32.xlu0 %v198, 1
    %v222 = vpop.permute.xlu0 %221
    %vm235 = vcmask 134152
    %vm236 = vsmask.f32 7938
    %vm237 = vmand %vm235, %vm236
    %v238 = vld [vmem:[#allocation2] sm:$0xf]
    %v239 = vsel %vm237, %v200, %v238
    %240 = vst [vmem:[#allocation2] sm:$0xf] %v239
    %vm241 = vcmask 134152
    %242 = vst.msk [vmem:[#allocation2 + $0x4] sm:$0xf] %vm241, %v202
    %vm243 = vcmask 131080
    %vm244 = vmand %vm243, %vm128
    %v245 = vld [vmem:[#allocation2 + $0x8] sm:$0x1]
    %v246 = vsel %vm244, %v204, %v245
    %247 = vst [vmem:[#allocation2 + $0x8] sm:$0x1] %v246
    %v248 = vld [vmem:[#allocation2 + $0xc] sm:$0xf]
    %v249 = vsel %vm237, %v206, %v248
    %250 = vst [vmem:[#allocation2 + $0xc] sm:$0xf] %v249
    %251 = vst.msk [vmem:[#allocation2 + $0x10] sm:$0xf] %vm241, %v208
    %v252 = vld [vmem:[#allocation2 + $0x14] sm:$0x1]
    %v253 = vsel %vm244, %v210, %v252
    %254 = vst [vmem:[#allocation2 + $0x14] sm:$0x1] %v253
    %v255 = vld [vmem:[#allocation2 + $0x18] sm:$0xf]
    %v256 = vsel %vm237, %v212, %v255
    %257 = vst [vmem:[#allocation2 + $0x18] sm:$0xf] %v256
    %258 = vst.msk [vmem:[#allocation2 + $0x1c] sm:$0xf] %vm241, %v214
    %v259 = vld [vmem:[#allocation2 + $0x20] sm:$0x1]
    %v260 = vsel %vm244, %v216, %v259
    %261 = vst [vmem:[#allocation2 + $0x20] sm:$0x1] %v260
    %v262 = vld [vmem:[#allocation2 + $0x24] sm:$0xf]
    %v263 = vsel %vm237, %v218, %v262
    %264 = vst [vmem:[#allocation2 + $0x24] sm:$0xf] %v263
    %265 = vst.msk [vmem:[#allocation2 + $0x28] sm:$0xf] %vm241, %v220
    %v266 = vld [vmem:[#allocation2 + $0x2c] sm:$0x1]
    %v267 = vsel %vm244, %v222, %v266
    %268 = vst [vmem:[#allocation2 + $0x2c] sm:$0x1] %v267
    %s269 = scalar_lea.vmem [#allocation4], 64
    %v270 = vld [vmem:[%s269] sm:$0xff]
    %v271 = vld [vmem:[%s269 + $0x8] sm:$0xff]
    %v272 = vld [vmem:[%s269 + $0x10] sm:$0xff]
    %v273 = vld [vmem:[%s269 + $0x18] sm:$0xff]
    %v274 = vld [vmem:[%s269 + $0x20] sm:$0xff]
    %v275 = vld [vmem:[%s269 + $0x28] sm:$0xff]
    %v276 = vld [vmem:[%s269 + $0x30] sm:$0xff]
    %v277 = vld [vmem:[%s269 + $0x38] sm:$0xff]
    %v278 = vpack.c.bf16 %v271, %v270
    %v279 = vpack.c.bf16 %v273, %v272
    %v280 = vpack.c.bf16 %v275, %v274
    %v281 = vpack.c.bf16 %v277, %v276
    %v286 = vunpack.c.l.b16 %v278
    %v287 = vunpack.c.h.b16 %v278
    %v288 = vunpack.c.l.b16 %v279
    %v289 = vunpack.c.h.b16 %v279
    %v290 = vunpack.c.l.b16 %v280
    %v291 = vunpack.c.h.b16 %v280
    %v292 = vunpack.c.l.b16 %v281
    %v293 = vunpack.c.h.b16 %v281
    %v294 = vpack.c.b16 %v286, %v286
    %v295 = vpack.c.b16 %v287, %v287
    %v296 = vpack.c.b16 %v288, %v288
    %v297 = vpack.c.b16 %v289, %v289
    %v298 = vpack.c.b16 %v290, %v290
    %v299 = vpack.c.b16 %v291, %v291
    %v300 = vpack.c.b16 %v292, %v292
    %v301 = vpack.c.b16 %v293, %v293
    %v303 = vshrl.u32 %v294, 16
    %v305 = vrot.slane %v303, 7
    %v306 = vshll.u32 %v294, 16
    %v308 = vor.u32 %v305, %v306
    %v309 = vrot.slane %v305, 4
    %v311 = vshrl.u32 %v295, 16
    %v313 = vrot.slane %v311, 7
    %v314 = vshll.u32 %v295, 16
    %v316 = vor.u32 %v313, %v314
    %v317 = vsel %vm130, %v309, %v316
    %v318 = vrot.slane %v313, 4
    %v320 = vshrl.u32 %v296, 16
    %v322 = vrot.slane %v320, 7
    %v323 = vshll.u32 %v296, 16
    %v325 = vor.u32 %v322, %v323
    %v326 = vrot.slane %v322, 4
    %v328 = vshrl.u32 %v297, 16
    %v330 = vrot.slane %v328, 7
    %v331 = vshll.u32 %v297, 16
    %v333 = vor.u32 %v330, %v331
    %v334 = vsel %vm130, %v326, %v333
    %v335 = vrot.slane %v330, 4
    %v337 = vshrl.u32 %v298, 16
    %v339 = vrot.slane %v337, 7
    %v340 = vshll.u32 %v298, 16
    %v342 = vor.u32 %v339, %v340
    %v343 = vrot.slane %v339, 4
    %v345 = vshrl.u32 %v299, 16
    %v347 = vrot.slane %v345, 7
    %v348 = vshll.u32 %v299, 16
    %v350 = vor.u32 %v347, %v348
    %v351 = vsel %vm130, %v343, %v350
    %v352 = vrot.slane %v347, 4
    %v354 = vshrl.u32 %v300, 16
    %v356 = vrot.slane %v354, 7
    %v357 = vshll.u32 %v300, 16
    %v359 = vor.u32 %v356, %v357
    %v360 = vrot.slane %v356, 4
    %v362 = vshrl.u32 %v301, 16
    %v364 = vrot.slane %v362, 7
    %v365 = vshll.u32 %v301, 16
    %v367 = vor.u32 %v364, %v365
    %v368 = vsel %vm130, %v360, %v367
    %v369 = vrot.slane %v364, 4
    %370 = vrot.lane.b32.xlu0 %v308, 1
    %v371 = vpop.permute.xlu0 %370
    %372 = vrot.lane.b32.xlu0 %v317, 1
    %v373 = vpop.permute.xlu0 %372
    %374 = vrot.lane.b32.xlu0 %v318, 1
    %v375 = vpop.permute.xlu0 %374
    %376 = vrot.lane.b32.xlu0 %v325, 1
    %v377 = vpop.permute.xlu0 %376
    %378 = vrot.lane.b32.xlu0 %v334, 1
    %v379 = vpop.permute.xlu0 %378
    %380 = vrot.lane.b32.xlu0 %v335, 1
    %v381 = vpop.permute.xlu0 %380
    %382 = vrot.lane.b32.xlu0 %v342, 1
    %v383 = vpop.permute.xlu0 %382
    %384 = vrot.lane.b32.xlu0 %v351, 1
    %v385 = vpop.permute.xlu0 %384
    %386 = vrot.lane.b32.xlu0 %v352, 1
    %v387 = vpop.permute.xlu0 %386
    %388 = vrot.lane.b32.xlu0 %v359, 1
    %v389 = vpop.permute.xlu0 %388
    %390 = vrot.lane.b32.xlu0 %v368, 1
    %v391 = vpop.permute.xlu0 %390
    %392 = vrot.lane.b32.xlu0 %v369, 1
    %v393 = vpop.permute.xlu0 %392
    %s406 = scalar_lea.vmem [#allocation2], 48
    %v407 = vld [vmem:[%s406] sm:$0xf]
    %v408 = vsel %vm237, %v371, %v407
    %409 = vst [vmem:[%s406] sm:$0xf] %v408
    %410 = vst.msk [vmem:[%s406 + $0x4] sm:$0xf] %vm241, %v373
    %v411 = vld [vmem:[%s406 + $0x8] sm:$0x1]
    %v412 = vsel %vm244, %v375, %v411
    %413 = vst [vmem:[%s406 + $0x8] sm:$0x1] %v412
    %v414 = vld [vmem:[%s406 + $0xc] sm:$0xf]
    %v415 = vsel %vm237, %v377, %v414
    %416 = vst [vmem:[%s406 + $0xc] sm:$0xf] %v415
    %417 = vst.msk [vmem:[%s406 + $0x10] sm:$0xf] %vm241, %v379
    %v418 = vld [vmem:[%s406 + $0x14] sm:$0x1]
    %v419 = vsel %vm244, %v381, %v418
    %420 = vst [vmem:[%s406 + $0x14] sm:$0x1] %v419
    %v421 = vld [vmem:[%s406 + $0x18] sm:$0xf]
    %v422 = vsel %vm237, %v383, %v421
    %423 = vst [vmem:[%s406 + $0x18] sm:$0xf] %v422
    %424 = vst.msk [vmem:[%s406 + $0x1c] sm:$0xf] %vm241, %v385
    %v425 = vld [vmem:[%s406 + $0x20] sm:$0x1]
    %v426 = vsel %vm244, %v387, %v425
    %427 = vst [vmem:[%s406 + $0x20] sm:$0x1] %v426
    %v428 = vld [vmem:[%s406 + $0x24] sm:$0xf]
    %v429 = vsel %vm237, %v389, %v428
    %430 = vst [vmem:[%s406 + $0x24] sm:$0xf] %v429
    %431 = vst.msk [vmem:[%s406 + $0x28] sm:$0xf] %vm241, %v391
    %v432 = vld [vmem:[%s406 + $0x2c] sm:$0x1]
    %v433 = vsel %vm244, %v393, %v432
    %434 = vst [vmem:[%s406 + $0x2c] sm:$0x1] %v433
    %v435 = vld [vmem:[#allocation2] sm:$0xf]
    %v436 = vld [vmem:[#allocation2 + $0x4] sm:$0xf]
    %v437 = vld [vmem:[#allocation2 + $0xc] sm:$0xf]
    %v438 = vld [vmem:[#allocation2 + $0x10] sm:$0xf]
    %v439 = vld [vmem:[#allocation2 + $0x18] sm:$0xf]
    %v440 = vld [vmem:[#allocation2 + $0x1c] sm:$0xf]
    %v441 = vld [vmem:[#allocation2 + $0x24] sm:$0xf]
    %v442 = vld [vmem:[#allocation2 + $0x28] sm:$0xf]
    %v445 = vpack.i.b16 %v437, %v435
    %v446 = vshrl.u32 %v435, 16
    %v447 = vshrl.u32 %v437, 16
    %v448 = vpack.i.b16 %v447, %v446
    %v451 = vpack.i.b16 %v441, %v439
    %v452 = vshrl.u32 %v439, 16
    %v453 = vshrl.u32 %v441, 16
    %v454 = vpack.i.b16 %v453, %v452
    %v457 = vpack.i.b16 %v438, %v436
    %v458 = vshrl.u32 %v436, 16
    %v459 = vshrl.u32 %v438, 16
    %v460 = vpack.i.b16 %v459, %v458
    %v463 = vpack.i.b16 %v442, %v440
    %v464 = vshrl.u32 %v440, 16
    %v465 = vshrl.u32 %v442, 16
    %v466 = vpack.i.b16 %v465, %v464
    %v469 = vunpack.c.l.s4 1983009808
    %v470 = vunpack.c.0.s8 %v469
    %v471 = vlaneseq
    %v472 = vshrl.u32 %v471, 7
    %v473 = vsub.s32 %v470, %v472
    %v474 = vrot.slane %v445, %v473
    %v477 = vunpack.c.l.s4 1983009808
    %v478 = vunpack.c.0.s8 %v477
    %v479 = vlaneseq
    %v480 = vshrl.u32 %v479, 7
    %v481 = vsub.s32 %v478, %v480
    %v482 = vrot.slane %v451, %v481
    %v483 = vcombine.low %v474, %v482
    %v484 = vcombine.high %v474, %v482
    %v486 = vunpack.c.l.s4 1934713408
    %v487 = vunpack.c.0.s8 %v486
    %v488 = vlaneseq
    %v489 = vshrl.u32 %v488, 7
    %v490 = vsub.s32 %v487, %v489
    %v491 = vrot.slane %v483, %v490
    %v493 = vunpack.c.l.s4 1934713408
    %v494 = vunpack.c.0.s8 %v493
    %v495 = vlaneseq
    %v496 = vshrl.u32 %v495, 7
    %v497 = vsub.s32 %v494, %v496
    %v498 = vrot.slane %v484, %v497
    %v499 = vcombine.high %v491, 0
    %v500 = vcombine.high %v498, 0
    %v503 = vunpack.c.l.s4 1983009808
    %v504 = vunpack.c.0.s8 %v503
    %v505 = vlaneseq
    %v506 = vshrl.u32 %v505, 7
    %v507 = vsub.s32 %v504, %v506
    %v508 = vrot.slane %v448, %v507
    %v511 = vunpack.c.l.s4 1983009808
    %v512 = vunpack.c.0.s8 %v511
    %v513 = vlaneseq
    %v514 = vshrl.u32 %v513, 7
    %v515 = vsub.s32 %v512, %v514
    %v516 = vrot.slane %v454, %v515
    %v517 = vcombine.low %v508, %v516
    %v518 = vcombine.high %v508, %v516
    %v520 = vunpack.c.l.s4 1934713408
    %v521 = vunpack.c.0.s8 %v520
    %v522 = vlaneseq
    %v523 = vshrl.u32 %v522, 7
    %v524 = vsub.s32 %v521, %v523
    %v525 = vrot.slane %v517, %v524
    %v527 = vunpack.c.l.s4 1934713408
    %v528 = vunpack.c.0.s8 %v527
    %v529 = vlaneseq
    %v530 = vshrl.u32 %v529, 7
    %v531 = vsub.s32 %v528, %v530
    %v532 = vrot.slane %v518, %v531
    %v533 = vcombine.high %v525, 0
    %v534 = vcombine.high %v532, 0
    %v537 = vunpack.c.l.s4 1983009808
    %v538 = vunpack.c.0.s8 %v537
    %v539 = vlaneseq
    %v540 = vshrl.u32 %v539, 7
    %v541 = vsub.s32 %v538, %v540
    %v542 = vrot.slane %v457, %v541
    %v545 = vunpack.c.l.s4 1983009808
    %v546 = vunpack.c.0.s8 %v545
    %v547 = vlaneseq
    %v548 = vshrl.u32 %v547, 7
    %v549 = vsub.s32 %v546, %v548
    %v550 = vrot.slane %v463, %v549
    %v551 = vcombine.low %v542, %v550
    %v552 = vcombine.high %v542, %v550
    %v554 = vunpack.c.l.s4 1934713408
    %v555 = vunpack.c.0.s8 %v554
    %v556 = vlaneseq
    %v557 = vshrl.u32 %v556, 7
    %v558 = vsub.s32 %v555, %v557
    %v559 = vrot.slane %v551, %v558
    %v561 = vunpack.c.l.s4 1934713408
    %v562 = vunpack.c.0.s8 %v561
    %v563 = vlaneseq
    %v564 = vshrl.u32 %v563, 7
    %v565 = vsub.s32 %v562, %v564
    %v566 = vrot.slane %v552, %v565
    %v567 = vcombine.high %v559, 0
    %v568 = vcombine.high %v566, 0
    %v571 = vunpack.c.l.s4 1983009808
    %v572 = vunpack.c.0.s8 %v571
    %v573 = vlaneseq
    %v574 = vshrl.u32 %v573, 7
    %v575 = vsub.s32 %v572, %v574
    %v576 = vrot.slane %v460, %v575
    %v579 = vunpack.c.l.s4 1983009808
    %v580 = vunpack.c.0.s8 %v579
    %v581 = vlaneseq
    %v582 = vshrl.u32 %v581, 7
    %v583 = vsub.s32 %v580, %v582
    %v584 = vrot.slane %v466, %v583
    %v585 = vcombine.low %v576, %v584
    %v586 = vcombine.high %v576, %v584
    %v588 = vunpack.c.l.s4 1934713408
    %v589 = vunpack.c.0.s8 %v588
    %v590 = vlaneseq
    %v591 = vshrl.u32 %v590, 7
    %v592 = vsub.s32 %v589, %v591
    %v593 = vrot.slane %v585, %v592
    %v595 = vunpack.c.l.s4 1934713408
    %v596 = vunpack.c.0.s8 %v595
    %v597 = vlaneseq
    %v598 = vshrl.u32 %v597, 7
    %v599 = vsub.s32 %v596, %v598
    %v600 = vrot.slane %v586, %v599
    %v601 = vcombine.high %v593, 0
    %v602 = vcombine.high %v600, 0
    %v604 = vunpack.c.l.b16 %v525
    %v605 = vpack.c.b16 %v604, %v604
    %606 = vrot.lane.b32.xlu0 %v605, 16
    %v607 = vpop.permute.xlu0 %606
    %v609 = vunpack.c.l.b16 %v499
    %v610 = vpack.c.b16 %v609, %v609
    %611 = vrot.lane.b32.xlu0 %v610, 32
    %v612 = vpop.permute.xlu0 %611
    %v614 = vunpack.c.l.b16 %v533
    %v615 = vpack.c.b16 %v614, %v614
    %616 = vrot.lane.b32.xlu0 %v615, 48
    %v617 = vpop.permute.xlu0 %616
    %v619 = vunpack.c.l.b16 %v498
    %v620 = vpack.c.b16 %v619, %v619
    %621 = vrot.lane.b32.xlu0 %v620, 64
    %v622 = vpop.permute.xlu0 %621
    %v624 = vunpack.c.l.b16 %v532
    %v625 = vpack.c.b16 %v624, %v624
    %626 = vrot.lane.b32.xlu0 %v625, 80
    %v627 = vpop.permute.xlu0 %626
    %v629 = vunpack.c.l.b16 %v500
    %v630 = vpack.c.b16 %v629, %v629
    %631 = vrot.lane.b32.xlu0 %v630, 96
    %v632 = vpop.permute.xlu0 %631
    %v634 = vunpack.c.l.b16 %v534
    %v635 = vpack.c.b16 %v634, %v634
    %636 = vrot.lane.b32.xlu0 %v635, 112
    %v637 = vpop.permute.xlu0 %636
    %v639 = vunpack.c.l.b16 %v593
    %v640 = vpack.c.b16 %v639, %v639
    %641 = vrot.lane.b32.xlu0 %v640, 16
    %v642 = vpop.permute.xlu0 %641
    %v644 = vunpack.c.l.b16 %v567
    %v645 = vpack.c.b16 %v644, %v644
    %646 = vrot.lane.b32.xlu0 %v645, 32
    %v647 = vpop.permute.xlu0 %646
    %v649 = vunpack.c.l.b16 %v601
    %v650 = vpack.c.b16 %v649, %v649
    %651 = vrot.lane.b32.xlu0 %v650, 48
    %v652 = vpop.permute.xlu0 %651
    %v654 = vunpack.c.l.b16 %v566
    %v655 = vpack.c.b16 %v654, %v654
    %656 = vrot.lane.b32.xlu0 %v655, 64
    %v657 = vpop.permute.xlu0 %656
    %v659 = vunpack.c.l.b16 %v600
    %v660 = vpack.c.b16 %v659, %v659
    %661 = vrot.lane.b32.xlu0 %v660, 80
    %v662 = vpop.permute.xlu0 %661
    %v664 = vunpack.c.l.b16 %v568
    %v665 = vpack.c.b16 %v664, %v664
    %666 = vrot.lane.b32.xlu0 %v665, 96
    %v667 = vpop.permute.xlu0 %666
    %v669 = vunpack.c.l.b16 %v602
    %v670 = vpack.c.b16 %v669, %v669
    %671 = vrot.lane.b32.xlu0 %v670, 112
    %v672 = vpop.permute.xlu0 %671
    %vm673 = vcmask 130048
    %v676 = vsel %vm673, %v491, %v607
    %vm677 = vcmask 261120
    %v679 = vsel %vm677, %v676, %v612
    %vm680 = vcmask 392192
    %v682 = vsel %vm680, %v679, %v617
    %vm683 = vcmask 523264
    %v685 = vsel %vm683, %v682, %v622
    %vm686 = vcmask 654336
    %v688 = vsel %vm686, %v685, %v627
    %vm689 = vcmask 785408
    %v691 = vsel %vm689, %v688, %v632
    %vm692 = vcmask 916480
    %v694 = vsel %vm692, %v691, %v637
    %v697 = vsel %vm673, %v559, %v642
    %v699 = vsel %vm677, %v697, %v647
    %v701 = vsel %vm680, %v699, %v652
    %v703 = vsel %vm683, %v701, %v657
    %v705 = vsel %vm686, %v703, %v662
    %v707 = vsel %vm689, %v705, %v667
    %v709 = vsel %vm692, %v707, %v672
    %v712 = vunpack.c.l.b16 %v694
    %v713 = vunpack.c.l.b16 %v709
    %v714 = vpack.c.b16 %v713, %v712
    %716 = vst [vmem:[#allocation3] sm:$0x33] %v714
    %v717 = vld [vmem:[#allocation2] sm:$0xf]
    %v718 = vld [vmem:[#allocation2 + $0x4] sm:$0xf]
    %v719 = vld [vmem:[#allocation2 + $0xc] sm:$0xf]
    %v720 = vld [vmem:[#allocation2 + $0x10] sm:$0xf]
    %v721 = vld [vmem:[#allocation2 + $0x18] sm:$0xf]
    %v722 = vld [vmem:[#allocation2 + $0x1c] sm:$0xf]
    %v723 = vld [vmem:[#allocation2 + $0x24] sm:$0xf]
    %v724 = vld [vmem:[#allocation2 + $0x28] sm:$0xf]
    %733 = vrot.lane.b32.xlu0 %v717, 127
    %v734 = vpop.permute.xlu0 %733
    %735 = vrot.lane.b32.xlu0 %v718, 127
    %v736 = vpop.permute.xlu0 %735
    %737 = vrot.lane.b32.xlu0 %v719, 127
    %v738 = vpop.permute.xlu0 %737
    %739 = vrot.lane.b32.xlu0 %v720, 127
    %v740 = vpop.permute.xlu0 %739
    %741 = vrot.lane.b32.xlu0 %v721, 127
    %v742 = vpop.permute.xlu0 %741
    %743 = vrot.lane.b32.xlu0 %v722, 127
    %v744 = vpop.permute.xlu0 %743
    %745 = vrot.lane.b32.xlu0 %v723, 127
    %v746 = vpop.permute.xlu0 %745
    %747 = vrot.lane.b32.xlu0 %v724, 127
    %v748 = vpop.permute.xlu0 %747
    %v751 = vpack.i.b16 %v738, %v734
    %v752 = vshrl.u32 %v734, 16
    %v753 = vshrl.u32 %v738, 16
    %v754 = vpack.i.b16 %v753, %v752
    %v757 = vpack.i.b16 %v746, %v742
    %v758 = vshrl.u32 %v742, 16
    %v759 = vshrl.u32 %v746, 16
    %v760 = vpack.i.b16 %v759, %v758
    %v763 = vpack.i.b16 %v740, %v736
    %v764 = vshrl.u32 %v736, 16
    %v765 = vshrl.u32 %v740, 16
    %v766 = vpack.i.b16 %v765, %v764
    %v769 = vpack.i.b16 %v748, %v744
    %v770 = vshrl.u32 %v744, 16
    %v771 = vshrl.u32 %v748, 16
    %v772 = vpack.i.b16 %v771, %v770
    %v775 = vunpack.c.l.s4 1983009808
    %v776 = vunpack.c.0.s8 %v775
    %v777 = vlaneseq
    %v778 = vshrl.u32 %v777, 7
    %v779 = vsub.s32 %v776, %v778
    %v780 = vrot.slane %v751, %v779
    %v783 = vunpack.c.l.s4 1983009808
    %v784 = vunpack.c.0.s8 %v783
    %v785 = vlaneseq
    %v786 = vshrl.u32 %v785, 7
    %v787 = vsub.s32 %v784, %v786
    %v788 = vrot.slane %v757, %v787
    %v789 = vcombine.low %v780, %v788
    %v790 = vcombine.high %v780, %v788
    %v792 = vunpack.c.l.s4 1934713408
    %v793 = vunpack.c.0.s8 %v792
    %v794 = vlaneseq
    %v795 = vshrl.u32 %v794, 7
    %v796 = vsub.s32 %v793, %v795
    %v797 = vrot.slane %v789, %v796
    %v799 = vunpack.c.l.s4 1934713408
    %v800 = vunpack.c.0.s8 %v799
    %v801 = vlaneseq
    %v802 = vshrl.u32 %v801, 7
    %v803 = vsub.s32 %v800, %v802
    %v804 = vrot.slane %v790, %v803
    %v805 = vcombine.high %v797, 0
    %v806 = vcombine.high %v804, 0
    %v809 = vunpack.c.l.s4 1983009808
    %v810 = vunpack.c.0.s8 %v809
    %v811 = vlaneseq
    %v812 = vshrl.u32 %v811, 7
    %v813 = vsub.s32 %v810, %v812
    %v814 = vrot.slane %v754, %v813
    %v817 = vunpack.c.l.s4 1983009808
    %v818 = vunpack.c.0.s8 %v817
    %v819 = vlaneseq
    %v820 = vshrl.u32 %v819, 7
    %v821 = vsub.s32 %v818, %v820
    %v822 = vrot.slane %v760, %v821
    %v823 = vcombine.low %v814, %v822
    %v824 = vcombine.high %v814, %v822
    %v826 = vunpack.c.l.s4 1934713408
    %v827 = vunpack.c.0.s8 %v826
    %v828 = vlaneseq
    %v829 = vshrl.u32 %v828, 7
    %v830 = vsub.s32 %v827, %v829
    %v831 = vrot.slane %v823, %v830
    %v833 = vunpack.c.l.s4 1934713408
    %v834 = vunpack.c.0.s8 %v833
    %v835 = vlaneseq
    %v836 = vshrl.u32 %v835, 7
    %v837 = vsub.s32 %v834, %v836
    %v838 = vrot.slane %v824, %v837
    %v839 = vcombine.high %v831, 0
    %v840 = vcombine.high %v838, 0
    %v843 = vunpack.c.l.s4 1983009808
    %v844 = vunpack.c.0.s8 %v843
    %v845 = vlaneseq
    %v846 = vshrl.u32 %v845, 7
    %v847 = vsub.s32 %v844, %v846
    %v848 = vrot.slane %v763, %v847
    %v851 = vunpack.c.l.s4 1983009808
    %v852 = vunpack.c.0.s8 %v851
    %v853 = vlaneseq
    %v854 = vshrl.u32 %v853, 7
    %v855 = vsub.s32 %v852, %v854
    %v856 = vrot.slane %v769, %v855
    %v857 = vcombine.low %v848, %v856
    %v858 = vcombine.high %v848, %v856
    %v860 = vunpack.c.l.s4 1934713408
    %v861 = vunpack.c.0.s8 %v860
    %v862 = vlaneseq
    %v863 = vshrl.u32 %v862, 7
    %v864 = vsub.s32 %v861, %v863
    %v865 = vrot.slane %v857, %v864
    %v867 = vunpack.c.l.s4 1934713408
    %v868 = vunpack.c.0.s8 %v867
    %v869 = vlaneseq
    %v870 = vshrl.u32 %v869, 7
    %v871 = vsub.s32 %v868, %v870
    %v872 = vrot.slane %v858, %v871
    %v873 = vcombine.high %v865, 0
    %v874 = vcombine.high %v872, 0
    %v877 = vunpack.c.l.s4 1983009808
    %v878 = vunpack.c.0.s8 %v877
    %v879 = vlaneseq
    %v880 = vshrl.u32 %v879, 7
    %v881 = vsub.s32 %v878, %v880
    %v882 = vrot.slane %v766, %v881
    %v885 = vunpack.c.l.s4 1983009808
    %v886 = vunpack.c.0.s8 %v885
    %v887 = vlaneseq
    %v888 = vshrl.u32 %v887, 7
    %v889 = vsub.s32 %v886, %v888
    %v890 = vrot.slane %v772, %v889
    %v891 = vcombine.low %v882, %v890
    %v892 = vcombine.high %v882, %v890
    %v894 = vunpack.c.l.s4 1934713408
    %v895 = vunpack.c.0.s8 %v894
    %v896 = vlaneseq
    %v897 = vshrl.u32 %v896, 7
    %v898 = vsub.s32 %v895, %v897
    %v899 = vrot.slane %v891, %v898
    %v901 = vunpack.c.l.s4 1934713408
    %v902 = vunpack.c.0.s8 %v901
    %v903 = vlaneseq
    %v904 = vshrl.u32 %v903, 7
    %v905 = vsub.s32 %v902, %v904
    %v906 = vrot.slane %v892, %v905
    %v907 = vcombine.high %v899, 0
    %v908 = vcombine.high %v906, 0
    %v910 = vunpack.c.l.b16 %v831
    %v911 = vpack.c.b16 %v910, %v910
    %912 = vrot.lane.b32.xlu0 %v911, 16
    %v913 = vpop.permute.xlu0 %912
    %v915 = vunpack.c.l.b16 %v805
    %v916 = vpack.c.b16 %v915, %v915
    %917 = vrot.lane.b32.xlu0 %v916, 32
    %v918 = vpop.permute.xlu0 %917
    %v920 = vunpack.c.l.b16 %v839
    %v921 = vpack.c.b16 %v920, %v920
    %922 = vrot.lane.b32.xlu0 %v921, 48
    %v923 = vpop.permute.xlu0 %922
    %v925 = vunpack.c.l.b16 %v804
    %v926 = vpack.c.b16 %v925, %v925
    %927 = vrot.lane.b32.xlu0 %v926, 64
    %v928 = vpop.permute.xlu0 %927
    %v930 = vunpack.c.l.b16 %v838
    %v931 = vpack.c.b16 %v930, %v930
    %932 = vrot.lane.b32.xlu0 %v931, 80
    %v933 = vpop.permute.xlu0 %932
    %v935 = vunpack.c.l.b16 %v806
    %v936 = vpack.c.b16 %v935, %v935
    %937 = vrot.lane.b32.xlu0 %v936, 96
    %v938 = vpop.permute.xlu0 %937
    %v940 = vunpack.c.l.b16 %v840
    %v941 = vpack.c.b16 %v940, %v940
    %942 = vrot.lane.b32.xlu0 %v941, 112
    %v943 = vpop.permute.xlu0 %942
    %v945 = vunpack.c.l.b16 %v899
    %v946 = vpack.c.b16 %v945, %v945
    %947 = vrot.lane.b32.xlu0 %v946, 16
    %v948 = vpop.permute.xlu0 %947
    %v950 = vunpack.c.l.b16 %v873
    %v951 = vpack.c.b16 %v950, %v950
    %952 = vrot.lane.b32.xlu0 %v951, 32
    %v953 = vpop.permute.xlu0 %952
    %v955 = vunpack.c.l.b16 %v907
    %v956 = vpack.c.b16 %v955, %v955
    %957 = vrot.lane.b32.xlu0 %v956, 48
    %v958 = vpop.permute.xlu0 %957
    %v960 = vunpack.c.l.b16 %v872
    %v961 = vpack.c.b16 %v960, %v960
    %962 = vrot.lane.b32.xlu0 %v961, 64
    %v963 = vpop.permute.xlu0 %962
    %v965 = vunpack.c.l.b16 %v906
    %v966 = vpack.c.b16 %v965, %v965
    %967 = vrot.lane.b32.xlu0 %v966, 80
    %v968 = vpop.permute.xlu0 %967
    %v970 = vunpack.c.l.b16 %v874
    %v971 = vpack.c.b16 %v970, %v970
    %972 = vrot.lane.b32.xlu0 %v971, 96
    %v973 = vpop.permute.xlu0 %972
    %v975 = vunpack.c.l.b16 %v908
    %v976 = vpack.c.b16 %v975, %v975
    %977 = vrot.lane.b32.xlu0 %v976, 112
    %v978 = vpop.permute.xlu0 %977
    %v981 = vsel %vm673, %v797, %v913
    %v983 = vsel %vm677, %v981, %v918
    %v985 = vsel %vm680, %v983, %v923
    %v987 = vsel %vm683, %v985, %v928
    %v989 = vsel %vm686, %v987, %v933
    %v991 = vsel %vm689, %v989, %v938
    %v993 = vsel %vm692, %v991, %v943
    %v996 = vsel %vm673, %v865, %v948
    %v998 = vsel %vm677, %v996, %v953
    %v1000 = vsel %vm680, %v998, %v958
    %v1002 = vsel %vm683, %v1000, %v963
    %v1004 = vsel %vm686, %v1002, %v968
    %v1006 = vsel %vm689, %v1004, %v973
    %v1008 = vsel %vm692, %v1006, %v978
    %v1011 = vunpack.c.l.b16 %v993
    %v1012 = vunpack.c.l.b16 %v1008
    %v1013 = vpack.c.b16 %v1012, %v1011
    %1015 = vst [vmem:[#allocation3 + $0x20] sm:$0x33] %v1013
    %v1016 = vld [vmem:[#allocation2] sm:$0xf]
    %v1017 = vld [vmem:[#allocation2 + $0x4] sm:$0xf]
    %v1018 = vld [vmem:[#allocation2 + $0xc] sm:$0xf]
    %v1019 = vld [vmem:[#allocation2 + $0x10] sm:$0xf]
    %v1020 = vld [vmem:[#allocation2 + $0x18] sm:$0xf]
    %v1021 = vld [vmem:[#allocation2 + $0x1c] sm:$0xf]
    %v1022 = vld [vmem:[#allocation2 + $0x24] sm:$0xf]
    %v1023 = vld [vmem:[#allocation2 + $0x28] sm:$0xf]
    %1032 = vrot.lane.b32.xlu0 %v1016, 126
    %v1033 = vpop.permute.xlu0 %1032
    %1034 = vrot.lane.b32.xlu0 %v1017, 126
    %v1035 = vpop.permute.xlu0 %1034
    %1036 = vrot.lane.b32.xlu0 %v1018, 126
    %v1037 = vpop.permute.xlu0 %1036
    %1038 = vrot.lane.b32.xlu0 %v1019, 126
    %v1039 = vpop.permute.xlu0 %1038
    %1040 = vrot.lane.b32.xlu0 %v1020, 126
    %v1041 = vpop.permute.xlu0 %1040
    %1042 = vrot.lane.b32.xlu0 %v1021, 126
    %v1043 = vpop.permute.xlu0 %1042
    %1044 = vrot.lane.b32.xlu0 %v1022, 126
    %v1045 = vpop.permute.xlu0 %1044
    %1046 = vrot.lane.b32.xlu0 %v1023, 126
    %v1047 = vpop.permute.xlu0 %1046
    %v1050 = vpack.i.b16 %v1037, %v1033
    %v1051 = vshrl.u32 %v1033, 16
    %v1052 = vshrl.u32 %v1037, 16
    %v1053 = vpack.i.b16 %v1052, %v1051
    %v1056 = vpack.i.b16 %v1045, %v1041
    %v1057 = vshrl.u32 %v1041, 16
    %v1058 = vshrl.u32 %v1045, 16
    %v1059 = vpack.i.b16 %v1058, %v1057
    %v1062 = vpack.i.b16 %v1039, %v1035
    %v1063 = vshrl.u32 %v1035, 16
    %v1064 = vshrl.u32 %v1039, 16
    %v1065 = vpack.i.b16 %v1064, %v1063
    %v1068 = vpack.i.b16 %v1047, %v1043
    %v1069 = vshrl.u32 %v1043, 16
    %v1070 = vshrl.u32 %v1047, 16
    %v1071 = vpack.i.b16 %v1070, %v1069
    %v1074 = vunpack.c.l.s4 1983009808
    %v1075 = vunpack.c.0.s8 %v1074
    %v1076 = vlaneseq
    %v1077 = vshrl.u32 %v1076, 7
    %v1078 = vsub.s32 %v1075, %v1077
    %v1079 = vrot.slane %v1050, %v1078
    %v1082 = vunpack.c.l.s4 1983009808
    %v1083 = vunpack.c.0.s8 %v1082
    %v1084 = vlaneseq
    %v1085 = vshrl.u32 %v1084, 7
    %v1086 = vsub.s32 %v1083, %v1085
    %v1087 = vrot.slane %v1056, %v1086
    %v1088 = vcombine.low %v1079, %v1087
    %v1089 = vcombine.high %v1079, %v1087
    %v1091 = vunpack.c.l.s4 1934713408
    %v1092 = vunpack.c.0.s8 %v1091
    %v1093 = vlaneseq
    %v1094 = vshrl.u32 %v1093, 7
    %v1095 = vsub.s32 %v1092, %v1094
    %v1096 = vrot.slane %v1088, %v1095
    %v1098 = vunpack.c.l.s4 1934713408
    %v1099 = vunpack.c.0.s8 %v1098
    %v1100 = vlaneseq
    %v1101 = vshrl.u32 %v1100, 7
    %v1102 = vsub.s32 %v1099, %v1101
    %v1103 = vrot.slane %v1089, %v1102
    %v1104 = vcombine.high %v1096, 0
    %v1105 = vcombine.high %v1103, 0
    %v1108 = vunpack.c.l.s4 1983009808
    %v1109 = vunpack.c.0.s8 %v1108
    %v1110 = vlaneseq
    %v1111 = vshrl.u32 %v1110, 7
    %v1112 = vsub.s32 %v1109, %v1111
    %v1113 = vrot.slane %v1053, %v1112
    %v1116 = vunpack.c.l.s4 1983009808
    %v1117 = vunpack.c.0.s8 %v1116
    %v1118 = vlaneseq
    %v1119 = vshrl.u32 %v1118, 7
    %v1120 = vsub.s32 %v1117, %v1119
    %v1121 = vrot.slane %v1059, %v1120
    %v1122 = vcombine.low %v1113, %v1121
    %v1123 = vcombine.high %v1113, %v1121
    %v1125 = vunpack.c.l.s4 1934713408
    %v1126 = vunpack.c.0.s8 %v1125
    %v1127 = vlaneseq
    %v1128 = vshrl.u32 %v1127, 7
    %v1129 = vsub.s32 %v1126, %v1128
    %v1130 = vrot.slane %v1122, %v1129
    %v1132 = vunpack.c.l.s4 1934713408
    %v1133 = vunpack.c.0.s8 %v1132
    %v1134 = vlaneseq
    %v1135 = vshrl.u32 %v1134, 7
    %v1136 = vsub.s32 %v1133, %v1135
    %v1137 = vrot.slane %v1123, %v1136
    %v1138 = vcombine.high %v1130, 0
    %v1139 = vcombine.high %v1137, 0
    %v1142 = vunpack.c.l.s4 1983009808
    %v1143 = vunpack.c.0.s8 %v1142
    %v1144 = vlaneseq
    %v1145 = vshrl.u32 %v1144, 7
    %v1146 = vsub.s32 %v1143, %v1145
    %v1147 = vrot.slane %v1062, %v1146
    %v1150 = vunpack.c.l.s4 1983009808
    %v1151 = vunpack.c.0.s8 %v1150
    %v1152 = vlaneseq
    %v1153 = vshrl.u32 %v1152, 7
    %v1154 = vsub.s32 %v1151, %v1153
    %v1155 = vrot.slane %v1068, %v1154
    %v1156 = vcombine.low %v1147, %v1155
    %v1157 = vcombine.high %v1147, %v1155
    %v1159 = vunpack.c.l.s4 1934713408
    %v1160 = vunpack.c.0.s8 %v1159
    %v1161 = vlaneseq
    %v1162 = vshrl.u32 %v1161, 7
    %v1163 = vsub.s32 %v1160, %v1162
    %v1164 = vrot.slane %v1156, %v1163
    %v1166 = vunpack.c.l.s4 1934713408
    %v1167 = vunpack.c.0.s8 %v1166
    %v1168 = vlaneseq
    %v1169 = vshrl.u32 %v1168, 7
    %v1170 = vsub.s32 %v1167, %v1169
    %v1171 = vrot.slane %v1157, %v1170
    %v1172 = vcombine.high %v1164, 0
    %v1173 = vcombine.high %v1171, 0
    %v1176 = vunpack.c.l.s4 1983009808
    %v1177 = vunpack.c.0.s8 %v1176
    %v1178 = vlaneseq
    %v1179 = vshrl.u32 %v1178, 7
    %v1180 = vsub.s32 %v1177, %v1179
    %v1181 = vrot.slane %v1065, %v1180
    %v1184 = vunpack.c.l.s4 1983009808
    %v1185 = vunpack.c.0.s8 %v1184
    %v1186 = vlaneseq
    %v1187 = vshrl.u32 %v1186, 7
    %v1188 = vsub.s32 %v1185, %v1187
    %v1189 = vrot.slane %v1071, %v1188
    %v1190 = vcombine.low %v1181, %v1189
    %v1191 = vcombine.high %v1181, %v1189
    %v1193 = vunpack.c.l.s4 1934713408
    %v1194 = vunpack.c.0.s8 %v1193
    %v1195 = vlaneseq
    %v1196 = vshrl.u32 %v1195, 7
    %v1197 = vsub.s32 %v1194, %v1196
    %v1198 = vrot.slane %v1190, %v1197
    %v1200 = vunpack.c.l.s4 1934713408
    %v1201 = vunpack.c.0.s8 %v1200
    %v1202 = vlaneseq
    %v1203 = vshrl.u32 %v1202, 7
    %v1204 = vsub.s32 %v1201, %v1203
    %v1205 = vrot.slane %v1191, %v1204
    %v1206 = vcombine.high %v1198, 0
    %v1207 = vcombine.high %v1205, 0
    %v1209 = vunpack.c.l.b16 %v1130
    %v1210 = vpack.c.b16 %v1209, %v1209
    %1211 = vrot.lane.b32.xlu0 %v1210, 16
    %v1212 = vpop.permute.xlu0 %1211
    %v1214 = vunpack.c.l.b16 %v1104
    %v1215 = vpack.c.b16 %v1214, %v1214
    %1216 = vrot.lane.b32.xlu0 %v1215, 32
    %v1217 = vpop.permute.xlu0 %1216
    %v1219 = vunpack.c.l.b16 %v1138
    %v1220 = vpack.c.b16 %v1219, %v1219
    %1221 = vrot.lane.b32.xlu0 %v1220, 48
    %v1222 = vpop.permute.xlu0 %1221
    %v1224 = vunpack.c.l.b16 %v1103
    %v1225 = vpack.c.b16 %v1224, %v1224
    %1226 = vrot.lane.b32.xlu0 %v1225, 64
    %v1227 = vpop.permute.xlu0 %1226
    %v1229 = vunpack.c.l.b16 %v1137
    %v1230 = vpack.c.b16 %v1229, %v1229
    %1231 = vrot.lane.b32.xlu0 %v1230, 80
    %v1232 = vpop.permute.xlu0 %1231
    %v1234 = vunpack.c.l.b16 %v1105
    %v1235 = vpack.c.b16 %v1234, %v1234
    %1236 = vrot.lane.b32.xlu0 %v1235, 96
    %v1237 = vpop.permute.xlu0 %1236
    %v1239 = vunpack.c.l.b16 %v1139
    %v1240 = vpack.c.b16 %v1239, %v1239
    %1241 = vrot.lane.b32.xlu0 %v1240, 112
    %v1242 = vpop.permute.xlu0 %1241
    %v1244 = vunpack.c.l.b16 %v1198
    %v1245 = vpack.c.b16 %v1244, %v1244
    %1246 = vrot.lane.b32.xlu0 %v1245, 16
    %v1247 = vpop.permute.xlu0 %1246
    %v1249 = vunpack.c.l.b16 %v1172
    %v1250 = vpack.c.b16 %v1249, %v1249
    %1251 = vrot.lane.b32.xlu0 %v1250, 32
    %v1252 = vpop.permute.xlu0 %1251
    %v1254 = vunpack.c.l.b16 %v1206
    %v1255 = vpack.c.b16 %v1254, %v1254
    %1256 = vrot.lane.b32.xlu0 %v1255, 48
    %v1257 = vpop.permute.xlu0 %1256
    %v1259 = vunpack.c.l.b16 %v1171
    %v1260 = vpack.c.b16 %v1259, %v1259
    %1261 = vrot.lane.b32.xlu0 %v1260, 64
    %v1262 = vpop.permute.xlu0 %1261
    %v1264 = vunpack.c.l.b16 %v1205
    %v1265 = vpack.c.b16 %v1264, %v1264
    %1266 = vrot.lane.b32.xlu0 %v1265, 80
    %v1267 = vpop.permute.xlu0 %1266
    %v1269 = vunpack.c.l.b16 %v1173
    %v1270 = vpack.c.b16 %v1269, %v1269
    %1271 = vrot.lane.b32.xlu0 %v1270, 96
    %v1272 = vpop.permute.xlu0 %1271
    %v1274 = vunpack.c.l.b16 %v1207
    %v1275 = vpack.c.b16 %v1274, %v1274
    %1276 = vrot.lane.b32.xlu0 %v1275, 112
    %v1277 = vpop.permute.xlu0 %1276
    %v1280 = vsel %vm673, %v1096, %v1212
    %v1282 = vsel %vm677, %v1280, %v1217
    %v1284 = vsel %vm680, %v1282, %v1222
    %v1286 = vsel %vm683, %v1284, %v1227
    %v1288 = vsel %vm686, %v1286, %v1232
    %v1290 = vsel %vm689, %v1288, %v1237
    %v1292 = vsel %vm692, %v1290, %v1242
    %v1295 = vsel %vm673, %v1164, %v1247
    %v1297 = vsel %vm677, %v1295, %v1252
    %v1299 = vsel %vm680, %v1297, %v1257
    %v1301 = vsel %vm683, %v1299, %v1262
    %v1303 = vsel %vm686, %v1301, %v1267
    %v1305 = vsel %vm689, %v1303, %v1272
    %v1307 = vsel %vm692, %v1305, %v1277
    %v1310 = vunpack.c.l.b16 %v1292
    %v1311 = vunpack.c.l.b16 %v1307
    %v1312 = vpack.c.b16 %v1311, %v1310
    %1314 = vst [vmem:[#allocation3 + $0x40] sm:$0x33] %v1312
    %v1315 = vld [vmem:[#allocation2] sm:$0xf]
    %v1316 = vld [vmem:[#allocation2 + $0x4] sm:$0xf]
    %v1317 = vld [vmem:[#allocation2 + $0x8] sm:$0x1]
    %v1318 = vld [vmem:[#allocation2 + $0xc] sm:$0xf]
    %v1319 = vld [vmem:[#allocation2 + $0x10] sm:$0xf]
    %v1320 = vld [vmem:[#allocation2 + $0x14] sm:$0x1]
    %v1321 = vld [vmem:[#allocation2 + $0x18] sm:$0xf]
    %v1322 = vld [vmem:[#allocation2 + $0x1c] sm:$0xf]
    %v1323 = vld [vmem:[#allocation2 + $0x20] sm:$0x1]
    %v1324 = vld [vmem:[#allocation2 + $0x24] sm:$0xf]
    %v1325 = vld [vmem:[#allocation2 + $0x28] sm:$0xf]
    %v1326 = vld [vmem:[#allocation2 + $0x2c] sm:$0x1]
    %vm1327 = vsmask.f32 3328
    %vm1328 = vsmask.f32 7440
    %vm1329 = vmor %vm1327, %vm1328
    %v1331 = vshrl.u32 %v1315, 16
    %v1333 = vrot.slane %v1331, 4
    %v1334 = vshll.u32 %v1315, 16
    %v1336 = vrot.slane %v1334, 5
    %v1337 = vor.u32 %v1333, %v1336
    %v1338 = vrot.slane %v1337, 4
    %v1340 = vshll.u32 %v1316, 16
    %v1342 = vrot.slane %v1340, 5
    %v1343 = vsel %vm1329, %v1338, %v1342
    %v1344 = vshrl.u32 %v1316, 16
    %v1346 = vrot.slane %v1344, 4
    %v1347 = vor.u32 %v1346, %v1342
    %v1348 = vrot.slane %v1347, 4
    %v1350 = vshll.u32 %v1317, 16
    %v1352 = vrot.slane %v1350, 5
    %v1353 = vsel %vm1329, %v1348, %v1352
    %v1355 = vshrl.u32 %v1318, 16
    %v1357 = vrot.slane %v1355, 4
    %v1358 = vshll.u32 %v1318, 16
    %v1360 = vrot.slane %v1358, 5
    %v1361 = vor.u32 %v1357, %v1360
    %v1362 = vrot.slane %v1361, 4
    %v1364 = vshll.u32 %v1319, 16
    %v1366 = vrot.slane %v1364, 5
    %v1367 = vsel %vm1329, %v1362, %v1366
    %v1368 = vshrl.u32 %v1319, 16
    %v1370 = vrot.slane %v1368, 4
    %v1371 = vor.u32 %v1370, %v1366
    %v1372 = vrot.slane %v1371, 4
    %v1374 = vshll.u32 %v1320, 16
    %v1376 = vrot.slane %v1374, 5
    %v1377 = vsel %vm1329, %v1372, %v1376
    %v1379 = vshrl.u32 %v1321, 16
    %v1381 = vrot.slane %v1379, 4
    %v1382 = vshll.u32 %v1321, 16
    %v1384 = vrot.slane %v1382, 5
    %v1385 = vor.u32 %v1381, %v1384
    %v1386 = vrot.slane %v1385, 4
    %v1388 = vshll.u32 %v1322, 16
    %v1390 = vrot.slane %v1388, 5
    %v1391 = vsel %vm1329, %v1386, %v1390
    %v1392 = vshrl.u32 %v1322, 16
    %v1394 = vrot.slane %v1392, 4
    %v1395 = vor.u32 %v1394, %v1390
    %v1396 = vrot.slane %v1395, 4
    %v1398 = vshll.u32 %v1323, 16
    %v1400 = vrot.slane %v1398, 5
    %v1401 = vsel %vm1329, %v1396, %v1400
    %v1403 = vshrl.u32 %v1324, 16
    %v1405 = vrot.slane %v1403, 4
    %v1406 = vshll.u32 %v1324, 16
    %v1408 = vrot.slane %v1406, 5
    %v1409 = vor.u32 %v1405, %v1408
    %v1410 = vrot.slane %v1409, 4
    %v1412 = vshll.u32 %v1325, 16
    %v1414 = vrot.slane %v1412, 5
    %v1415 = vsel %vm1329, %v1410, %v1414
    %v1416 = vshrl.u32 %v1325, 16
    %v1418 = vrot.slane %v1416, 4
    %v1419 = vor.u32 %v1418, %v1414
    %v1420 = vrot.slane %v1419, 4
    %v1422 = vshll.u32 %v1326, 16
    %v1424 = vrot.slane %v1422, 5
    %v1425 = vsel %vm1329, %v1420, %v1424
    %v1428 = vpack.i.b16 %v1367, %v1343
    %v1429 = vshrl.u32 %v1343, 16
    %v1430 = vshrl.u32 %v1367, 16
    %v1431 = vpack.i.b16 %v1430, %v1429
    %v1434 = vpack.i.b16 %v1415, %v1391
    %v1435 = vshrl.u32 %v1391, 16
    %v1436 = vshrl.u32 %v1415, 16
    %v1437 = vpack.i.b16 %v1436, %v1435
    %v1440 = vpack.i.b16 %v1377, %v1353
    %v1441 = vshrl.u32 %v1353, 16
    %v1442 = vshrl.u32 %v1377, 16
    %v1443 = vpack.i.b16 %v1442, %v1441
    %v1446 = vpack.i.b16 %v1425, %v1401
    %v1447 = vshrl.u32 %v1401, 16
    %v1448 = vshrl.u32 %v1425, 16
    %v1449 = vpack.i.b16 %v1448, %v1447
    %v1452 = vunpack.c.l.s4 1983009808
    %v1453 = vunpack.c.0.s8 %v1452
    %v1454 = vlaneseq
    %v1455 = vshrl.u32 %v1454, 7
    %v1456 = vsub.s32 %v1453, %v1455
    %v1457 = vrot.slane %v1428, %v1456
    %v1460 = vunpack.c.l.s4 1983009808
    %v1461 = vunpack.c.0.s8 %v1460
    %v1462 = vlaneseq
    %v1463 = vshrl.u32 %v1462, 7
    %v1464 = vsub.s32 %v1461, %v1463
    %v1465 = vrot.slane %v1434, %v1464
    %v1466 = vcombine.low %v1457, %v1465
    %v1467 = vcombine.high %v1457, %v1465
    %v1469 = vunpack.c.l.s4 1934713408
    %v1470 = vunpack.c.0.s8 %v1469
    %v1471 = vlaneseq
    %v1472 = vshrl.u32 %v1471, 7
    %v1473 = vsub.s32 %v1470, %v1472
    %v1474 = vrot.slane %v1466, %v1473
    %v1476 = vunpack.c.l.s4 1934713408
    %v1477 = vunpack.c.0.s8 %v1476
    %v1478 = vlaneseq
    %v1479 = vshrl.u32 %v1478, 7
    %v1480 = vsub.s32 %v1477, %v1479
    %v1481 = vrot.slane %v1467, %v1480
    %v1482 = vcombine.high %v1474, 0
    %v1483 = vcombine.high %v1481, 0
    %v1486 = vunpack.c.l.s4 1983009808
    %v1487 = vunpack.c.0.s8 %v1486
    %v1488 = vlaneseq
    %v1489 = vshrl.u32 %v1488, 7
    %v1490 = vsub.s32 %v1487, %v1489
    %v1491 = vrot.slane %v1431, %v1490
    %v1494 = vunpack.c.l.s4 1983009808
    %v1495 = vunpack.c.0.s8 %v1494
    %v1496 = vlaneseq
    %v1497 = vshrl.u32 %v1496, 7
    %v1498 = vsub.s32 %v1495, %v1497
    %v1499 = vrot.slane %v1437, %v1498
    %v1500 = vcombine.low %v1491, %v1499
    %v1501 = vcombine.high %v1491, %v1499
    %v1503 = vunpack.c.l.s4 1934713408
    %v1504 = vunpack.c.0.s8 %v1503
    %v1505 = vlaneseq
    %v1506 = vshrl.u32 %v1505, 7
    %v1507 = vsub.s32 %v1504, %v1506
    %v1508 = vrot.slane %v1500, %v1507
    %v1510 = vunpack.c.l.s4 1934713408
    %v1511 = vunpack.c.0.s8 %v1510
    %v1512 = vlaneseq
    %v1513 = vshrl.u32 %v1512, 7
    %v1514 = vsub.s32 %v1511, %v1513
    %v1515 = vrot.slane %v1501, %v1514
    %v1516 = vcombine.high %v1508, 0
    %v1517 = vcombine.high %v1515, 0
    %v1520 = vunpack.c.l.s4 1983009808
    %v1521 = vunpack.c.0.s8 %v1520
    %v1522 = vlaneseq
    %v1523 = vshrl.u32 %v1522, 7
    %v1524 = vsub.s32 %v1521, %v1523
    %v1525 = vrot.slane %v1440, %v1524
    %v1528 = vunpack.c.l.s4 1983009808
    %v1529 = vunpack.c.0.s8 %v1528
    %v1530 = vlaneseq
    %v1531 = vshrl.u32 %v1530, 7
    %v1532 = vsub.s32 %v1529, %v1531
    %v1533 = vrot.slane %v1446, %v1532
    %v1534 = vcombine.low %v1525, %v1533
    %v1535 = vcombine.high %v1525, %v1533
    %v1537 = vunpack.c.l.s4 1934713408
    %v1538 = vunpack.c.0.s8 %v1537
    %v1539 = vlaneseq
    %v1540 = vshrl.u32 %v1539, 7
    %v1541 = vsub.s32 %v1538, %v1540
    %v1542 = vrot.slane %v1534, %v1541
    %v1544 = vunpack.c.l.s4 1934713408
    %v1545 = vunpack.c.0.s8 %v1544
    %v1546 = vlaneseq
    %v1547 = vshrl.u32 %v1546, 7
    %v1548 = vsub.s32 %v1545, %v1547
    %v1549 = vrot.slane %v1535, %v1548
    %v1550 = vcombine.high %v1542, 0
    %v1551 = vcombine.high %v1549, 0
    %v1554 = vunpack.c.l.s4 1983009808
    %v1555 = vunpack.c.0.s8 %v1554
    %v1556 = vlaneseq
    %v1557 = vshrl.u32 %v1556, 7
    %v1558 = vsub.s32 %v1555, %v1557
    %v1559 = vrot.slane %v1443, %v1558
    %v1562 = vunpack.c.l.s4 1983009808
    %v1563 = vunpack.c.0.s8 %v1562
    %v1564 = vlaneseq
    %v1565 = vshrl.u32 %v1564, 7
    %v1566 = vsub.s32 %v1563, %v1565
    %v1567 = vrot.slane %v1449, %v1566
    %v1568 = vcombine.low %v1559, %v1567
    %v1569 = vcombine.high %v1559, %v1567
    %v1571 = vunpack.c.l.s4 1934713408
    %v1572 = vunpack.c.0.s8 %v1571
    %v1573 = vlaneseq
    %v1574 = vshrl.u32 %v1573, 7
    %v1575 = vsub.s32 %v1572, %v1574
    %v1576 = vrot.slane %v1568, %v1575
    %v1578 = vunpack.c.l.s4 1934713408
    %v1579 = vunpack.c.0.s8 %v1578
    %v1580 = vlaneseq
    %v1581 = vshrl.u32 %v1580, 7
    %v1582 = vsub.s32 %v1579, %v1581
    %v1583 = vrot.slane %v1569, %v1582
    %v1584 = vcombine.high %v1576, 0
    %v1585 = vcombine.high %v1583, 0
    %v1587 = vunpack.c.l.b16 %v1508
    %v1588 = vpack.c.b16 %v1587, %v1587
    %1589 = vrot.lane.b32.xlu0 %v1588, 16
    %v1590 = vpop.permute.xlu0 %1589
    %v1592 = vunpack.c.l.b16 %v1482
    %v1593 = vpack.c.b16 %v1592, %v1592
    %1594 = vrot.lane.b32.xlu0 %v1593, 32
    %v1595 = vpop.permute.xlu0 %1594
    %v1597 = vunpack.c.l.b16 %v1516
    %v1598 = vpack.c.b16 %v1597, %v1597
    %1599 = vrot.lane.b32.xlu0 %v1598, 48
    %v1600 = vpop.permute.xlu0 %1599
    %v1602 = vunpack.c.l.b16 %v1481
    %v1603 = vpack.c.b16 %v1602, %v1602
    %1604 = vrot.lane.b32.xlu0 %v1603, 64
    %v1605 = vpop.permute.xlu0 %1604
    %v1607 = vunpack.c.l.b16 %v1515
    %v1608 = vpack.c.b16 %v1607, %v1607
    %1609 = vrot.lane.b32.xlu0 %v1608, 80
    %v1610 = vpop.permute.xlu0 %1609
    %v1612 = vunpack.c.l.b16 %v1483
    %v1613 = vpack.c.b16 %v1612, %v1612
    %1614 = vrot.lane.b32.xlu0 %v1613, 96
    %v1615 = vpop.permute.xlu0 %1614
    %v1617 = vunpack.c.l.b16 %v1517
    %v1618 = vpack.c.b16 %v1617, %v1617
    %1619 = vrot.lane.b32.xlu0 %v1618, 112
    %v1620 = vpop.permute.xlu0 %1619
    %v1622 = vunpack.c.l.b16 %v1576
    %v1623 = vpack.c.b16 %v1622, %v1622
    %1624 = vrot.lane.b32.xlu0 %v1623, 16
    %v1625 = vpop.permute.xlu0 %1624
    %v1627 = vunpack.c.l.b16 %v1550
    %v1628 = vpack.c.b16 %v1627, %v1627
    %1629 = vrot.lane.b32.xlu0 %v1628, 32
    %v1630 = vpop.permute.xlu0 %1629
    %v1632 = vunpack.c.l.b16 %v1584
    %v1633 = vpack.c.b16 %v1632, %v1632
    %1634 = vrot.lane.b32.xlu0 %v1633, 48
    %v1635 = vpop.permute.xlu0 %1634
    %v1637 = vunpack.c.l.b16 %v1549
    %v1638 = vpack.c.b16 %v1637, %v1637
    %1639 = vrot.lane.b32.xlu0 %v1638, 64
    %v1640 = vpop.permute.xlu0 %1639
    %v1642 = vunpack.c.l.b16 %v1583
    %v1643 = vpack.c.b16 %v1642, %v1642
    %1644 = vrot.lane.b32.xlu0 %v1643, 80
    %v1645 = vpop.permute.xlu0 %1644
    %v1647 = vunpack.c.l.b16 %v1551
    %v1648 = vpack.c.b16 %v1647, %v1647
    %1649 = vrot.lane.b32.xlu0 %v1648, 96
    %v1650 = vpop.permute.xlu0 %1649
    %v1652 = vunpack.c.l.b16 %v1585
    %v1653 = vpack.c.b16 %v1652, %v1652
    %1654 = vrot.lane.b32.xlu0 %v1653, 112
    %v1655 = vpop.permute.xlu0 %1654
    %v1658 = vsel %vm673, %v1474, %v1590
    %v1660 = vsel %vm677, %v1658, %v1595
    %v1662 = vsel %vm680, %v1660, %v1600
    %v1664 = vsel %vm683, %v1662, %v1605
    %v1666 = vsel %vm686, %v1664, %v1610
    %v1668 = vsel %vm689, %v1666, %v1615
    %v1670 = vsel %vm692, %v1668, %v1620
    %v1673 = vsel %vm673, %v1542, %v1625
    %v1675 = vsel %vm677, %v1673, %v1630
    %v1677 = vsel %vm680, %v1675, %v1635
    %v1679 = vsel %vm683, %v1677, %v1640
    %v1681 = vsel %vm686, %v1679, %v1645
    %v1683 = vsel %vm689, %v1681, %v1650
    %v1685 = vsel %vm692, %v1683, %v1655
    %v1688 = vunpack.c.l.b16 %v1670
    %v1689 = vunpack.c.l.b16 %v1685
    %v1690 = vpack.c.b16 %v1689, %v1688
    %1692 = vst [vmem:[#allocation3 + $0x60] sm:$0x33] %v1690
    %v1693 = vld [vmem:[#allocation2] sm:$0xf]
    %v1694 = vld [vmem:[#allocation2 + $0x4] sm:$0xf]
    %v1695 = vld [vmem:[#allocation2 + $0x8] sm:$0x1]
    %v1696 = vld [vmem:[#allocation2 + $0xc] sm:$0xf]
    %v1697 = vld [vmem:[#allocation2 + $0x10] sm:$0xf]
    %v1698 = vld [vmem:[#allocation2 + $0x14] sm:$0x1]
    %v1699 = vld [vmem:[#allocation2 + $0x18] sm:$0xf]
    %v1700 = vld [vmem:[#allocation2 + $0x1c] sm:$0xf]
    %v1701 = vld [vmem:[#allocation2 + $0x20] sm:$0x1]
    %v1702 = vld [vmem:[#allocation2 + $0x24] sm:$0xf]
    %v1703 = vld [vmem:[#allocation2 + $0x28] sm:$0xf]
    %v1704 = vld [vmem:[#allocation2 + $0x2c] sm:$0x1]
    %v1706 = vshrl.u32 %v1693, 16
    %v1708 = vrot.slane %v1706, 4
    %v1709 = vshll.u32 %v1693, 16
    %v1711 = vrot.slane %v1709, 5
    %v1712 = vor.u32 %v1708, %v1711
    %v1713 = vrot.slane %v1712, 4
    %v1715 = vshll.u32 %v1694, 16
    %v1717 = vrot.slane %v1715, 5
    %v1718 = vsel %vm1329, %v1713, %v1717
    %v1719 = vshrl.u32 %v1694, 16
    %v1721 = vrot.slane %v1719, 4
    %v1722 = vor.u32 %v1721, %v1717
    %v1723 = vrot.slane %v1722, 4
    %v1725 = vshll.u32 %v1695, 16
    %v1727 = vrot.slane %v1725, 5
    %v1728 = vsel %vm1329, %v1723, %v1727
    %v1730 = vshrl.u32 %v1696, 16
    %v1732 = vrot.slane %v1730, 4
    %v1733 = vshll.u32 %v1696, 16
    %v1735 = vrot.slane %v1733, 5
    %v1736 = vor.u32 %v1732, %v1735
    %v1737 = vrot.slane %v1736, 4
    %v1739 = vshll.u32 %v1697, 16
    %v1741 = vrot.slane %v1739, 5
    %v1742 = vsel %vm1329, %v1737, %v1741
    %v1743 = vshrl.u32 %v1697, 16
    %v1745 = vrot.slane %v1743, 4
    %v1746 = vor.u32 %v1745, %v1741
    %v1747 = vrot.slane %v1746, 4
    %v1749 = vshll.u32 %v1698, 16
    %v1751 = vrot.slane %v1749, 5
    %v1752 = vsel %vm1329, %v1747, %v1751
    %v1754 = vshrl.u32 %v1699, 16
    %v1756 = vrot.slane %v1754, 4
    %v1757 = vshll.u32 %v1699, 16
    %v1759 = vrot.slane %v1757, 5
    %v1760 = vor.u32 %v1756, %v1759
    %v1761 = vrot.slane %v1760, 4
    %v1763 = vshll.u32 %v1700, 16
    %v1765 = vrot.slane %v1763, 5
    %v1766 = vsel %vm1329, %v1761, %v1765
    %v1767 = vshrl.u32 %v1700, 16
    %v1769 = vrot.slane %v1767, 4
    %v1770 = vor.u32 %v1769, %v1765
    %v1771 = vrot.slane %v1770, 4
    %v1773 = vshll.u32 %v1701, 16
    %v1775 = vrot.slane %v1773, 5
    %v1776 = vsel %vm1329, %v1771, %v1775
    %v1778 = vshrl.u32 %v1702, 16
    %v1780 = vrot.slane %v1778, 4
    %v1781 = vshll.u32 %v1702, 16
    %v1783 = vrot.slane %v1781, 5
    %v1784 = vor.u32 %v1780, %v1783
    %v1785 = vrot.slane %v1784, 4
    %v1787 = vshll.u32 %v1703, 16
    %v1789 = vrot.slane %v1787, 5
    %v1790 = vsel %vm1329, %v1785, %v1789
    %v1791 = vshrl.u32 %v1703, 16
    %v1793 = vrot.slane %v1791, 4
    %v1794 = vor.u32 %v1793, %v1789
    %v1795 = vrot.slane %v1794, 4
    %v1797 = vshll.u32 %v1704, 16
    %v1799 = vrot.slane %v1797, 5
    %v1800 = vsel %vm1329, %v1795, %v1799
    %1801 = vrot.lane.b32.xlu0 %v1718, 127
    %v1802 = vpop.permute.xlu0 %1801
    %1803 = vrot.lane.b32.xlu0 %v1728, 127
    %v1804 = vpop.permute.xlu0 %1803
    %1805 = vrot.lane.b32.xlu0 %v1742, 127
    %v1806 = vpop.permute.xlu0 %1805
    %1807 = vrot.lane.b32.xlu0 %v1752, 127
    %v1808 = vpop.permute.xlu0 %1807
    %1809 = vrot.lane.b32.xlu0 %v1766, 127
    %v1810 = vpop.permute.xlu0 %1809
    %1811 = vrot.lane.b32.xlu0 %v1776, 127
    %v1812 = vpop.permute.xlu0 %1811
    %1813 = vrot.lane.b32.xlu0 %v1790, 127
    %v1814 = vpop.permute.xlu0 %1813
    %1815 = vrot.lane.b32.xlu0 %v1800, 127
    %v1816 = vpop.permute.xlu0 %1815
    %v1819 = vpack.i.b16 %v1806, %v1802
    %v1820 = vshrl.u32 %v1802, 16
    %v1821 = vshrl.u32 %v1806, 16
    %v1822 = vpack.i.b16 %v1821, %v1820
    %v1825 = vpack.i.b16 %v1814, %v1810
    %v1826 = vshrl.u32 %v1810, 16
    %v1827 = vshrl.u32 %v1814, 16
    %v1828 = vpack.i.b16 %v1827, %v1826
    %v1831 = vpack.i.b16 %v1808, %v1804
    %v1832 = vshrl.u32 %v1804, 16
    %v1833 = vshrl.u32 %v1808, 16
    %v1834 = vpack.i.b16 %v1833, %v1832
    %v1837 = vpack.i.b16 %v1816, %v1812
    %v1838 = vshrl.u32 %v1812, 16
    %v1839 = vshrl.u32 %v1816, 16
    %v1840 = vpack.i.b16 %v1839, %v1838
    %v1843 = vunpack.c.l.s4 1983009808
    %v1844 = vunpack.c.0.s8 %v1843
    %v1845 = vlaneseq
    %v1846 = vshrl.u32 %v1845, 7
    %v1847 = vsub.s32 %v1844, %v1846
    %v1848 = vrot.slane %v1819, %v1847
    %v1851 = vunpack.c.l.s4 1983009808
    %v1852 = vunpack.c.0.s8 %v1851
    %v1853 = vlaneseq
    %v1854 = vshrl.u32 %v1853, 7
    %v1855 = vsub.s32 %v1852, %v1854
    %v1856 = vrot.slane %v1825, %v1855
    %v1857 = vcombine.low %v1848, %v1856
    %v1858 = vcombine.high %v1848, %v1856
    %v1860 = vunpack.c.l.s4 1934713408
    %v1861 = vunpack.c.0.s8 %v1860
    %v1862 = vlaneseq
    %v1863 = vshrl.u32 %v1862, 7
    %v1864 = vsub.s32 %v1861, %v1863
    %v1865 = vrot.slane %v1857, %v1864
    %v1867 = vunpack.c.l.s4 1934713408
    %v1868 = vunpack.c.0.s8 %v1867
    %v1869 = vlaneseq
    %v1870 = vshrl.u32 %v1869, 7
    %v1871 = vsub.s32 %v1868, %v1870
    %v1872 = vrot.slane %v1858, %v1871
    %v1873 = vcombine.high %v1865, 0
    %v1874 = vcombine.high %v1872, 0
    %v1877 = vunpack.c.l.s4 1983009808
    %v1878 = vunpack.c.0.s8 %v1877
    %v1879 = vlaneseq
    %v1880 = vshrl.u32 %v1879, 7
    %v1881 = vsub.s32 %v1878, %v1880
    %v1882 = vrot.slane %v1822, %v1881
    %v1885 = vunpack.c.l.s4 1983009808
    %v1886 = vunpack.c.0.s8 %v1885
    %v1887 = vlaneseq
    %v1888 = vshrl.u32 %v1887, 7
    %v1889 = vsub.s32 %v1886, %v1888
    %v1890 = vrot.slane %v1828, %v1889
    %v1891 = vcombine.low %v1882, %v1890
    %v1892 = vcombine.high %v1882, %v1890
    %v1894 = vunpack.c.l.s4 1934713408
    %v1895 = vunpack.c.0.s8 %v1894
    %v1896 = vlaneseq
    %v1897 = vshrl.u32 %v1896, 7
    %v1898 = vsub.s32 %v1895, %v1897
    %v1899 = vrot.slane %v1891, %v1898
    %v1901 = vunpack.c.l.s4 1934713408
    %v1902 = vunpack.c.0.s8 %v1901
    %v1903 = vlaneseq
    %v1904 = vshrl.u32 %v1903, 7
    %v1905 = vsub.s32 %v1902, %v1904
    %v1906 = vrot.slane %v1892, %v1905
    %v1907 = vcombine.high %v1899, 0
    %v1908 = vcombine.high %v1906, 0
    %v1911 = vunpack.c.l.s4 1983009808
    %v1912 = vunpack.c.0.s8 %v1911
    %v1913 = vlaneseq
    %v1914 = vshrl.u32 %v1913, 7
    %v1915 = vsub.s32 %v1912, %v1914
    %v1916 = vrot.slane %v1831, %v1915
    %v1919 = vunpack.c.l.s4 1983009808
    %v1920 = vunpack.c.0.s8 %v1919
    %v1921 = vlaneseq
    %v1922 = vshrl.u32 %v1921, 7
    %v1923 = vsub.s32 %v1920, %v1922
    %v1924 = vrot.slane %v1837, %v1923
    %v1925 = vcombine.low %v1916, %v1924
    %v1926 = vcombine.high %v1916, %v1924
    %v1928 = vunpack.c.l.s4 1934713408
    %v1929 = vunpack.c.0.s8 %v1928
    %v1930 = vlaneseq
    %v1931 = vshrl.u32 %v1930, 7
    %v1932 = vsub.s32 %v1929, %v1931
    %v1933 = vrot.slane %v1925, %v1932
    %v1935 = vunpack.c.l.s4 1934713408
    %v1936 = vunpack.c.0.s8 %v1935
    %v1937 = vlaneseq
    %v1938 = vshrl.u32 %v1937, 7
    %v1939 = vsub.s32 %v1936, %v1938
    %v1940 = vrot.slane %v1926, %v1939
    %v1941 = vcombine.high %v1933, 0
    %v1942 = vcombine.high %v1940, 0
    %v1945 = vunpack.c.l.s4 1983009808
    %v1946 = vunpack.c.0.s8 %v1945
    %v1947 = vlaneseq
    %v1948 = vshrl.u32 %v1947, 7
    %v1949 = vsub.s32 %v1946, %v1948
    %v1950 = vrot.slane %v1834, %v1949
    %v1953 = vunpack.c.l.s4 1983009808
    %v1954 = vunpack.c.0.s8 %v1953
    %v1955 = vlaneseq
    %v1956 = vshrl.u32 %v1955, 7
    %v1957 = vsub.s32 %v1954, %v1956
    %v1958 = vrot.slane %v1840, %v1957
    %v1959 = vcombine.low %v1950, %v1958
    %v1960 = vcombine.high %v1950, %v1958
    %v1962 = vunpack.c.l.s4 1934713408
    %v1963 = vunpack.c.0.s8 %v1962
    %v1964 = vlaneseq
    %v1965 = vshrl.u32 %v1964, 7
    %v1966 = vsub.s32 %v1963, %v1965
    %v1967 = vrot.slane %v1959, %v1966
    %v1969 = vunpack.c.l.s4 1934713408
    %v1970 = vunpack.c.0.s8 %v1969
    %v1971 = vlaneseq
    %v1972 = vshrl.u32 %v1971, 7
    %v1973 = vsub.s32 %v1970, %v1972
    %v1974 = vrot.slane %v1960, %v1973
    %v1975 = vcombine.high %v1967, 0
    %v1976 = vcombine.high %v1974, 0
    %v1978 = vunpack.c.l.b16 %v1899
    %v1979 = vpack.c.b16 %v1978, %v1978
    %1980 = vrot.lane.b32.xlu0 %v1979, 16
    %v1981 = vpop.permute.xlu0 %1980
    %v1983 = vunpack.c.l.b16 %v1873
    %v1984 = vpack.c.b16 %v1983, %v1983
    %1985 = vrot.lane.b32.xlu0 %v1984, 32
    %v1986 = vpop.permute.xlu0 %1985
    %v1988 = vunpack.c.l.b16 %v1907
    %v1989 = vpack.c.b16 %v1988, %v1988
    %1990 = vrot.lane.b32.xlu0 %v1989, 48
    %v1991 = vpop.permute.xlu0 %1990
    %v1993 = vunpack.c.l.b16 %v1872
    %v1994 = vpack.c.b16 %v1993, %v1993
    %1995 = vrot.lane.b32.xlu0 %v1994, 64
    %v1996 = vpop.permute.xlu0 %1995
    %v1998 = vunpack.c.l.b16 %v1906
    %v1999 = vpack.c.b16 %v1998, %v1998
    %2000 = vrot.lane.b32.xlu0 %v1999, 80
    %v2001 = vpop.permute.xlu0 %2000
    %v2003 = vunpack.c.l.b16 %v1874
    %v2004 = vpack.c.b16 %v2003, %v2003
    %2005 = vrot.lane.b32.xlu0 %v2004, 96
    %v2006 = vpop.permute.xlu0 %2005
    %v2008 = vunpack.c.l.b16 %v1908
    %v2009 = vpack.c.b16 %v2008, %v2008
    %2010 = vrot.lane.b32.xlu0 %v2009, 112
    %v2011 = vpop.permute.xlu0 %2010
    %v2013 = vunpack.c.l.b16 %v1967
    %v2014 = vpack.c.b16 %v2013, %v2013
    %2015 = vrot.lane.b32.xlu0 %v2014, 16
    %v2016 = vpop.permute.xlu0 %2015
    %v2018 = vunpack.c.l.b16 %v1941
    %v2019 = vpack.c.b16 %v2018, %v2018
    %2020 = vrot.lane.b32.xlu0 %v2019, 32
    %v2021 = vpop.permute.xlu0 %2020
    %v2023 = vunpack.c.l.b16 %v1975
    %v2024 = vpack.c.b16 %v2023, %v2023
    %2025 = vrot.lane.b32.xlu0 %v2024, 48
    %v2026 = vpop.permute.xlu0 %2025
    %v2028 = vunpack.c.l.b16 %v1940
    %v2029 = vpack.c.b16 %v2028, %v2028
    %2030 = vrot.lane.b32.xlu0 %v2029, 64
    %v2031 = vpop.permute.xlu0 %2030
    %v2033 = vunpack.c.l.b16 %v1974
    %v2034 = vpack.c.b16 %v2033, %v2033
    %2035 = vrot.lane.b32.xlu0 %v2034, 80
    %v2036 = vpop.permute.xlu0 %2035
    %v2038 = vunpack.c.l.b16 %v1942
    %v2039 = vpack.c.b16 %v2038, %v2038
    %2040 = vrot.lane.b32.xlu0 %v2039, 96
    %v2041 = vpop.permute.xlu0 %2040
    %v2043 = vunpack.c.l.b16 %v1976
    %v2044 = vpack.c.b16 %v2043, %v2043
    %2045 = vrot.lane.b32.xlu0 %v2044, 112
    %v2046 = vpop.permute.xlu0 %2045
    %v2049 = vsel %vm673, %v1865, %v1981
    %v2051 = vsel %vm677, %v2049, %v1986
    %v2053 = vsel %vm680, %v2051, %v1991
    %v2055 = vsel %vm683, %v2053, %v1996
    %v2057 = vsel %vm686, %v2055, %v2001
    %v2059 = vsel %vm689, %v2057, %v2006
    %v2061 = vsel %vm692, %v2059, %v2011
    %v2064 = vsel %vm673, %v1933, %v2016
    %v2066 = vsel %vm677, %v2064, %v2021
    %v2068 = vsel %vm680, %v2066, %v2026
    %v2070 = vsel %vm683, %v2068, %v2031
    %v2072 = vsel %vm686, %v2070, %v2036
    %v2074 = vsel %vm689, %v2072, %v2041
    %v2076 = vsel %vm692, %v2074, %v2046
    %v2079 = vunpack.c.l.b16 %v2061
    %v2080 = vunpack.c.l.b16 %v2076
    %v2081 = vpack.c.b16 %v2080, %v2079
    %2083 = vst [vmem:[#allocation3 + $0x80] sm:$0x33] %v2081
    %v2084 = vld [vmem:[#allocation2] sm:$0xf]
    %v2085 = vld [vmem:[#allocation2 + $0x4] sm:$0xf]
    %v2086 = vld [vmem:[#allocation2 + $0x8] sm:$0x1]
    %v2087 = vld [vmem:[#allocation2 + $0xc] sm:$0xf]
    %v2088 = vld [vmem:[#allocation2 + $0x10] sm:$0xf]
    %v2089 = vld [vmem:[#allocation2 + $0x14] sm:$0x1]
    %v2090 = vld [vmem:[#allocation2 + $0x18] sm:$0xf]
    %v2091 = vld [vmem:[#allocation2 + $0x1c] sm:$0xf]
    %v2092 = vld [vmem:[#allocation2 + $0x20] sm:$0x1]
    %v2093 = vld [vmem:[#allocation2 + $0x24] sm:$0xf]
    %v2094 = vld [vmem:[#allocation2 + $0x28] sm:$0xf]
    %v2095 = vld [vmem:[#allocation2 + $0x2c] sm:$0x1]
    %v2097 = vshrl.u32 %v2084, 16
    %v2099 = vrot.slane %v2097, 4
    %v2100 = vshll.u32 %v2084, 16
    %v2102 = vrot.slane %v2100, 5
    %v2103 = vor.u32 %v2099, %v2102
    %v2104 = vrot.slane %v2103, 4
    %v2106 = vshll.u32 %v2085, 16
    %v2108 = vrot.slane %v2106, 5
    %v2109 = vsel %vm1329, %v2104, %v2108
    %v2110 = vshrl.u32 %v2085, 16
    %v2112 = vrot.slane %v2110, 4
    %v2113 = vor.u32 %v2112, %v2108
    %v2114 = vrot.slane %v2113, 4
    %v2116 = vshll.u32 %v2086, 16
    %v2118 = vrot.slane %v2116, 5
    %v2119 = vsel %vm1329, %v2114, %v2118
    %v2121 = vshrl.u32 %v2087, 16
    %v2123 = vrot.slane %v2121, 4
    %v2124 = vshll.u32 %v2087, 16
    %v2126 = vrot.slane %v2124, 5
    %v2127 = vor.u32 %v2123, %v2126
    %v2128 = vrot.slane %v2127, 4
    %v2130 = vshll.u32 %v2088, 16
    %v2132 = vrot.slane %v2130, 5
    %v2133 = vsel %vm1329, %v2128, %v2132
    %v2134 = vshrl.u32 %v2088, 16
    %v2136 = vrot.slane %v2134, 4
    %v2137 = vor.u32 %v2136, %v2132
    %v2138 = vrot.slane %v2137, 4
    %v2140 = vshll.u32 %v2089, 16
    %v2142 = vrot.slane %v2140, 5
    %v2143 = vsel %vm1329, %v2138, %v2142
    %v2145 = vshrl.u32 %v2090, 16
    %v2147 = vrot.slane %v2145, 4
    %v2148 = vshll.u32 %v2090, 16
    %v2150 = vrot.slane %v2148, 5
    %v2151 = vor.u32 %v2147, %v2150
    %v2152 = vrot.slane %v2151, 4
    %v2154 = vshll.u32 %v2091, 16
    %v2156 = vrot.slane %v2154, 5
    %v2157 = vsel %vm1329, %v2152, %v2156
    %v2158 = vshrl.u32 %v2091, 16
    %v2160 = vrot.slane %v2158, 4
    %v2161 = vor.u32 %v2160, %v2156
    %v2162 = vrot.slane %v2161, 4
    %v2164 = vshll.u32 %v2092, 16
    %v2166 = vrot.slane %v2164, 5
    %v2167 = vsel %vm1329, %v2162, %v2166
    %v2169 = vshrl.u32 %v2093, 16
    %v2171 = vrot.slane %v2169, 4
    %v2172 = vshll.u32 %v2093, 16
    %v2174 = vrot.slane %v2172, 5
    %v2175 = vor.u32 %v2171, %v2174
    %v2176 = vrot.slane %v2175, 4
    %v2178 = vshll.u32 %v2094, 16
    %v2180 = vrot.slane %v2178, 5
    %v2181 = vsel %vm1329, %v2176, %v2180
    %v2182 = vshrl.u32 %v2094, 16
    %v2184 = vrot.slane %v2182, 4
    %v2185 = vor.u32 %v2184, %v2180
    %v2186 = vrot.slane %v2185, 4
    %v2188 = vshll.u32 %v2095, 16
    %v2190 = vrot.slane %v2188, 5
    %v2191 = vsel %vm1329, %v2186, %v2190
    %2192 = vrot.lane.b32.xlu0 %v2109, 126
    %v2193 = vpop.permute.xlu0 %2192
    %2194 = vrot.lane.b32.xlu0 %v2119, 126
    %v2195 = vpop.permute.xlu0 %2194
    %2196 = vrot.lane.b32.xlu0 %v2133, 126
    %v2197 = vpop.permute.xlu0 %2196
    %2198 = vrot.lane.b32.xlu0 %v2143, 126
    %v2199 = vpop.permute.xlu0 %2198
    %2200 = vrot.lane.b32.xlu0 %v2157, 126
    %v2201 = vpop.permute.xlu0 %2200
    %2202 = vrot.lane.b32.xlu0 %v2167, 126
    %v2203 = vpop.permute.xlu0 %2202
    %2204 = vrot.lane.b32.xlu0 %v2181, 126
    %v2205 = vpop.permute.xlu0 %2204
    %2206 = vrot.lane.b32.xlu0 %v2191, 126
    %v2207 = vpop.permute.xlu0 %2206
    %v2210 = vpack.i.b16 %v2197, %v2193
    %v2211 = vshrl.u32 %v2193, 16
    %v2212 = vshrl.u32 %v2197, 16
    %v2213 = vpack.i.b16 %v2212, %v2211
    %v2216 = vpack.i.b16 %v2205, %v2201
    %v2217 = vshrl.u32 %v2201, 16
    %v2218 = vshrl.u32 %v2205, 16
    %v2219 = vpack.i.b16 %v2218, %v2217
    %v2222 = vpack.i.b16 %v2199, %v2195
    %v2223 = vshrl.u32 %v2195, 16
    %v2224 = vshrl.u32 %v2199, 16
    %v2225 = vpack.i.b16 %v2224, %v2223
    %v2228 = vpack.i.b16 %v2207, %v2203
    %v2229 = vshrl.u32 %v2203, 16
    %v2230 = vshrl.u32 %v2207, 16
    %v2231 = vpack.i.b16 %v2230, %v2229
    %v2234 = vunpack.c.l.s4 1983009808
    %v2235 = vunpack.c.0.s8 %v2234
    %v2236 = vlaneseq
    %v2237 = vshrl.u32 %v2236, 7
    %v2238 = vsub.s32 %v2235, %v2237
    %v2239 = vrot.slane %v2210, %v2238
    %v2242 = vunpack.c.l.s4 1983009808
    %v2243 = vunpack.c.0.s8 %v2242
    %v2244 = vlaneseq
    %v2245 = vshrl.u32 %v2244, 7
    %v2246 = vsub.s32 %v2243, %v2245
    %v2247 = vrot.slane %v2216, %v2246
    %v2248 = vcombine.low %v2239, %v2247
    %v2249 = vcombine.high %v2239, %v2247
    %v2251 = vunpack.c.l.s4 1934713408
    %v2252 = vunpack.c.0.s8 %v2251
    %v2253 = vlaneseq
    %v2254 = vshrl.u32 %v2253, 7
    %v2255 = vsub.s32 %v2252, %v2254
    %v2256 = vrot.slane %v2248, %v2255
    %v2258 = vunpack.c.l.s4 1934713408
    %v2259 = vunpack.c.0.s8 %v2258
    %v2260 = vlaneseq
    %v2261 = vshrl.u32 %v2260, 7
    %v2262 = vsub.s32 %v2259, %v2261
    %v2263 = vrot.slane %v2249, %v2262
    %v2264 = vcombine.high %v2256, 0
    %v2265 = vcombine.high %v2263, 0
    %v2268 = vunpack.c.l.s4 1983009808
    %v2269 = vunpack.c.0.s8 %v2268
    %v2270 = vlaneseq
    %v2271 = vshrl.u32 %v2270, 7
    %v2272 = vsub.s32 %v2269, %v2271
    %v2273 = vrot.slane %v2213, %v2272
    %v2276 = vunpack.c.l.s4 1983009808
    %v2277 = vunpack.c.0.s8 %v2276
    %v2278 = vlaneseq
    %v2279 = vshrl.u32 %v2278, 7
    %v2280 = vsub.s32 %v2277, %v2279
    %v2281 = vrot.slane %v2219, %v2280
    %v2282 = vcombine.low %v2273, %v2281
    %v2283 = vcombine.high %v2273, %v2281
    %v2285 = vunpack.c.l.s4 1934713408
    %v2286 = vunpack.c.0.s8 %v2285
    %v2287 = vlaneseq
    %v2288 = vshrl.u32 %v2287, 7
    %v2289 = vsub.s32 %v2286, %v2288
    %v2290 = vrot.slane %v2282, %v2289
    %v2292 = vunpack.c.l.s4 1934713408
    %v2293 = vunpack.c.0.s8 %v2292
    %v2294 = vlaneseq
    %v2295 = vshrl.u32 %v2294, 7
    %v2296 = vsub.s32 %v2293, %v2295
    %v2297 = vrot.slane %v2283, %v2296
    %v2298 = vcombine.high %v2290, 0
    %v2299 = vcombine.high %v2297, 0
    %v2302 = vunpack.c.l.s4 1983009808
    %v2303 = vunpack.c.0.s8 %v2302
    %v2304 = vlaneseq
    %v2305 = vshrl.u32 %v2304, 7
    %v2306 = vsub.s32 %v2303, %v2305
    %v2307 = vrot.slane %v2222, %v2306
    %v2310 = vunpack.c.l.s4 1983009808
    %v2311 = vunpack.c.0.s8 %v2310
    %v2312 = vlaneseq
    %v2313 = vshrl.u32 %v2312, 7
    %v2314 = vsub.s32 %v2311, %v2313
    %v2315 = vrot.slane %v2228, %v2314
    %v2316 = vcombine.low %v2307, %v2315
    %v2317 = vcombine.high %v2307, %v2315
    %v2319 = vunpack.c.l.s4 1934713408
    %v2320 = vunpack.c.0.s8 %v2319
    %v2321 = vlaneseq
    %v2322 = vshrl.u32 %v2321, 7
    %v2323 = vsub.s32 %v2320, %v2322
    %v2324 = vrot.slane %v2316, %v2323
    %v2326 = vunpack.c.l.s4 1934713408
    %v2327 = vunpack.c.0.s8 %v2326
    %v2328 = vlaneseq
    %v2329 = vshrl.u32 %v2328, 7
    %v2330 = vsub.s32 %v2327, %v2329
    %v2331 = vrot.slane %v2317, %v2330
    %v2332 = vcombine.high %v2324, 0
    %v2333 = vcombine.high %v2331, 0
    %v2336 = vunpack.c.l.s4 1983009808
    %v2337 = vunpack.c.0.s8 %v2336
    %v2338 = vlaneseq
    %v2339 = vshrl.u32 %v2338, 7
    %v2340 = vsub.s32 %v2337, %v2339
    %v2341 = vrot.slane %v2225, %v2340
    %v2344 = vunpack.c.l.s4 1983009808
    %v2345 = vunpack.c.0.s8 %v2344
    %v2346 = vlaneseq
    %v2347 = vshrl.u32 %v2346, 7
    %v2348 = vsub.s32 %v2345, %v2347
    %v2349 = vrot.slane %v2231, %v2348
    %v2350 = vcombine.low %v2341, %v2349
    %v2351 = vcombine.high %v2341, %v2349
    %v2353 = vunpack.c.l.s4 1934713408
    %v2354 = vunpack.c.0.s8 %v2353
    %v2355 = vlaneseq
    %v2356 = vshrl.u32 %v2355, 7
    %v2357 = vsub.s32 %v2354, %v2356
    %v2358 = vrot.slane %v2350, %v2357
    %v2360 = vunpack.c.l.s4 1934713408
    %v2361 = vunpack.c.0.s8 %v2360
    %v2362 = vlaneseq
    %v2363 = vshrl.u32 %v2362, 7
    %v2364 = vsub.s32 %v2361, %v2363
    %v2365 = vrot.slane %v2351, %v2364
    %v2366 = vcombine.high %v2358, 0
    %v2367 = vcombine.high %v2365, 0
    %v2369 = vunpack.c.l.b16 %v2290
    %v2370 = vpack.c.b16 %v2369, %v2369
    %2371 = vrot.lane.b32.xlu0 %v2370, 16
    %v2372 = vpop.permute.xlu0 %2371
    %v2374 = vunpack.c.l.b16 %v2264
    %v2375 = vpack.c.b16 %v2374, %v2374
    %2376 = vrot.lane.b32.xlu0 %v2375, 32
    %v2377 = vpop.permute.xlu0 %2376
    %v2379 = vunpack.c.l.b16 %v2298
    %v2380 = vpack.c.b16 %v2379, %v2379
    %2381 = vrot.lane.b32.xlu0 %v2380, 48
    %v2382 = vpop.permute.xlu0 %2381
    %v2384 = vunpack.c.l.b16 %v2263
    %v2385 = vpack.c.b16 %v2384, %v2384
    %2386 = vrot.lane.b32.xlu0 %v2385, 64
    %v2387 = vpop.permute.xlu0 %2386
    %v2389 = vunpack.c.l.b16 %v2297
    %v2390 = vpack.c.b16 %v2389, %v2389
    %2391 = vrot.lane.b32.xlu0 %v2390, 80
    %v2392 = vpop.permute.xlu0 %2391
    %v2394 = vunpack.c.l.b16 %v2265
    %v2395 = vpack.c.b16 %v2394, %v2394
    %2396 = vrot.lane.b32.xlu0 %v2395, 96
    %v2397 = vpop.permute.xlu0 %2396
    %v2399 = vunpack.c.l.b16 %v2299
    %v2400 = vpack.c.b16 %v2399, %v2399
    %2401 = vrot.lane.b32.xlu0 %v2400, 112
    %v2402 = vpop.permute.xlu0 %2401
    %v2404 = vunpack.c.l.b16 %v2358
    %v2405 = vpack.c.b16 %v2404, %v2404
    %2406 = vrot.lane.b32.xlu0 %v2405, 16
    %v2407 = vpop.permute.xlu0 %2406
    %v2409 = vunpack.c.l.b16 %v2332
    %v2410 = vpack.c.b16 %v2409, %v2409
    %2411 = vrot.lane.b32.xlu0 %v2410, 32
    %v2412 = vpop.permute.xlu0 %2411
    %v2414 = vunpack.c.l.b16 %v2366
    %v2415 = vpack.c.b16 %v2414, %v2414
    %2416 = vrot.lane.b32.xlu0 %v2415, 48
    %v2417 = vpop.permute.xlu0 %2416
    %v2419 = vunpack.c.l.b16 %v2331
    %v2420 = vpack.c.b16 %v2419, %v2419
    %2421 = vrot.lane.b32.xlu0 %v2420, 64
    %v2422 = vpop.permute.xlu0 %2421
    %v2424 = vunpack.c.l.b16 %v2365
    %v2425 = vpack.c.b16 %v2424, %v2424
    %2426 = vrot.lane.b32.xlu0 %v2425, 80
    %v2427 = vpop.permute.xlu0 %2426
    %v2429 = vunpack.c.l.b16 %v2333
    %v2430 = vpack.c.b16 %v2429, %v2429
    %2431 = vrot.lane.b32.xlu0 %v2430, 96
    %v2432 = vpop.permute.xlu0 %2431
    %v2434 = vunpack.c.l.b16 %v2367
    %v2435 = vpack.c.b16 %v2434, %v2434
    %2436 = vrot.lane.b32.xlu0 %v2435, 112
    %v2437 = vpop.permute.xlu0 %2436
    %v2440 = vsel %vm673, %v2256, %v2372
    %v2442 = vsel %vm677, %v2440, %v2377
    %v2444 = vsel %vm680, %v2442, %v2382
    %v2446 = vsel %vm683, %v2444, %v2387
    %v2448 = vsel %vm686, %v2446, %v2392
    %v2450 = vsel %vm689, %v2448, %v2397
    %v2452 = vsel %vm692, %v2450, %v2402
    %v2455 = vsel %vm673, %v2324, %v2407
    %v2457 = vsel %vm677, %v2455, %v2412
    %v2459 = vsel %vm680, %v2457, %v2417
    %v2461 = vsel %vm683, %v2459, %v2422
    %v2463 = vsel %vm686, %v2461, %v2427
    %v2465 = vsel %vm689, %v2463, %v2432
    %v2467 = vsel %vm692, %v2465, %v2437
    %v2470 = vunpack.c.l.b16 %v2452
    %v2471 = vunpack.c.l.b16 %v2467
    %v2472 = vpack.c.b16 %v2471, %v2470
    %2474 = vst [vmem:[#allocation3 + $0xa0] sm:$0x33] %v2472
    %v2475 = vld [vmem:[#allocation2] sm:$0xe]
    %v2476 = vld [vmem:[#allocation2 + $0x4] sm:$0xf]
    %v2477 = vld [vmem:[#allocation2 + $0x8] sm:$0x1]
    %v2478 = vld [vmem:[#allocation2 + $0xc] sm:$0xe]
    %v2479 = vld [vmem:[#allocation2 + $0x10] sm:$0xf]
    %v2480 = vld [vmem:[#allocation2 + $0x14] sm:$0x1]
    %v2481 = vld [vmem:[#allocation2 + $0x18] sm:$0xe]
    %v2482 = vld [vmem:[#allocation2 + $0x1c] sm:$0xf]
    %v2483 = vld [vmem:[#allocation2 + $0x20] sm:$0x1]
    %v2484 = vld [vmem:[#allocation2 + $0x24] sm:$0xe]
    %v2485 = vld [vmem:[#allocation2 + $0x28] sm:$0xf]
    %v2486 = vld [vmem:[#allocation2 + $0x2c] sm:$0x1]
    %vm2499 = vcmask 1042432
    %vm2500 = vcmask 1046532
    %vm2501 = vmor %vm2499, %vm2500
    %v2502 = vrot.slane %v2475, 5
    %v2503 = vrot.slane %v2502, 4
    %v2504 = vrot.slane %v2476, 5
    %v2505 = vsel %vm2501, %v2503, %v2504
    %v2506 = vrot.slane %v2504, 4
    %v2507 = vrot.slane %v2477, 5
    %v2508 = vsel %vm2501, %v2506, %v2507
    %v2509 = vrot.slane %v2478, 5
    %v2510 = vrot.slane %v2509, 4
    %v2511 = vrot.slane %v2479, 5
    %v2512 = vsel %vm2501, %v2510, %v2511
    %v2513 = vrot.slane %v2511, 4
    %v2514 = vrot.slane %v2480, 5
    %v2515 = vsel %vm2501, %v2513, %v2514
    %v2516 = vrot.slane %v2481, 5
    %v2517 = vrot.slane %v2516, 4
    %v2518 = vrot.slane %v2482, 5
    %v2519 = vsel %vm2501, %v2517, %v2518
    %v2520 = vrot.slane %v2518, 4
    %v2521 = vrot.slane %v2483, 5
    %v2522 = vsel %vm2501, %v2520, %v2521
    %v2523 = vrot.slane %v2484, 5
    %v2524 = vrot.slane %v2523, 4
    %v2525 = vrot.slane %v2485, 5
    %v2526 = vsel %vm2501, %v2524, %v2525
    %v2527 = vrot.slane %v2525, 4
    %v2528 = vrot.slane %v2486, 5
    %v2529 = vsel %vm2501, %v2527, %v2528
    %v2532 = vpack.i.b16 %v2512, %v2505
    %v2533 = vshrl.u32 %v2505, 16
    %v2534 = vshrl.u32 %v2512, 16
    %v2535 = vpack.i.b16 %v2534, %v2533
    %v2538 = vpack.i.b16 %v2526, %v2519
    %v2539 = vshrl.u32 %v2519, 16
    %v2540 = vshrl.u32 %v2526, 16
    %v2541 = vpack.i.b16 %v2540, %v2539
    %v2544 = vpack.i.b16 %v2515, %v2508
    %v2545 = vshrl.u32 %v2508, 16
    %v2546 = vshrl.u32 %v2515, 16
    %v2547 = vpack.i.b16 %v2546, %v2545
    %v2550 = vpack.i.b16 %v2529, %v2522
    %v2551 = vshrl.u32 %v2522, 16
    %v2552 = vshrl.u32 %v2529, 16
    %v2553 = vpack.i.b16 %v2552, %v2551
    %v2556 = vunpack.c.l.s4 1983009808
    %v2557 = vunpack.c.0.s8 %v2556
    %v2558 = vlaneseq
    %v2559 = vshrl.u32 %v2558, 7
    %v2560 = vsub.s32 %v2557, %v2559
    %v2561 = vrot.slane %v2532, %v2560
    %v2564 = vunpack.c.l.s4 1983009808
    %v2565 = vunpack.c.0.s8 %v2564
    %v2566 = vlaneseq
    %v2567 = vshrl.u32 %v2566, 7
    %v2568 = vsub.s32 %v2565, %v2567
    %v2569 = vrot.slane %v2538, %v2568
    %v2570 = vcombine.low %v2561, %v2569
    %v2571 = vcombine.high %v2561, %v2569
    %v2573 = vunpack.c.l.s4 1934713408
    %v2574 = vunpack.c.0.s8 %v2573
    %v2575 = vlaneseq
    %v2576 = vshrl.u32 %v2575, 7
    %v2577 = vsub.s32 %v2574, %v2576
    %v2578 = vrot.slane %v2570, %v2577
    %v2580 = vunpack.c.l.s4 1934713408
    %v2581 = vunpack.c.0.s8 %v2580
    %v2582 = vlaneseq
    %v2583 = vshrl.u32 %v2582, 7
    %v2584 = vsub.s32 %v2581, %v2583
    %v2585 = vrot.slane %v2571, %v2584
    %v2586 = vcombine.high %v2578, 0
    %v2587 = vcombine.high %v2585, 0
    %v2590 = vunpack.c.l.s4 1983009808
    %v2591 = vunpack.c.0.s8 %v2590
    %v2592 = vlaneseq
    %v2593 = vshrl.u32 %v2592, 7
    %v2594 = vsub.s32 %v2591, %v2593
    %v2595 = vrot.slane %v2535, %v2594
    %v2598 = vunpack.c.l.s4 1983009808
    %v2599 = vunpack.c.0.s8 %v2598
    %v2600 = vlaneseq
    %v2601 = vshrl.u32 %v2600, 7
    %v2602 = vsub.s32 %v2599, %v2601
    %v2603 = vrot.slane %v2541, %v2602
    %v2604 = vcombine.low %v2595, %v2603
    %v2605 = vcombine.high %v2595, %v2603
    %v2607 = vunpack.c.l.s4 1934713408
    %v2608 = vunpack.c.0.s8 %v2607
    %v2609 = vlaneseq
    %v2610 = vshrl.u32 %v2609, 7
    %v2611 = vsub.s32 %v2608, %v2610
    %v2612 = vrot.slane %v2604, %v2611
    %v2614 = vunpack.c.l.s4 1934713408
    %v2615 = vunpack.c.0.s8 %v2614
    %v2616 = vlaneseq
    %v2617 = vshrl.u32 %v2616, 7
    %v2618 = vsub.s32 %v2615, %v2617
    %v2619 = vrot.slane %v2605, %v2618
    %v2620 = vcombine.high %v2612, 0
    %v2621 = vcombine.high %v2619, 0
    %v2624 = vunpack.c.l.s4 1983009808
    %v2625 = vunpack.c.0.s8 %v2624
    %v2626 = vlaneseq
    %v2627 = vshrl.u32 %v2626, 7
    %v2628 = vsub.s32 %v2625, %v2627
    %v2629 = vrot.slane %v2544, %v2628
    %v2632 = vunpack.c.l.s4 1983009808
    %v2633 = vunpack.c.0.s8 %v2632
    %v2634 = vlaneseq
    %v2635 = vshrl.u32 %v2634, 7
    %v2636 = vsub.s32 %v2633, %v2635
    %v2637 = vrot.slane %v2550, %v2636
    %v2638 = vcombine.low %v2629, %v2637
    %v2639 = vcombine.high %v2629, %v2637
    %v2641 = vunpack.c.l.s4 1934713408
    %v2642 = vunpack.c.0.s8 %v2641
    %v2643 = vlaneseq
    %v2644 = vshrl.u32 %v2643, 7
    %v2645 = vsub.s32 %v2642, %v2644
    %v2646 = vrot.slane %v2638, %v2645
    %v2648 = vunpack.c.l.s4 1934713408
    %v2649 = vunpack.c.0.s8 %v2648
    %v2650 = vlaneseq
    %v2651 = vshrl.u32 %v2650, 7
    %v2652 = vsub.s32 %v2649, %v2651
    %v2653 = vrot.slane %v2639, %v2652
    %v2654 = vcombine.high %v2646, 0
    %v2655 = vcombine.high %v2653, 0
    %v2658 = vunpack.c.l.s4 1983009808
    %v2659 = vunpack.c.0.s8 %v2658
    %v2660 = vlaneseq
    %v2661 = vshrl.u32 %v2660, 7
    %v2662 = vsub.s32 %v2659, %v2661
    %v2663 = vrot.slane %v2547, %v2662
    %v2666 = vunpack.c.l.s4 1983009808
    %v2667 = vunpack.c.0.s8 %v2666
    %v2668 = vlaneseq
    %v2669 = vshrl.u32 %v2668, 7
    %v2670 = vsub.s32 %v2667, %v2669
    %v2671 = vrot.slane %v2553, %v2670
    %v2672 = vcombine.low %v2663, %v2671
    %v2673 = vcombine.high %v2663, %v2671
    %v2675 = vunpack.c.l.s4 1934713408
    %v2676 = vunpack.c.0.s8 %v2675
    %v2677 = vlaneseq
    %v2678 = vshrl.u32 %v2677, 7
    %v2679 = vsub.s32 %v2676, %v2678
    %v2680 = vrot.slane %v2672, %v2679
    %v2682 = vunpack.c.l.s4 1934713408
    %v2683 = vunpack.c.0.s8 %v2682
    %v2684 = vlaneseq
    %v2685 = vshrl.u32 %v2684, 7
    %v2686 = vsub.s32 %v2683, %v2685
    %v2687 = vrot.slane %v2673, %v2686
    %v2688 = vcombine.high %v2680, 0
    %v2689 = vcombine.high %v2687, 0
    %v2691 = vunpack.c.l.b16 %v2612
    %v2692 = vpack.c.b16 %v2691, %v2691
    %2693 = vrot.lane.b32.xlu0 %v2692, 16
    %v2694 = vpop.permute.xlu0 %2693
    %v2696 = vunpack.c.l.b16 %v2586
    %v2697 = vpack.c.b16 %v2696, %v2696
    %2698 = vrot.lane.b32.xlu0 %v2697, 32
    %v2699 = vpop.permute.xlu0 %2698
    %v2701 = vunpack.c.l.b16 %v2620
    %v2702 = vpack.c.b16 %v2701, %v2701
    %2703 = vrot.lane.b32.xlu0 %v2702, 48
    %v2704 = vpop.permute.xlu0 %2703
    %v2706 = vunpack.c.l.b16 %v2585
    %v2707 = vpack.c.b16 %v2706, %v2706
    %2708 = vrot.lane.b32.xlu0 %v2707, 64
    %v2709 = vpop.permute.xlu0 %2708
    %v2711 = vunpack.c.l.b16 %v2619
    %v2712 = vpack.c.b16 %v2711, %v2711
    %2713 = vrot.lane.b32.xlu0 %v2712, 80
    %v2714 = vpop.permute.xlu0 %2713
    %v2716 = vunpack.c.l.b16 %v2587
    %v2717 = vpack.c.b16 %v2716, %v2716
    %2718 = vrot.lane.b32.xlu0 %v2717, 96
    %v2719 = vpop.permute.xlu0 %2718
    %v2721 = vunpack.c.l.b16 %v2621
    %v2722 = vpack.c.b16 %v2721, %v2721
    %2723 = vrot.lane.b32.xlu0 %v2722, 112
    %v2724 = vpop.permute.xlu0 %2723
    %v2726 = vunpack.c.l.b16 %v2680
    %v2727 = vpack.c.b16 %v2726, %v2726
    %2728 = vrot.lane.b32.xlu0 %v2727, 16
    %v2729 = vpop.permute.xlu0 %2728
    %v2731 = vunpack.c.l.b16 %v2654
    %v2732 = vpack.c.b16 %v2731, %v2731
    %2733 = vrot.lane.b32.xlu0 %v2732, 32
    %v2734 = vpop.permute.xlu0 %2733
    %v2736 = vunpack.c.l.b16 %v2688
    %v2737 = vpack.c.b16 %v2736, %v2736
    %2738 = vrot.lane.b32.xlu0 %v2737, 48
    %v2739 = vpop.permute.xlu0 %2738
    %v2741 = vunpack.c.l.b16 %v2653
    %v2742 = vpack.c.b16 %v2741, %v2741
    %2743 = vrot.lane.b32.xlu0 %v2742, 64
    %v2744 = vpop.permute.xlu0 %2743
    %v2746 = vunpack.c.l.b16 %v2687
    %v2747 = vpack.c.b16 %v2746, %v2746
    %2748 = vrot.lane.b32.xlu0 %v2747, 80
    %v2749 = vpop.permute.xlu0 %2748
    %v2751 = vunpack.c.l.b16 %v2655
    %v2752 = vpack.c.b16 %v2751, %v2751
    %2753 = vrot.lane.b32.xlu0 %v2752, 96
    %v2754 = vpop.permute.xlu0 %2753
    %v2756 = vunpack.c.l.b16 %v2689
    %v2757 = vpack.c.b16 %v2756, %v2756
    %2758 = vrot.lane.b32.xlu0 %v2757, 112
    %v2759 = vpop.permute.xlu0 %2758
    %v2762 = vsel %vm673, %v2578, %v2694
    %v2764 = vsel %vm677, %v2762, %v2699
    %v2766 = vsel %vm680, %v2764, %v2704
    %v2768 = vsel %vm683, %v2766, %v2709
    %v2770 = vsel %vm686, %v2768, %v2714
    %v2772 = vsel %vm689, %v2770, %v2719
    %v2774 = vsel %vm692, %v2772, %v2724
    %v2777 = vsel %vm673, %v2646, %v2729
    %v2779 = vsel %vm677, %v2777, %v2734
    %v2781 = vsel %vm680, %v2779, %v2739
    %v2783 = vsel %vm683, %v2781, %v2744
    %v2785 = vsel %vm686, %v2783, %v2749
    %v2787 = vsel %vm689, %v2785, %v2754
    %v2789 = vsel %vm692, %v2787, %v2759
    %v2792 = vunpack.c.l.b16 %v2774
    %v2793 = vunpack.c.l.b16 %v2789
    %v2794 = vpack.c.b16 %v2793, %v2792
    %2796 = vst [vmem:[#allocation3 + $0xc0] sm:$0x33] %v2794
    %v2797 = vld [vmem:[#allocation2] sm:$0xe]
    %v2798 = vld [vmem:[#allocation2 + $0x4] sm:$0xf]
    %v2799 = vld [vmem:[#allocation2 + $0x8] sm:$0x1]
    %v2800 = vld [vmem:[#allocation2 + $0xc] sm:$0xe]
    %v2801 = vld [vmem:[#allocation2 + $0x10] sm:$0xf]
    %v2802 = vld [vmem:[#allocation2 + $0x14] sm:$0x1]
    %v2803 = vld [vmem:[#allocation2 + $0x18] sm:$0xe]
    %v2804 = vld [vmem:[#allocation2 + $0x1c] sm:$0xf]
    %v2805 = vld [vmem:[#allocation2 + $0x20] sm:$0x1]
    %v2806 = vld [vmem:[#allocation2 + $0x24] sm:$0xe]
    %v2807 = vld [vmem:[#allocation2 + $0x28] sm:$0xf]
    %v2808 = vld [vmem:[#allocation2 + $0x2c] sm:$0x1]
    %v2821 = vrot.slane %v2797, 5
    %v2822 = vrot.slane %v2821, 4
    %v2823 = vrot.slane %v2798, 5
    %v2824 = vsel %vm2501, %v2822, %v2823
    %v2825 = vrot.slane %v2823, 4
    %v2826 = vrot.slane %v2799, 5
    %v2827 = vsel %vm2501, %v2825, %v2826
    %v2828 = vrot.slane %v2800, 5
    %v2829 = vrot.slane %v2828, 4
    %v2830 = vrot.slane %v2801, 5
    %v2831 = vsel %vm2501, %v2829, %v2830
    %v2832 = vrot.slane %v2830, 4
    %v2833 = vrot.slane %v2802, 5
    %v2834 = vsel %vm2501, %v2832, %v2833
    %v2835 = vrot.slane %v2803, 5
    %v2836 = vrot.slane %v2835, 4
    %v2837 = vrot.slane %v2804, 5
    %v2838 = vsel %vm2501, %v2836, %v2837
    %v2839 = vrot.slane %v2837, 4
    %v2840 = vrot.slane %v2805, 5
    %v2841 = vsel %vm2501, %v2839, %v2840
    %v2842 = vrot.slane %v2806, 5
    %v2843 = vrot.slane %v2842, 4
    %v2844 = vrot.slane %v2807, 5
    %v2845 = vsel %vm2501, %v2843, %v2844
    %v2846 = vrot.slane %v2844, 4
    %v2847 = vrot.slane %v2808, 5
    %v2848 = vsel %vm2501, %v2846, %v2847
    %2849 = vrot.lane.b32.xlu0 %v2824, 127
    %v2850 = vpop.permute.xlu0 %2849
    %2851 = vrot.lane.b32.xlu0 %v2827, 127
    %v2852 = vpop.permute.xlu0 %2851
    %2853 = vrot.lane.b32.xlu0 %v2831, 127
    %v2854 = vpop.permute.xlu0 %2853
    %2855 = vrot.lane.b32.xlu0 %v2834, 127
    %v2856 = vpop.permute.xlu0 %2855
    %2857 = vrot.lane.b32.xlu0 %v2838, 127
    %v2858 = vpop.permute.xlu0 %2857
    %2859 = vrot.lane.b32.xlu0 %v2841, 127
    %v2860 = vpop.permute.xlu0 %2859
    %2861 = vrot.lane.b32.xlu0 %v2845, 127
    %v2862 = vpop.permute.xlu0 %2861
    %2863 = vrot.lane.b32.xlu0 %v2848, 127
    %v2864 = vpop.permute.xlu0 %2863
    %v2867 = vpack.i.b16 %v2854, %v2850
    %v2868 = vshrl.u32 %v2850, 16
    %v2869 = vshrl.u32 %v2854, 16
    %v2870 = vpack.i.b16 %v2869, %v2868
    %v2873 = vpack.i.b16 %v2862, %v2858
    %v2874 = vshrl.u32 %v2858, 16
    %v2875 = vshrl.u32 %v2862, 16
    %v2876 = vpack.i.b16 %v2875, %v2874
    %v2879 = vpack.i.b16 %v2856, %v2852
    %v2880 = vshrl.u32 %v2852, 16
    %v2881 = vshrl.u32 %v2856, 16
    %v2882 = vpack.i.b16 %v2881, %v2880
    %v2885 = vpack.i.b16 %v2864, %v2860
    %v2886 = vshrl.u32 %v2860, 16
    %v2887 = vshrl.u32 %v2864, 16
    %v2888 = vpack.i.b16 %v2887, %v2886
    %v2891 = vunpack.c.l.s4 1983009808
    %v2892 = vunpack.c.0.s8 %v2891
    %v2893 = vlaneseq
    %v2894 = vshrl.u32 %v2893, 7
    %v2895 = vsub.s32 %v2892, %v2894
    %v2896 = vrot.slane %v2867, %v2895
    %v2899 = vunpack.c.l.s4 1983009808
    %v2900 = vunpack.c.0.s8 %v2899
    %v2901 = vlaneseq
    %v2902 = vshrl.u32 %v2901, 7
    %v2903 = vsub.s32 %v2900, %v2902
    %v2904 = vrot.slane %v2873, %v2903
    %v2905 = vcombine.low %v2896, %v2904
    %v2906 = vcombine.high %v2896, %v2904
    %v2908 = vunpack.c.l.s4 1934713408
    %v2909 = vunpack.c.0.s8 %v2908
    %v2910 = vlaneseq
    %v2911 = vshrl.u32 %v2910, 7
    %v2912 = vsub.s32 %v2909, %v2911
    %v2913 = vrot.slane %v2905, %v2912
    %v2915 = vunpack.c.l.s4 1934713408
    %v2916 = vunpack.c.0.s8 %v2915
    %v2917 = vlaneseq
    %v2918 = vshrl.u32 %v2917, 7
    %v2919 = vsub.s32 %v2916, %v2918
    %v2920 = vrot.slane %v2906, %v2919
    %v2921 = vcombine.high %v2913, 0
    %v2922 = vcombine.high %v2920, 0
    %v2925 = vunpack.c.l.s4 1983009808
    %v2926 = vunpack.c.0.s8 %v2925
    %v2927 = vlaneseq
    %v2928 = vshrl.u32 %v2927, 7
    %v2929 = vsub.s32 %v2926, %v2928
    %v2930 = vrot.slane %v2870, %v2929
    %v2933 = vunpack.c.l.s4 1983009808
    %v2934 = vunpack.c.0.s8 %v2933
    %v2935 = vlaneseq
    %v2936 = vshrl.u32 %v2935, 7
    %v2937 = vsub.s32 %v2934, %v2936
    %v2938 = vrot.slane %v2876, %v2937
    %v2939 = vcombine.low %v2930, %v2938
    %v2940 = vcombine.high %v2930, %v2938
    %v2942 = vunpack.c.l.s4 1934713408
    %v2943 = vunpack.c.0.s8 %v2942
    %v2944 = vlaneseq
    %v2945 = vshrl.u32 %v2944, 7
    %v2946 = vsub.s32 %v2943, %v2945
    %v2947 = vrot.slane %v2939, %v2946
    %v2949 = vunpack.c.l.s4 1934713408
    %v2950 = vunpack.c.0.s8 %v2949
    %v2951 = vlaneseq
    %v2952 = vshrl.u32 %v2951, 7
    %v2953 = vsub.s32 %v2950, %v2952
    %v2954 = vrot.slane %v2940, %v2953
    %v2955 = vcombine.high %v2947, 0
    %v2956 = vcombine.high %v2954, 0
    %v2959 = vunpack.c.l.s4 1983009808
    %v2960 = vunpack.c.0.s8 %v2959
    %v2961 = vlaneseq
    %v2962 = vshrl.u32 %v2961, 7
    %v2963 = vsub.s32 %v2960, %v2962
    %v2964 = vrot.slane %v2879, %v2963
    %v2967 = vunpack.c.l.s4 1983009808
    %v2968 = vunpack.c.0.s8 %v2967
    %v2969 = vlaneseq
    %v2970 = vshrl.u32 %v2969, 7
    %v2971 = vsub.s32 %v2968, %v2970
    %v2972 = vrot.slane %v2885, %v2971
    %v2973 = vcombine.low %v2964, %v2972
    %v2974 = vcombine.high %v2964, %v2972
    %v2976 = vunpack.c.l.s4 1934713408
    %v2977 = vunpack.c.0.s8 %v2976
    %v2978 = vlaneseq
    %v2979 = vshrl.u32 %v2978, 7
    %v2980 = vsub.s32 %v2977, %v2979
    %v2981 = vrot.slane %v2973, %v2980
    %v2983 = vunpack.c.l.s4 1934713408
    %v2984 = vunpack.c.0.s8 %v2983
    %v2985 = vlaneseq
    %v2986 = vshrl.u32 %v2985, 7
    %v2987 = vsub.s32 %v2984, %v2986
    %v2988 = vrot.slane %v2974, %v2987
    %v2989 = vcombine.high %v2981, 0
    %v2990 = vcombine.high %v2988, 0
    %v2993 = vunpack.c.l.s4 1983009808
    %v2994 = vunpack.c.0.s8 %v2993
    %v2995 = vlaneseq
    %v2996 = vshrl.u32 %v2995, 7
    %v2997 = vsub.s32 %v2994, %v2996
    %v2998 = vrot.slane %v2882, %v2997
    %v3001 = vunpack.c.l.s4 1983009808
    %v3002 = vunpack.c.0.s8 %v3001
    %v3003 = vlaneseq
    %v3004 = vshrl.u32 %v3003, 7
    %v3005 = vsub.s32 %v3002, %v3004
    %v3006 = vrot.slane %v2888, %v3005
    %v3007 = vcombine.low %v2998, %v3006
    %v3008 = vcombine.high %v2998, %v3006
    %v3010 = vunpack.c.l.s4 1934713408
    %v3011 = vunpack.c.0.s8 %v3010
    %v3012 = vlaneseq
    %v3013 = vshrl.u32 %v3012, 7
    %v3014 = vsub.s32 %v3011, %v3013
    %v3015 = vrot.slane %v3007, %v3014
    %v3017 = vunpack.c.l.s4 1934713408
    %v3018 = vunpack.c.0.s8 %v3017
    %v3019 = vlaneseq
    %v3020 = vshrl.u32 %v3019, 7
    %v3021 = vsub.s32 %v3018, %v3020
    %v3022 = vrot.slane %v3008, %v3021
    %v3023 = vcombine.high %v3015, 0
    %v3024 = vcombine.high %v3022, 0
    %v3026 = vunpack.c.l.b16 %v2947
    %v3027 = vpack.c.b16 %v3026, %v3026
    %3028 = vrot.lane.b32.xlu0 %v3027, 16
    %v3029 = vpop.permute.xlu0 %3028
    %v3031 = vunpack.c.l.b16 %v2921
    %v3032 = vpack.c.b16 %v3031, %v3031
    %3033 = vrot.lane.b32.xlu0 %v3032, 32
    %v3034 = vpop.permute.xlu0 %3033
    %v3036 = vunpack.c.l.b16 %v2955
    %v3037 = vpack.c.b16 %v3036, %v3036
    %3038 = vrot.lane.b32.xlu0 %v3037, 48
    %v3039 = vpop.permute.xlu0 %3038
    %v3041 = vunpack.c.l.b16 %v2920
    %v3042 = vpack.c.b16 %v3041, %v3041
    %3043 = vrot.lane.b32.xlu0 %v3042, 64
    %v3044 = vpop.permute.xlu0 %3043
    %v3046 = vunpack.c.l.b16 %v2954
    %v3047 = vpack.c.b16 %v3046, %v3046
    %3048 = vrot.lane.b32.xlu0 %v3047, 80
    %v3049 = vpop.permute.xlu0 %3048
    %v3051 = vunpack.c.l.b16 %v2922
    %v3052 = vpack.c.b16 %v3051, %v3051
    %3053 = vrot.lane.b32.xlu0 %v3052, 96
    %v3054 = vpop.permute.xlu0 %3053
    %v3056 = vunpack.c.l.b16 %v2956
    %v3057 = vpack.c.b16 %v3056, %v3056
    %3058 = vrot.lane.b32.xlu0 %v3057, 112
    %v3059 = vpop.permute.xlu0 %3058
    %v3061 = vunpack.c.l.b16 %v3015
    %v3062 = vpack.c.b16 %v3061, %v3061
    %3063 = vrot.lane.b32.xlu0 %v3062, 16
    %v3064 = vpop.permute.xlu0 %3063
    %v3066 = vunpack.c.l.b16 %v2989
    %v3067 = vpack.c.b16 %v3066, %v3066
    %3068 = vrot.lane.b32.xlu0 %v3067, 32
    %v3069 = vpop.permute.xlu0 %3068
    %v3071 = vunpack.c.l.b16 %v3023
    %v3072 = vpack.c.b16 %v3071, %v3071
    %3073 = vrot.lane.b32.xlu0 %v3072, 48
    %v3074 = vpop.permute.xlu0 %3073
    %v3076 = vunpack.c.l.b16 %v2988
    %v3077 = vpack.c.b16 %v3076, %v3076
    %3078 = vrot.lane.b32.xlu0 %v3077, 64
    %v3079 = vpop.permute.xlu0 %3078
    %v3081 = vunpack.c.l.b16 %v3022
    %v3082 = vpack.c.b16 %v3081, %v3081
    %3083 = vrot.lane.b32.xlu0 %v3082, 80
    %v3084 = vpop.permute.xlu0 %3083
    %v3086 = vunpack.c.l.b16 %v2990
    %v3087 = vpack.c.b16 %v3086, %v3086
    %3088 = vrot.lane.b32.xlu0 %v3087, 96
    %v3089 = vpop.permute.xlu0 %3088
    %v3091 = vunpack.c.l.b16 %v3024
    %v3092 = vpack.c.b16 %v3091, %v3091
    %3093 = vrot.lane.b32.xlu0 %v3092, 112
    %v3094 = vpop.permute.xlu0 %3093
    %v3097 = vsel %vm673, %v2913, %v3029
    %v3099 = vsel %vm677, %v3097, %v3034
    %v3101 = vsel %vm680, %v3099, %v3039
    %v3103 = vsel %vm683, %v3101, %v3044
    %v3105 = vsel %vm686, %v3103, %v3049
    %v3107 = vsel %vm689, %v3105, %v3054
    %v3109 = vsel %vm692, %v3107, %v3059
    %v3112 = vsel %vm673, %v2981, %v3064
    %v3114 = vsel %vm677, %v3112, %v3069
    %v3116 = vsel %vm680, %v3114, %v3074
    %v3118 = vsel %vm683, %v3116, %v3079
    %v3120 = vsel %vm686, %v3118, %v3084
    %v3122 = vsel %vm689, %v3120, %v3089
    %v3124 = vsel %vm692, %v3122, %v3094
    %v3127 = vunpack.c.l.b16 %v3109
    %v3128 = vunpack.c.l.b16 %v3124
    %v3129 = vpack.c.b16 %v3128, %v3127
    %3131 = vst [vmem:[#allocation3 + $0xe0] sm:$0x33] %v3129
    %v3132 = vld [vmem:[#allocation2] sm:$0xe]
    %v3133 = vld [vmem:[#allocation2 + $0x4] sm:$0xf]
    %v3134 = vld [vmem:[#allocation2 + $0x8] sm:$0x1]
    %v3135 = vld [vmem:[#allocation2 + $0xc] sm:$0xe]
    %v3136 = vld [vmem:[#allocation2 + $0x10] sm:$0xf]
    %v3137 = vld [vmem:[#allocation2 + $0x14] sm:$0x1]
    %v3138 = vld [vmem:[#allocation2 + $0x18] sm:$0xe]
    %v3139 = vld [vmem:[#allocation2 + $0x1c] sm:$0xf]
    %v3140 = vld [vmem:[#allocation2 + $0x20] sm:$0x1]
    %v3141 = vld [vmem:[#allocation2 + $0x24] sm:$0xe]
    %v3142 = vld [vmem:[#allocation2 + $0x28] sm:$0xf]
    %v3143 = vld [vmem:[#allocation2 + $0x2c] sm:$0x1]
    %v3156 = vrot.slane %v3132, 5
    %v3157 = vrot.slane %v3156, 4
    %v3158 = vrot.slane %v3133, 5
    %v3159 = vsel %vm2501, %v3157, %v3158
    %v3160 = vrot.slane %v3158, 4
    %v3161 = vrot.slane %v3134, 5
    %v3162 = vsel %vm2501, %v3160, %v3161
    %v3163 = vrot.slane %v3135, 5
    %v3164 = vrot.slane %v3163, 4
    %v3165 = vrot.slane %v3136, 5
    %v3166 = vsel %vm2501, %v3164, %v3165
    %v3167 = vrot.slane %v3165, 4
    %v3168 = vrot.slane %v3137, 5
    %v3169 = vsel %vm2501, %v3167, %v3168
    %v3170 = vrot.slane %v3138, 5
    %v3171 = vrot.slane %v3170, 4
    %v3172 = vrot.slane %v3139, 5
    %v3173 = vsel %vm2501, %v3171, %v3172
    %v3174 = vrot.slane %v3172, 4
    %v3175 = vrot.slane %v3140, 5
    %v3176 = vsel %vm2501, %v3174, %v3175
    %v3177 = vrot.slane %v3141, 5
    %v3178 = vrot.slane %v3177, 4
    %v3179 = vrot.slane %v3142, 5
    %v3180 = vsel %vm2501, %v3178, %v3179
    %v3181 = vrot.slane %v3179, 4
    %v3182 = vrot.slane %v3143, 5
    %v3183 = vsel %vm2501, %v3181, %v3182
    %3184 = vrot.lane.b32.xlu0 %v3159, 126
    %v3185 = vpop.permute.xlu0 %3184
    %3186 = vrot.lane.b32.xlu0 %v3162, 126
    %v3187 = vpop.permute.xlu0 %3186
    %3188 = vrot.lane.b32.xlu0 %v3166, 126
    %v3189 = vpop.permute.xlu0 %3188
    %3190 = vrot.lane.b32.xlu0 %v3169, 126
    %v3191 = vpop.permute.xlu0 %3190
    %3192 = vrot.lane.b32.xlu0 %v3173, 126
    %v3193 = vpop.permute.xlu0 %3192
    %3194 = vrot.lane.b32.xlu0 %v3176, 126
    %v3195 = vpop.permute.xlu0 %3194
    %3196 = vrot.lane.b32.xlu0 %v3180, 126
    %v3197 = vpop.permute.xlu0 %3196
    %3198 = vrot.lane.b32.xlu0 %v3183, 126
    %v3199 = vpop.permute.xlu0 %3198
    %v3202 = vpack.i.b16 %v3189, %v3185
    %v3203 = vshrl.u32 %v3185, 16
    %v3204 = vshrl.u32 %v3189, 16
    %v3205 = vpack.i.b16 %v3204, %v3203
    %v3208 = vpack.i.b16 %v3197, %v3193
    %v3209 = vshrl.u32 %v3193, 16
    %v3210 = vshrl.u32 %v3197, 16
    %v3211 = vpack.i.b16 %v3210, %v3209
    %v3214 = vpack.i.b16 %v3191, %v3187
    %v3215 = vshrl.u32 %v3187, 16
    %v3216 = vshrl.u32 %v3191, 16
    %v3217 = vpack.i.b16 %v3216, %v3215
    %v3220 = vpack.i.b16 %v3199, %v3195
    %v3221 = vshrl.u32 %v3195, 16
    %v3222 = vshrl.u32 %v3199, 16
    %v3223 = vpack.i.b16 %v3222, %v3221
    %v3226 = vunpack.c.l.s4 1983009808
    %v3227 = vunpack.c.0.s8 %v3226
    %v3228 = vlaneseq
    %v3229 = vshrl.u32 %v3228, 7
    %v3230 = vsub.s32 %v3227, %v3229
    %v3231 = vrot.slane %v3202, %v3230
    %v3234 = vunpack.c.l.s4 1983009808
    %v3235 = vunpack.c.0.s8 %v3234
    %v3236 = vlaneseq
    %v3237 = vshrl.u32 %v3236, 7
    %v3238 = vsub.s32 %v3235, %v3237
    %v3239 = vrot.slane %v3208, %v3238
    %v3240 = vcombine.low %v3231, %v3239
    %v3241 = vcombine.high %v3231, %v3239
    %v3243 = vunpack.c.l.s4 1934713408
    %v3244 = vunpack.c.0.s8 %v3243
    %v3245 = vlaneseq
    %v3246 = vshrl.u32 %v3245, 7
    %v3247 = vsub.s32 %v3244, %v3246
    %v3248 = vrot.slane %v3240, %v3247
    %v3250 = vunpack.c.l.s4 1934713408
    %v3251 = vunpack.c.0.s8 %v3250
    %v3252 = vlaneseq
    %v3253 = vshrl.u32 %v3252, 7
    %v3254 = vsub.s32 %v3251, %v3253
    %v3255 = vrot.slane %v3241, %v3254
    %v3256 = vcombine.high %v3248, 0
    %v3257 = vcombine.high %v3255, 0
    %v3260 = vunpack.c.l.s4 1983009808
    %v3261 = vunpack.c.0.s8 %v3260
    %v3262 = vlaneseq
    %v3263 = vshrl.u32 %v3262, 7
    %v3264 = vsub.s32 %v3261, %v3263
    %v3265 = vrot.slane %v3205, %v3264
    %v3268 = vunpack.c.l.s4 1983009808
    %v3269 = vunpack.c.0.s8 %v3268
    %v3270 = vlaneseq
    %v3271 = vshrl.u32 %v3270, 7
    %v3272 = vsub.s32 %v3269, %v3271
    %v3273 = vrot.slane %v3211, %v3272
    %v3274 = vcombine.low %v3265, %v3273
    %v3275 = vcombine.high %v3265, %v3273
    %v3277 = vunpack.c.l.s4 1934713408
    %v3278 = vunpack.c.0.s8 %v3277
    %v3279 = vlaneseq
    %v3280 = vshrl.u32 %v3279, 7
    %v3281 = vsub.s32 %v3278, %v3280
    %v3282 = vrot.slane %v3274, %v3281
    %v3284 = vunpack.c.l.s4 1934713408
    %v3285 = vunpack.c.0.s8 %v3284
    %v3286 = vlaneseq
    %v3287 = vshrl.u32 %v3286, 7
    %v3288 = vsub.s32 %v3285, %v3287
    %v3289 = vrot.slane %v3275, %v3288
    %v3290 = vcombine.high %v3282, 0
    %v3291 = vcombine.high %v3289, 0
    %v3294 = vunpack.c.l.s4 1983009808
    %v3295 = vunpack.c.0.s8 %v3294
    %v3296 = vlaneseq
    %v3297 = vshrl.u32 %v3296, 7
    %v3298 = vsub.s32 %v3295, %v3297
    %v3299 = vrot.slane %v3214, %v3298
    %v3302 = vunpack.c.l.s4 1983009808
    %v3303 = vunpack.c.0.s8 %v3302
    %v3304 = vlaneseq
    %v3305 = vshrl.u32 %v3304, 7
    %v3306 = vsub.s32 %v3303, %v3305
    %v3307 = vrot.slane %v3220, %v3306
    %v3308 = vcombine.low %v3299, %v3307
    %v3309 = vcombine.high %v3299, %v3307
    %v3311 = vunpack.c.l.s4 1934713408
    %v3312 = vunpack.c.0.s8 %v3311
    %v3313 = vlaneseq
    %v3314 = vshrl.u32 %v3313, 7
    %v3315 = vsub.s32 %v3312, %v3314
    %v3316 = vrot.slane %v3308, %v3315
    %v3318 = vunpack.c.l.s4 1934713408
    %v3319 = vunpack.c.0.s8 %v3318
    %v3320 = vlaneseq
    %v3321 = vshrl.u32 %v3320, 7
    %v3322 = vsub.s32 %v3319, %v3321
    %v3323 = vrot.slane %v3309, %v3322
    %v3324 = vcombine.high %v3316, 0
    %v3325 = vcombine.high %v3323, 0
    %v3328 = vunpack.c.l.s4 1983009808
    %v3329 = vunpack.c.0.s8 %v3328
    %v3330 = vlaneseq
    %v3331 = vshrl.u32 %v3330, 7
    %v3332 = vsub.s32 %v3329, %v3331
    %v3333 = vrot.slane %v3217, %v3332
    %v3336 = vunpack.c.l.s4 1983009808
    %v3337 = vunpack.c.0.s8 %v3336
    %v3338 = vlaneseq
    %v3339 = vshrl.u32 %v3338, 7
    %v3340 = vsub.s32 %v3337, %v3339
    %v3341 = vrot.slane %v3223, %v3340
    %v3342 = vcombine.low %v3333, %v3341
    %v3343 = vcombine.high %v3333, %v3341
    %v3345 = vunpack.c.l.s4 1934713408
    %v3346 = vunpack.c.0.s8 %v3345
    %v3347 = vlaneseq
    %v3348 = vshrl.u32 %v3347, 7
    %v3349 = vsub.s32 %v3346, %v3348
    %v3350 = vrot.slane %v3342, %v3349
    %v3352 = vunpack.c.l.s4 1934713408
    %v3353 = vunpack.c.0.s8 %v3352
    %v3354 = vlaneseq
    %v3355 = vshrl.u32 %v3354, 7
    %v3356 = vsub.s32 %v3353, %v3355
    %v3357 = vrot.slane %v3343, %v3356
    %v3358 = vcombine.high %v3350, 0
    %v3359 = vcombine.high %v3357, 0
    %v3361 = vunpack.c.l.b16 %v3282
    %v3362 = vpack.c.b16 %v3361, %v3361
    %3363 = vrot.lane.b32.xlu0 %v3362, 16
    %v3364 = vpop.permute.xlu0 %3363
    %v3366 = vunpack.c.l.b16 %v3256
    %v3367 = vpack.c.b16 %v3366, %v3366
    %3368 = vrot.lane.b32.xlu0 %v3367, 32
    %v3369 = vpop.permute.xlu0 %3368
    %v3371 = vunpack.c.l.b16 %v3290
    %v3372 = vpack.c.b16 %v3371, %v3371
    %3373 = vrot.lane.b32.xlu0 %v3372, 48
    %v3374 = vpop.permute.xlu0 %3373
    %v3376 = vunpack.c.l.b16 %v3255
    %v3377 = vpack.c.b16 %v3376, %v3376
    %3378 = vrot.lane.b32.xlu0 %v3377, 64
    %v3379 = vpop.permute.xlu0 %3378
    %v3381 = vunpack.c.l.b16 %v3289
    %v3382 = vpack.c.b16 %v3381, %v3381
    %3383 = vrot.lane.b32.xlu0 %v3382, 80
    %v3384 = vpop.permute.xlu0 %3383
    %v3386 = vunpack.c.l.b16 %v3257
    %v3387 = vpack.c.b16 %v3386, %v3386
    %3388 = vrot.lane.b32.xlu0 %v3387, 96
    %v3389 = vpop.permute.xlu0 %3388
    %v3391 = vunpack.c.l.b16 %v3291
    %v3392 = vpack.c.b16 %v3391, %v3391
    %3393 = vrot.lane.b32.xlu0 %v3392, 112
    %v3394 = vpop.permute.xlu0 %3393
    %v3396 = vunpack.c.l.b16 %v3350
    %v3397 = vpack.c.b16 %v3396, %v3396
    %3398 = vrot.lane.b32.xlu0 %v3397, 16
    %v3399 = vpop.permute.xlu0 %3398
    %v3401 = vunpack.c.l.b16 %v3324
    %v3402 = vpack.c.b16 %v3401, %v3401
    %3403 = vrot.lane.b32.xlu0 %v3402, 32
    %v3404 = vpop.permute.xlu0 %3403
    %v3406 = vunpack.c.l.b16 %v3358
    %v3407 = vpack.c.b16 %v3406, %v3406
    %3408 = vrot.lane.b32.xlu0 %v3407, 48
    %v3409 = vpop.permute.xlu0 %3408
    %v3411 = vunpack.c.l.b16 %v3323
    %v3412 = vpack.c.b16 %v3411, %v3411
    %3413 = vrot.lane.b32.xlu0 %v3412, 64
    %v3414 = vpop.permute.xlu0 %3413
    %v3416 = vunpack.c.l.b16 %v3357
    %v3417 = vpack.c.b16 %v3416, %v3416
    %3418 = vrot.lane.b32.xlu0 %v3417, 80
    %v3419 = vpop.permute.xlu0 %3418
    %v3421 = vunpack.c.l.b16 %v3325
    %v3422 = vpack.c.b16 %v3421, %v3421
    %3423 = vrot.lane.b32.xlu0 %v3422, 96
    %v3424 = vpop.permute.xlu0 %3423
    %v3426 = vunpack.c.l.b16 %v3359
    %v3427 = vpack.c.b16 %v3426, %v3426
    %3428 = vrot.lane.b32.xlu0 %v3427, 112
    %v3429 = vpop.permute.xlu0 %3428
    %v3432 = vsel %vm673, %v3248, %v3364
    %v3434 = vsel %vm677, %v3432, %v3369
    %v3436 = vsel %vm680, %v3434, %v3374
    %v3438 = vsel %vm683, %v3436, %v3379
    %v3440 = vsel %vm686, %v3438, %v3384
    %v3442 = vsel %vm689, %v3440, %v3389
    %v3444 = vsel %vm692, %v3442, %v3394
    %v3447 = vsel %vm673, %v3316, %v3399
    %v3449 = vsel %vm677, %v3447, %v3404
    %v3451 = vsel %vm680, %v3449, %v3409
    %v3453 = vsel %vm683, %v3451, %v3414
    %v3455 = vsel %vm686, %v3453, %v3419
    %v3457 = vsel %vm689, %v3455, %v3424
    %v3459 = vsel %vm692, %v3457, %v3429
    %v3462 = vunpack.c.l.b16 %v3444
    %v3463 = vunpack.c.l.b16 %v3459
    %v3464 = vpack.c.b16 %v3463, %v3462
    %3466 = vst [vmem:[#allocation3 + $0x100] sm:$0x33] %v3464
    %v3467 = vld [vmem:[%s406] sm:$0xf]
    %v3468 = vld [vmem:[%s406 + $0x4] sm:$0xf]
    %v3469 = vld [vmem:[%s406 + $0xc] sm:$0xf]
    %v3470 = vld [vmem:[%s406 + $0x10] sm:$0xf]
    %v3471 = vld [vmem:[%s406 + $0x18] sm:$0xf]
    %v3472 = vld [vmem:[%s406 + $0x1c] sm:$0xf]
    %v3473 = vld [vmem:[%s406 + $0x24] sm:$0xf]
    %v3474 = vld [vmem:[%s406 + $0x28] sm:$0xf]
    %v3477 = vpack.i.b16 %v3469, %v3467
    %v3478 = vshrl.u32 %v3467, 16
    %v3479 = vshrl.u32 %v3469, 16
    %v3480 = vpack.i.b16 %v3479, %v3478
    %v3483 = vpack.i.b16 %v3473, %v3471
    %v3484 = vshrl.u32 %v3471, 16
    %v3485 = vshrl.u32 %v3473, 16
    %v3486 = vpack.i.b16 %v3485, %v3484
    %v3489 = vpack.i.b16 %v3470, %v3468
    %v3490 = vshrl.u32 %v3468, 16
    %v3491 = vshrl.u32 %v3470, 16
    %v3492 = vpack.i.b16 %v3491, %v3490
    %v3495 = vpack.i.b16 %v3474, %v3472
    %v3496 = vshrl.u32 %v3472, 16
    %v3497 = vshrl.u32 %v3474, 16
    %v3498 = vpack.i.b16 %v3497, %v3496
    %v3501 = vunpack.c.l.s4 1983009808
    %v3502 = vunpack.c.0.s8 %v3501
    %v3503 = vlaneseq
    %v3504 = vshrl.u32 %v3503, 7
    %v3505 = vsub.s32 %v3502, %v3504
    %v3506 = vrot.slane %v3477, %v3505
    %v3509 = vunpack.c.l.s4 1983009808
    %v3510 = vunpack.c.0.s8 %v3509
    %v3511 = vlaneseq
    %v3512 = vshrl.u32 %v3511, 7
    %v3513 = vsub.s32 %v3510, %v3512
    %v3514 = vrot.slane %v3483, %v3513
    %v3515 = vcombine.low %v3506, %v3514
    %v3516 = vcombine.high %v3506, %v3514
    %v3518 = vunpack.c.l.s4 1934713408
    %v3519 = vunpack.c.0.s8 %v3518
    %v3520 = vlaneseq
    %v3521 = vshrl.u32 %v3520, 7
    %v3522 = vsub.s32 %v3519, %v3521
    %v3523 = vrot.slane %v3515, %v3522
    %v3525 = vunpack.c.l.s4 1934713408
    %v3526 = vunpack.c.0.s8 %v3525
    %v3527 = vlaneseq
    %v3528 = vshrl.u32 %v3527, 7
    %v3529 = vsub.s32 %v3526, %v3528
    %v3530 = vrot.slane %v3516, %v3529
    %v3531 = vcombine.high %v3523, 0
    %v3532 = vcombine.high %v3530, 0
    %v3535 = vunpack.c.l.s4 1983009808
    %v3536 = vunpack.c.0.s8 %v3535
    %v3537 = vlaneseq
    %v3538 = vshrl.u32 %v3537, 7
    %v3539 = vsub.s32 %v3536, %v3538
    %v3540 = vrot.slane %v3480, %v3539
    %v3543 = vunpack.c.l.s4 1983009808
    %v3544 = vunpack.c.0.s8 %v3543
    %v3545 = vlaneseq
    %v3546 = vshrl.u32 %v3545, 7
    %v3547 = vsub.s32 %v3544, %v3546
    %v3548 = vrot.slane %v3486, %v3547
    %v3549 = vcombine.low %v3540, %v3548
    %v3550 = vcombine.high %v3540, %v3548
    %v3552 = vunpack.c.l.s4 1934713408
    %v3553 = vunpack.c.0.s8 %v3552
    %v3554 = vlaneseq
    %v3555 = vshrl.u32 %v3554, 7
    %v3556 = vsub.s32 %v3553, %v3555
    %v3557 = vrot.slane %v3549, %v3556
    %v3559 = vunpack.c.l.s4 1934713408
    %v3560 = vunpack.c.0.s8 %v3559
    %v3561 = vlaneseq
    %v3562 = vshrl.u32 %v3561, 7
    %v3563 = vsub.s32 %v3560, %v3562
    %v3564 = vrot.slane %v3550, %v3563
    %v3565 = vcombine.high %v3557, 0
    %v3566 = vcombine.high %v3564, 0
    %v3569 = vunpack.c.l.s4 1983009808
    %v3570 = vunpack.c.0.s8 %v3569
    %v3571 = vlaneseq
    %v3572 = vshrl.u32 %v3571, 7
    %v3573 = vsub.s32 %v3570, %v3572
    %v3574 = vrot.slane %v3489, %v3573
    %v3577 = vunpack.c.l.s4 1983009808
    %v3578 = vunpack.c.0.s8 %v3577
    %v3579 = vlaneseq
    %v3580 = vshrl.u32 %v3579, 7
    %v3581 = vsub.s32 %v3578, %v3580
    %v3582 = vrot.slane %v3495, %v3581
    %v3583 = vcombine.low %v3574, %v3582
    %v3584 = vcombine.high %v3574, %v3582
    %v3586 = vunpack.c.l.s4 1934713408
    %v3587 = vunpack.c.0.s8 %v3586
    %v3588 = vlaneseq
    %v3589 = vshrl.u32 %v3588, 7
    %v3590 = vsub.s32 %v3587, %v3589
    %v3591 = vrot.slane %v3583, %v3590
    %v3593 = vunpack.c.l.s4 1934713408
    %v3594 = vunpack.c.0.s8 %v3593
    %v3595 = vlaneseq
    %v3596 = vshrl.u32 %v3595, 7
    %v3597 = vsub.s32 %v3594, %v3596
    %v3598 = vrot.slane %v3584, %v3597
    %v3599 = vcombine.high %v3591, 0
    %v3600 = vcombine.high %v3598, 0
    %v3603 = vunpack.c.l.s4 1983009808
    %v3604 = vunpack.c.0.s8 %v3603
    %v3605 = vlaneseq
    %v3606 = vshrl.u32 %v3605, 7
    %v3607 = vsub.s32 %v3604, %v3606
    %v3608 = vrot.slane %v3492, %v3607
    %v3611 = vunpack.c.l.s4 1983009808
    %v3612 = vunpack.c.0.s8 %v3611
    %v3613 = vlaneseq
    %v3614 = vshrl.u32 %v3613, 7
    %v3615 = vsub.s32 %v3612, %v3614
    %v3616 = vrot.slane %v3498, %v3615
    %v3617 = vcombine.low %v3608, %v3616
    %v3618 = vcombine.high %v3608, %v3616
    %v3620 = vunpack.c.l.s4 1934713408
    %v3621 = vunpack.c.0.s8 %v3620
    %v3622 = vlaneseq
    %v3623 = vshrl.u32 %v3622, 7
    %v3624 = vsub.s32 %v3621, %v3623
    %v3625 = vrot.slane %v3617, %v3624
    %v3627 = vunpack.c.l.s4 1934713408
    %v3628 = vunpack.c.0.s8 %v3627
    %v3629 = vlaneseq
    %v3630 = vshrl.u32 %v3629, 7
    %v3631 = vsub.s32 %v3628, %v3630
    %v3632 = vrot.slane %v3618, %v3631
    %v3633 = vcombine.high %v3625, 0
    %v3634 = vcombine.high %v3632, 0
    %v3636 = vunpack.c.l.b16 %v3557
    %v3637 = vpack.c.b16 %v3636, %v3636
    %3638 = vrot.lane.b32.xlu0 %v3637, 16
    %v3639 = vpop.permute.xlu0 %3638
    %v3641 = vunpack.c.l.b16 %v3531
    %v3642 = vpack.c.b16 %v3641, %v3641
    %3643 = vrot.lane.b32.xlu0 %v3642, 32
    %v3644 = vpop.permute.xlu0 %3643
    %v3646 = vunpack.c.l.b16 %v3565
    %v3647 = vpack.c.b16 %v3646, %v3646
    %3648 = vrot.lane.b32.xlu0 %v3647, 48
    %v3649 = vpop.permute.xlu0 %3648
    %v3651 = vunpack.c.l.b16 %v3530
    %v3652 = vpack.c.b16 %v3651, %v3651
    %3653 = vrot.lane.b32.xlu0 %v3652, 64
    %v3654 = vpop.permute.xlu0 %3653
    %v3656 = vunpack.c.l.b16 %v3564
    %v3657 = vpack.c.b16 %v3656, %v3656
    %3658 = vrot.lane.b32.xlu0 %v3657, 80
    %v3659 = vpop.permute.xlu0 %3658
    %v3661 = vunpack.c.l.b16 %v3532
    %v3662 = vpack.c.b16 %v3661, %v3661
    %3663 = vrot.lane.b32.xlu0 %v3662, 96
    %v3664 = vpop.permute.xlu0 %3663
    %v3666 = vunpack.c.l.b16 %v3566
    %v3667 = vpack.c.b16 %v3666, %v3666
    %3668 = vrot.lane.b32.xlu0 %v3667, 112
    %v3669 = vpop.permute.xlu0 %3668
    %v3671 = vunpack.c.l.b16 %v3625
    %v3672 = vpack.c.b16 %v3671, %v3671
    %3673 = vrot.lane.b32.xlu0 %v3672, 16
    %v3674 = vpop.permute.xlu0 %3673
    %v3676 = vunpack.c.l.b16 %v3599
    %v3677 = vpack.c.b16 %v3676, %v3676
    %3678 = vrot.lane.b32.xlu0 %v3677, 32
    %v3679 = vpop.permute.xlu0 %3678
    %v3681 = vunpack.c.l.b16 %v3633
    %v3682 = vpack.c.b16 %v3681, %v3681
    %3683 = vrot.lane.b32.xlu0 %v3682, 48
    %v3684 = vpop.permute.xlu0 %3683
    %v3686 = vunpack.c.l.b16 %v3598
    %v3687 = vpack.c.b16 %v3686, %v3686
    %3688 = vrot.lane.b32.xlu0 %v3687, 64
    %v3689 = vpop.permute.xlu0 %3688
    %v3691 = vunpack.c.l.b16 %v3632
    %v3692 = vpack.c.b16 %v3691, %v3691
    %3693 = vrot.lane.b32.xlu0 %v3692, 80
    %v3694 = vpop.permute.xlu0 %3693
    %v3696 = vunpack.c.l.b16 %v3600
    %v3697 = vpack.c.b16 %v3696, %v3696
    %3698 = vrot.lane.b32.xlu0 %v3697, 96
    %v3699 = vpop.permute.xlu0 %3698
    %v3701 = vunpack.c.l.b16 %v3634
    %v3702 = vpack.c.b16 %v3701, %v3701
    %3703 = vrot.lane.b32.xlu0 %v3702, 112
    %v3704 = vpop.permute.xlu0 %3703
    %v3707 = vsel %vm673, %v3523, %v3639
    %v3709 = vsel %vm677, %v3707, %v3644
    %v3711 = vsel %vm680, %v3709, %v3649
    %v3713 = vsel %vm683, %v3711, %v3654
    %v3715 = vsel %vm686, %v3713, %v3659
    %v3717 = vsel %vm689, %v3715, %v3664
    %v3719 = vsel %vm692, %v3717, %v3669
    %v3722 = vsel %vm673, %v3591, %v3674
    %v3724 = vsel %vm677, %v3722, %v3679
    %v3726 = vsel %vm680, %v3724, %v3684
    %v3728 = vsel %vm683, %v3726, %v3689
    %v3730 = vsel %vm686, %v3728, %v3694
    %v3732 = vsel %vm689, %v3730, %v3699
    %v3734 = vsel %vm692, %v3732, %v3704
    %v3737 = vunpack.c.l.b16 %v3719
    %v3738 = vunpack.c.l.b16 %v3734
    %v3739 = vpack.c.b16 %v3738, %v3737
    %3741 = vst [vmem:[#allocation3 + $0x8] sm:$0x33] %v3739
    %v3742 = vld [vmem:[%s406] sm:$0xf]
    %v3743 = vld [vmem:[%s406 + $0x4] sm:$0xf]
    %v3744 = vld [vmem:[%s406 + $0xc] sm:$0xf]
    %v3745 = vld [vmem:[%s406 + $0x10] sm:$0xf]
    %v3746 = vld [vmem:[%s406 + $0x18] sm:$0xf]
    %v3747 = vld [vmem:[%s406 + $0x1c] sm:$0xf]
    %v3748 = vld [vmem:[%s406 + $0x24] sm:$0xf]
    %v3749 = vld [vmem:[%s406 + $0x28] sm:$0xf]
    %3758 = vrot.lane.b32.xlu0 %v3742, 127
    %v3759 = vpop.permute.xlu0 %3758
    %3760 = vrot.lane.b32.xlu0 %v3743, 127
    %v3761 = vpop.permute.xlu0 %3760
    %3762 = vrot.lane.b32.xlu0 %v3744, 127
    %v3763 = vpop.permute.xlu0 %3762
    %3764 = vrot.lane.b32.xlu0 %v3745, 127
    %v3765 = vpop.permute.xlu0 %3764
    %3766 = vrot.lane.b32.xlu0 %v3746, 127
    %v3767 = vpop.permute.xlu0 %3766
    %3768 = vrot.lane.b32.xlu0 %v3747, 127
    %v3769 = vpop.permute.xlu0 %3768
    %3770 = vrot.lane.b32.xlu0 %v3748, 127
    %v3771 = vpop.permute.xlu0 %3770
    %3772 = vrot.lane.b32.xlu0 %v3749, 127
    %v3773 = vpop.permute.xlu0 %3772
    %v3776 = vpack.i.b16 %v3763, %v3759
    %v3777 = vshrl.u32 %v3759, 16
    %v3778 = vshrl.u32 %v3763, 16
    %v3779 = vpack.i.b16 %v3778, %v3777
    %v3782 = vpack.i.b16 %v3771, %v3767
    %v3783 = vshrl.u32 %v3767, 16
    %v3784 = vshrl.u32 %v3771, 16
    %v3785 = vpack.i.b16 %v3784, %v3783
    %v3788 = vpack.i.b16 %v3765, %v3761
    %v3789 = vshrl.u32 %v3761, 16
    %v3790 = vshrl.u32 %v3765, 16
    %v3791 = vpack.i.b16 %v3790, %v3789
    %v3794 = vpack.i.b16 %v3773, %v3769
    %v3795 = vshrl.u32 %v3769, 16
    %v3796 = vshrl.u32 %v3773, 16
    %v3797 = vpack.i.b16 %v3796, %v3795
    %v3800 = vunpack.c.l.s4 1983009808
    %v3801 = vunpack.c.0.s8 %v3800
    %v3802 = vlaneseq
    %v3803 = vshrl.u32 %v3802, 7
    %v3804 = vsub.s32 %v3801, %v3803
    %v3805 = vrot.slane %v3776, %v3804
    %v3808 = vunpack.c.l.s4 1983009808
    %v3809 = vunpack.c.0.s8 %v3808
    %v3810 = vlaneseq
    %v3811 = vshrl.u32 %v3810, 7
    %v3812 = vsub.s32 %v3809, %v3811
    %v3813 = vrot.slane %v3782, %v3812
    %v3814 = vcombine.low %v3805, %v3813
    %v3815 = vcombine.high %v3805, %v3813
    %v3817 = vunpack.c.l.s4 1934713408
    %v3818 = vunpack.c.0.s8 %v3817
    %v3819 = vlaneseq
    %v3820 = vshrl.u32 %v3819, 7
    %v3821 = vsub.s32 %v3818, %v3820
    %v3822 = vrot.slane %v3814, %v3821
    %v3824 = vunpack.c.l.s4 1934713408
    %v3825 = vunpack.c.0.s8 %v3824
    %v3826 = vlaneseq
    %v3827 = vshrl.u32 %v3826, 7
    %v3828 = vsub.s32 %v3825, %v3827
    %v3829 = vrot.slane %v3815, %v3828
    %v3830 = vcombine.high %v3822, 0
    %v3831 = vcombine.high %v3829, 0
    %v3834 = vunpack.c.l.s4 1983009808
    %v3835 = vunpack.c.0.s8 %v3834
    %v3836 = vlaneseq
    %v3837 = vshrl.u32 %v3836, 7
    %v3838 = vsub.s32 %v3835, %v3837
    %v3839 = vrot.slane %v3779, %v3838
    %v3842 = vunpack.c.l.s4 1983009808
    %v3843 = vunpack.c.0.s8 %v3842
    %v3844 = vlaneseq
    %v3845 = vshrl.u32 %v3844, 7
    %v3846 = vsub.s32 %v3843, %v3845
    %v3847 = vrot.slane %v3785, %v3846
    %v3848 = vcombine.low %v3839, %v3847
    %v3849 = vcombine.high %v3839, %v3847
    %v3851 = vunpack.c.l.s4 1934713408
    %v3852 = vunpack.c.0.s8 %v3851
    %v3853 = vlaneseq
    %v3854 = vshrl.u32 %v3853, 7
    %v3855 = vsub.s32 %v3852, %v3854
    %v3856 = vrot.slane %v3848, %v3855
    %v3858 = vunpack.c.l.s4 1934713408
    %v3859 = vunpack.c.0.s8 %v3858
    %v3860 = vlaneseq
    %v3861 = vshrl.u32 %v3860, 7
    %v3862 = vsub.s32 %v3859, %v3861
    %v3863 = vrot.slane %v3849, %v3862
    %v3864 = vcombine.high %v3856, 0
    %v3865 = vcombine.high %v3863, 0
    %v3868 = vunpack.c.l.s4 1983009808
    %v3869 = vunpack.c.0.s8 %v3868
    %v3870 = vlaneseq
    %v3871 = vshrl.u32 %v3870, 7
    %v3872 = vsub.s32 %v3869, %v3871
    %v3873 = vrot.slane %v3788, %v3872
    %v3876 = vunpack.c.l.s4 1983009808
    %v3877 = vunpack.c.0.s8 %v3876
    %v3878 = vlaneseq
    %v3879 = vshrl.u32 %v3878, 7
    %v3880 = vsub.s32 %v3877, %v3879
    %v3881 = vrot.slane %v3794, %v3880
    %v3882 = vcombine.low %v3873, %v3881
    %v3883 = vcombine.high %v3873, %v3881
    %v3885 = vunpack.c.l.s4 1934713408
    %v3886 = vunpack.c.0.s8 %v3885
    %v3887 = vlaneseq
    %v3888 = vshrl.u32 %v3887, 7
    %v3889 = vsub.s32 %v3886, %v3888
    %v3890 = vrot.slane %v3882, %v3889
    %v3892 = vunpack.c.l.s4 1934713408
    %v3893 = vunpack.c.0.s8 %v3892
    %v3894 = vlaneseq
    %v3895 = vshrl.u32 %v3894, 7
    %v3896 = vsub.s32 %v3893, %v3895
    %v3897 = vrot.slane %v3883, %v3896
    %v3898 = vcombine.high %v3890, 0
    %v3899 = vcombine.high %v3897, 0
    %v3902 = vunpack.c.l.s4 1983009808
    %v3903 = vunpack.c.0.s8 %v3902
    %v3904 = vlaneseq
    %v3905 = vshrl.u32 %v3904, 7
    %v3906 = vsub.s32 %v3903, %v3905
    %v3907 = vrot.slane %v3791, %v3906
    %v3910 = vunpack.c.l.s4 1983009808
    %v3911 = vunpack.c.0.s8 %v3910
    %v3912 = vlaneseq
    %v3913 = vshrl.u32 %v3912, 7
    %v3914 = vsub.s32 %v3911, %v3913
    %v3915 = vrot.slane %v3797, %v3914
    %v3916 = vcombine.low %v3907, %v3915
    %v3917 = vcombine.high %v3907, %v3915
    %v3919 = vunpack.c.l.s4 1934713408
    %v3920 = vunpack.c.0.s8 %v3919
    %v3921 = vlaneseq
    %v3922 = vshrl.u32 %v3921, 7
    %v3923 = vsub.s32 %v3920, %v3922
    %v3924 = vrot.slane %v3916, %v3923
    %v3926 = vunpack.c.l.s4 1934713408
    %v3927 = vunpack.c.0.s8 %v3926
    %v3928 = vlaneseq
    %v3929 = vshrl.u32 %v3928, 7
    %v3930 = vsub.s32 %v3927, %v3929
    %v3931 = vrot.slane %v3917, %v3930
    %v3932 = vcombine.high %v3924, 0
    %v3933 = vcombine.high %v3931, 0
    %v3935 = vunpack.c.l.b16 %v3856
    %v3936 = vpack.c.b16 %v3935, %v3935
    %3937 = vrot.lane.b32.xlu0 %v3936, 16
    %v3938 = vpop.permute.xlu0 %3937
    %v3940 = vunpack.c.l.b16 %v3830
    %v3941 = vpack.c.b16 %v3940, %v3940
    %3942 = vrot.lane.b32.xlu0 %v3941, 32
    %v3943 = vpop.permute.xlu0 %3942
    %v3945 = vunpack.c.l.b16 %v3864
    %v3946 = vpack.c.b16 %v3945, %v3945
    %3947 = vrot.lane.b32.xlu0 %v3946, 48
    %v3948 = vpop.permute.xlu0 %3947
    %v3950 = vunpack.c.l.b16 %v3829
    %v3951 = vpack.c.b16 %v3950, %v3950
    %3952 = vrot.lane.b32.xlu0 %v3951, 64
    %v3953 = vpop.permute.xlu0 %3952
    %v3955 = vunpack.c.l.b16 %v3863
    %v3956 = vpack.c.b16 %v3955, %v3955
    %3957 = vrot.lane.b32.xlu0 %v3956, 80
    %v3958 = vpop.permute.xlu0 %3957
    %v3960 = vunpack.c.l.b16 %v3831
    %v3961 = vpack.c.b16 %v3960, %v3960
    %3962 = vrot.lane.b32.xlu0 %v3961, 96
    %v3963 = vpop.permute.xlu0 %3962
    %v3965 = vunpack.c.l.b16 %v3865
    %v3966 = vpack.c.b16 %v3965, %v3965
    %3967 = vrot.lane.b32.xlu0 %v3966, 112
    %v3968 = vpop.permute.xlu0 %3967
    %v3970 = vunpack.c.l.b16 %v3924
    %v3971 = vpack.c.b16 %v3970, %v3970
    %3972 = vrot.lane.b32.xlu0 %v3971, 16
    %v3973 = vpop.permute.xlu0 %3972
    %v3975 = vunpack.c.l.b16 %v3898
    %v3976 = vpack.c.b16 %v3975, %v3975
    %3977 = vrot.lane.b32.xlu0 %v3976, 32
    %v3978 = vpop.permute.xlu0 %3977
    %v3980 = vunpack.c.l.b16 %v3932
    %v3981 = vpack.c.b16 %v3980, %v3980
    %3982 = vrot.lane.b32.xlu0 %v3981, 48
    %v3983 = vpop.permute.xlu0 %3982
    %v3985 = vunpack.c.l.b16 %v3897
    %v3986 = vpack.c.b16 %v3985, %v3985
    %3987 = vrot.lane.b32.xlu0 %v3986, 64
    %v3988 = vpop.permute.xlu0 %3987
    %v3990 = vunpack.c.l.b16 %v3931
    %v3991 = vpack.c.b16 %v3990, %v3990
    %3992 = vrot.lane.b32.xlu0 %v3991, 80
    %v3993 = vpop.permute.xlu0 %3992
    %v3995 = vunpack.c.l.b16 %v3899
    %v3996 = vpack.c.b16 %v3995, %v3995
    %3997 = vrot.lane.b32.xlu0 %v3996, 96
    %v3998 = vpop.permute.xlu0 %3997
    %v4000 = vunpack.c.l.b16 %v3933
    %v4001 = vpack.c.b16 %v4000, %v4000
    %4002 = vrot.lane.b32.xlu0 %v4001, 112
    %v4003 = vpop.permute.xlu0 %4002
    %v4006 = vsel %vm673, %v3822, %v3938
    %v4008 = vsel %vm677, %v4006, %v3943
    %v4010 = vsel %vm680, %v4008, %v3948
    %v4012 = vsel %vm683, %v4010, %v3953
    %v4014 = vsel %vm686, %v4012, %v3958
    %v4016 = vsel %vm689, %v4014, %v3963
    %v4018 = vsel %vm692, %v4016, %v3968
    %v4021 = vsel %vm673, %v3890, %v3973
    %v4023 = vsel %vm677, %v4021, %v3978
    %v4025 = vsel %vm680, %v4023, %v3983
    %v4027 = vsel %vm683, %v4025, %v3988
    %v4029 = vsel %vm686, %v4027, %v3993
    %v4031 = vsel %vm689, %v4029, %v3998
    %v4033 = vsel %vm692, %v4031, %v4003
    %v4036 = vunpack.c.l.b16 %v4018
    %v4037 = vunpack.c.l.b16 %v4033
    %v4038 = vpack.c.b16 %v4037, %v4036
    %4040 = vst [vmem:[#allocation3 + $0x28] sm:$0x33] %v4038
    %v4041 = vld [vmem:[%s406] sm:$0xf]
    %v4042 = vld [vmem:[%s406 + $0x4] sm:$0xf]
    %v4043 = vld [vmem:[%s406 + $0xc] sm:$0xf]
    %v4044 = vld [vmem:[%s406 + $0x10] sm:$0xf]
    %v4045 = vld [vmem:[%s406 + $0x18] sm:$0xf]
    %v4046 = vld [vmem:[%s406 + $0x1c] sm:$0xf]
    %v4047 = vld [vmem:[%s406 + $0x24] sm:$0xf]
    %v4048 = vld [vmem:[%s406 + $0x28] sm:$0xf]
    %4057 = vrot.lane.b32.xlu0 %v4041, 126
    %v4058 = vpop.permute.xlu0 %4057
    %4059 = vrot.lane.b32.xlu0 %v4042, 126
    %v4060 = vpop.permute.xlu0 %4059
    %4061 = vrot.lane.b32.xlu0 %v4043, 126
    %v4062 = vpop.permute.xlu0 %4061
    %4063 = vrot.lane.b32.xlu0 %v4044, 126
    %v4064 = vpop.permute.xlu0 %4063
    %4065 = vrot.lane.b32.xlu0 %v4045, 126
    %v4066 = vpop.permute.xlu0 %4065
    %4067 = vrot.lane.b32.xlu0 %v4046, 126
    %v4068 = vpop.permute.xlu0 %4067
    %4069 = vrot.lane.b32.xlu0 %v4047, 126
    %v4070 = vpop.permute.xlu0 %4069
    %4071 = vrot.lane.b32.xlu0 %v4048, 126
    %v4072 = vpop.permute.xlu0 %4071
    %v4075 = vpack.i.b16 %v4062, %v4058
    %v4076 = vshrl.u32 %v4058, 16
    %v4077 = vshrl.u32 %v4062, 16
    %v4078 = vpack.i.b16 %v4077, %v4076
    %v4081 = vpack.i.b16 %v4070, %v4066
    %v4082 = vshrl.u32 %v4066, 16
    %v4083 = vshrl.u32 %v4070, 16
    %v4084 = vpack.i.b16 %v4083, %v4082
    %v4087 = vpack.i.b16 %v4064, %v4060
    %v4088 = vshrl.u32 %v4060, 16
    %v4089 = vshrl.u32 %v4064, 16
    %v4090 = vpack.i.b16 %v4089, %v4088
    %v4093 = vpack.i.b16 %v4072, %v4068
    %v4094 = vshrl.u32 %v4068, 16
    %v4095 = vshrl.u32 %v4072, 16
    %v4096 = vpack.i.b16 %v4095, %v4094
    %v4099 = vunpack.c.l.s4 1983009808
    %v4100 = vunpack.c.0.s8 %v4099
    %v4101 = vlaneseq
    %v4102 = vshrl.u32 %v4101, 7
    %v4103 = vsub.s32 %v4100, %v4102
    %v4104 = vrot.slane %v4075, %v4103
    %v4107 = vunpack.c.l.s4 1983009808
    %v4108 = vunpack.c.0.s8 %v4107
    %v4109 = vlaneseq
    %v4110 = vshrl.u32 %v4109, 7
    %v4111 = vsub.s32 %v4108, %v4110
    %v4112 = vrot.slane %v4081, %v4111
    %v4113 = vcombine.low %v4104, %v4112
    %v4114 = vcombine.high %v4104, %v4112
    %v4116 = vunpack.c.l.s4 1934713408
    %v4117 = vunpack.c.0.s8 %v4116
    %v4118 = vlaneseq
    %v4119 = vshrl.u32 %v4118, 7
    %v4120 = vsub.s32 %v4117, %v4119
    %v4121 = vrot.slane %v4113, %v4120
    %v4123 = vunpack.c.l.s4 1934713408
    %v4124 = vunpack.c.0.s8 %v4123
    %v4125 = vlaneseq
    %v4126 = vshrl.u32 %v4125, 7
    %v4127 = vsub.s32 %v4124, %v4126
    %v4128 = vrot.slane %v4114, %v4127
    %v4129 = vcombine.high %v4121, 0
    %v4130 = vcombine.high %v4128, 0
    %v4133 = vunpack.c.l.s4 1983009808
    %v4134 = vunpack.c.0.s8 %v4133
    %v4135 = vlaneseq
    %v4136 = vshrl.u32 %v4135, 7
    %v4137 = vsub.s32 %v4134, %v4136
    %v4138 = vrot.slane %v4078, %v4137
    %v4141 = vunpack.c.l.s4 1983009808
    %v4142 = vunpack.c.0.s8 %v4141
    %v4143 = vlaneseq
    %v4144 = vshrl.u32 %v4143, 7
    %v4145 = vsub.s32 %v4142, %v4144
    %v4146 = vrot.slane %v4084, %v4145
    %v4147 = vcombine.low %v4138, %v4146
    %v4148 = vcombine.high %v4138, %v4146
    %v4150 = vunpack.c.l.s4 1934713408
    %v4151 = vunpack.c.0.s8 %v4150
    %v4152 = vlaneseq
    %v4153 = vshrl.u32 %v4152, 7
    %v4154 = vsub.s32 %v4151, %v4153
    %v4155 = vrot.slane %v4147, %v4154
    %v4157 = vunpack.c.l.s4 1934713408
    %v4158 = vunpack.c.0.s8 %v4157
    %v4159 = vlaneseq
    %v4160 = vshrl.u32 %v4159, 7
    %v4161 = vsub.s32 %v4158, %v4160
    %v4162 = vrot.slane %v4148, %v4161
    %v4163 = vcombine.high %v4155, 0
    %v4164 = vcombine.high %v4162, 0
    %v4167 = vunpack.c.l.s4 1983009808
    %v4168 = vunpack.c.0.s8 %v4167
    %v4169 = vlaneseq
    %v4170 = vshrl.u32 %v4169, 7
    %v4171 = vsub.s32 %v4168, %v4170
    %v4172 = vrot.slane %v4087, %v4171
    %v4175 = vunpack.c.l.s4 1983009808
    %v4176 = vunpack.c.0.s8 %v4175
    %v4177 = vlaneseq
    %v4178 = vshrl.u32 %v4177, 7
    %v4179 = vsub.s32 %v4176, %v4178
    %v4180 = vrot.slane %v4093, %v4179
    %v4181 = vcombine.low %v4172, %v4180
    %v4182 = vcombine.high %v4172, %v4180
    %v4184 = vunpack.c.l.s4 1934713408
    %v4185 = vunpack.c.0.s8 %v4184
    %v4186 = vlaneseq
    %v4187 = vshrl.u32 %v4186, 7
    %v4188 = vsub.s32 %v4185, %v4187
    %v4189 = vrot.slane %v4181, %v4188
    %v4191 = vunpack.c.l.s4 1934713408
    %v4192 = vunpack.c.0.s8 %v4191
    %v4193 = vlaneseq
    %v4194 = vshrl.u32 %v4193, 7
    %v4195 = vsub.s32 %v4192, %v4194
    %v4196 = vrot.slane %v4182, %v4195
    %v4197 = vcombine.high %v4189, 0
    %v4198 = vcombine.high %v4196, 0
    %v4201 = vunpack.c.l.s4 1983009808
    %v4202 = vunpack.c.0.s8 %v4201
    %v4203 = vlaneseq
    %v4204 = vshrl.u32 %v4203, 7
    %v4205 = vsub.s32 %v4202, %v4204
    %v4206 = vrot.slane %v4090, %v4205
    %v4209 = vunpack.c.l.s4 1983009808
    %v4210 = vunpack.c.0.s8 %v4209
    %v4211 = vlaneseq
    %v4212 = vshrl.u32 %v4211, 7
    %v4213 = vsub.s32 %v4210, %v4212
    %v4214 = vrot.slane %v4096, %v4213
    %v4215 = vcombine.low %v4206, %v4214
    %v4216 = vcombine.high %v4206, %v4214
    %v4218 = vunpack.c.l.s4 1934713408
    %v4219 = vunpack.c.0.s8 %v4218
    %v4220 = vlaneseq
    %v4221 = vshrl.u32 %v4220, 7
    %v4222 = vsub.s32 %v4219, %v4221
    %v4223 = vrot.slane %v4215, %v4222
    %v4225 = vunpack.c.l.s4 1934713408
    %v4226 = vunpack.c.0.s8 %v4225
    %v4227 = vlaneseq
    %v4228 = vshrl.u32 %v4227, 7
    %v4229 = vsub.s32 %v4226, %v4228
    %v4230 = vrot.slane %v4216, %v4229
    %v4231 = vcombine.high %v4223, 0
    %v4232 = vcombine.high %v4230, 0
    %v4234 = vunpack.c.l.b16 %v4155
    %v4235 = vpack.c.b16 %v4234, %v4234
    %4236 = vrot.lane.b32.xlu0 %v4235, 16
    %v4237 = vpop.permute.xlu0 %4236
    %v4239 = vunpack.c.l.b16 %v4129
    %v4240 = vpack.c.b16 %v4239, %v4239
    %4241 = vrot.lane.b32.xlu0 %v4240, 32
    %v4242 = vpop.permute.xlu0 %4241
    %v4244 = vunpack.c.l.b16 %v4163
    %v4245 = vpack.c.b16 %v4244, %v4244
    %4246 = vrot.lane.b32.xlu0 %v4245, 48
    %v4247 = vpop.permute.xlu0 %4246
    %v4249 = vunpack.c.l.b16 %v4128
    %v4250 = vpack.c.b16 %v4249, %v4249
    %4251 = vrot.lane.b32.xlu0 %v4250, 64
    %v4252 = vpop.permute.xlu0 %4251
    %v4254 = vunpack.c.l.b16 %v4162
    %v4255 = vpack.c.b16 %v4254, %v4254
    %4256 = vrot.lane.b32.xlu0 %v4255, 80
    %v4257 = vpop.permute.xlu0 %4256
    %v4259 = vunpack.c.l.b16 %v4130
    %v4260 = vpack.c.b16 %v4259, %v4259
    %4261 = vrot.lane.b32.xlu0 %v4260, 96
    %v4262 = vpop.permute.xlu0 %4261
    %v4264 = vunpack.c.l.b16 %v4164
    %v4265 = vpack.c.b16 %v4264, %v4264
    %4266 = vrot.lane.b32.xlu0 %v4265, 112
    %v4267 = vpop.permute.xlu0 %4266
    %v4269 = vunpack.c.l.b16 %v4223
    %v4270 = vpack.c.b16 %v4269, %v4269
    %4271 = vrot.lane.b32.xlu0 %v4270, 16
    %v4272 = vpop.permute.xlu0 %4271
    %v4274 = vunpack.c.l.b16 %v4197
    %v4275 = vpack.c.b16 %v4274, %v4274
    %4276 = vrot.lane.b32.xlu0 %v4275, 32
    %v4277 = vpop.permute.xlu0 %4276
    %v4279 = vunpack.c.l.b16 %v4231
    %v4280 = vpack.c.b16 %v4279, %v4279
    %4281 = vrot.lane.b32.xlu0 %v4280, 48
    %v4282 = vpop.permute.xlu0 %4281
    %v4284 = vunpack.c.l.b16 %v4196
    %v4285 = vpack.c.b16 %v4284, %v4284
    %4286 = vrot.lane.b32.xlu0 %v4285, 64
    %v4287 = vpop.permute.xlu0 %4286
    %v4289 = vunpack.c.l.b16 %v4230
    %v4290 = vpack.c.b16 %v4289, %v4289
    %4291 = vrot.lane.b32.xlu0 %v4290, 80
    %v4292 = vpop.permute.xlu0 %4291
    %v4294 = vunpack.c.l.b16 %v4198
    %v4295 = vpack.c.b16 %v4294, %v4294
    %4296 = vrot.lane.b32.xlu0 %v4295, 96
    %v4297 = vpop.permute.xlu0 %4296
    %v4299 = vunpack.c.l.b16 %v4232
    %v4300 = vpack.c.b16 %v4299, %v4299
    %4301 = vrot.lane.b32.xlu0 %v4300, 112
    %v4302 = vpop.permute.xlu0 %4301
    %v4305 = vsel %vm673, %v4121, %v4237
    %v4307 = vsel %vm677, %v4305, %v4242
    %v4309 = vsel %vm680, %v4307, %v4247
    %v4311 = vsel %vm683, %v4309, %v4252
    %v4313 = vsel %vm686, %v4311, %v4257
    %v4315 = vsel %vm689, %v4313, %v4262
    %v4317 = vsel %vm692, %v4315, %v4267
    %v4320 = vsel %vm673, %v4189, %v4272
    %v4322 = vsel %vm677, %v4320, %v4277
    %v4324 = vsel %vm680, %v4322, %v4282
    %v4326 = vsel %vm683, %v4324, %v4287
    %v4328 = vsel %vm686, %v4326, %v4292
    %v4330 = vsel %vm689, %v4328, %v4297
    %v4332 = vsel %vm692, %v4330, %v4302
    %v4335 = vunpack.c.l.b16 %v4317
    %v4336 = vunpack.c.l.b16 %v4332
    %v4337 = vpack.c.b16 %v4336, %v4335
    %4339 = vst [vmem:[#allocation3 + $0x48] sm:$0x33] %v4337
    %v4340 = vld [vmem:[%s406] sm:$0xf]
    %v4341 = vld [vmem:[%s406 + $0x4] sm:$0xf]
    %v4342 = vld [vmem:[%s406 + $0x8] sm:$0x1]
    %v4343 = vld [vmem:[%s406 + $0xc] sm:$0xf]
    %v4344 = vld [vmem:[%s406 + $0x10] sm:$0xf]
    %v4345 = vld [vmem:[%s406 + $0x14] sm:$0x1]
    %v4346 = vld [vmem:[%s406 + $0x18] sm:$0xf]
    %v4347 = vld [vmem:[%s406 + $0x1c] sm:$0xf]
    %v4348 = vld [vmem:[%s406 + $0x20] sm:$0x1]
    %v4349 = vld [vmem:[%s406 + $0x24] sm:$0xf]
    %v4350 = vld [vmem:[%s406 + $0x28] sm:$0xf]
    %v4351 = vld [vmem:[%s406 + $0x2c] sm:$0x1]
    %v4353 = vshrl.u32 %v4340, 16
    %v4355 = vrot.slane %v4353, 4
    %v4356 = vshll.u32 %v4340, 16
    %v4358 = vrot.slane %v4356, 5
    %v4359 = vor.u32 %v4355, %v4358
    %v4360 = vrot.slane %v4359, 4
    %v4362 = vshll.u32 %v4341, 16
    %v4364 = vrot.slane %v4362, 5
    %v4365 = vsel %vm1329, %v4360, %v4364
    %v4366 = vshrl.u32 %v4341, 16
    %v4368 = vrot.slane %v4366, 4
    %v4369 = vor.u32 %v4368, %v4364
    %v4370 = vrot.slane %v4369, 4
    %v4372 = vshll.u32 %v4342, 16
    %v4374 = vrot.slane %v4372, 5
    %v4375 = vsel %vm1329, %v4370, %v4374
    %v4377 = vshrl.u32 %v4343, 16
    %v4379 = vrot.slane %v4377, 4
    %v4380 = vshll.u32 %v4343, 16
    %v4382 = vrot.slane %v4380, 5
    %v4383 = vor.u32 %v4379, %v4382
    %v4384 = vrot.slane %v4383, 4
    %v4386 = vshll.u32 %v4344, 16
    %v4388 = vrot.slane %v4386, 5
    %v4389 = vsel %vm1329, %v4384, %v4388
    %v4390 = vshrl.u32 %v4344, 16
    %v4392 = vrot.slane %v4390, 4
    %v4393 = vor.u32 %v4392, %v4388
    %v4394 = vrot.slane %v4393, 4
    %v4396 = vshll.u32 %v4345, 16
    %v4398 = vrot.slane %v4396, 5
    %v4399 = vsel %vm1329, %v4394, %v4398
    %v4401 = vshrl.u32 %v4346, 16
    %v4403 = vrot.slane %v4401, 4
    %v4404 = vshll.u32 %v4346, 16
    %v4406 = vrot.slane %v4404, 5
    %v4407 = vor.u32 %v4403, %v4406
    %v4408 = vrot.slane %v4407, 4
    %v4410 = vshll.u32 %v4347, 16
    %v4412 = vrot.slane %v4410, 5
    %v4413 = vsel %vm1329, %v4408, %v4412
    %v4414 = vshrl.u32 %v4347, 16
    %v4416 = vrot.slane %v4414, 4
    %v4417 = vor.u32 %v4416, %v4412
    %v4418 = vrot.slane %v4417, 4
    %v4420 = vshll.u32 %v4348, 16
    %v4422 = vrot.slane %v4420, 5
    %v4423 = vsel %vm1329, %v4418, %v4422
    %v4425 = vshrl.u32 %v4349, 16
    %v4427 = vrot.slane %v4425, 4
    %v4428 = vshll.u32 %v4349, 16
    %v4430 = vrot.slane %v4428, 5
    %v4431 = vor.u32 %v4427, %v4430
    %v4432 = vrot.slane %v4431, 4
    %v4434 = vshll.u32 %v4350, 16
    %v4436 = vrot.slane %v4434, 5
    %v4437 = vsel %vm1329, %v4432, %v4436
    %v4438 = vshrl.u32 %v4350, 16
    %v4440 = vrot.slane %v4438, 4
    %v4441 = vor.u32 %v4440, %v4436
    %v4442 = vrot.slane %v4441, 4
    %v4444 = vshll.u32 %v4351, 16
    %v4446 = vrot.slane %v4444, 5
    %v4447 = vsel %vm1329, %v4442, %v4446
    %v4450 = vpack.i.b16 %v4389, %v4365
    %v4451 = vshrl.u32 %v4365, 16
    %v4452 = vshrl.u32 %v4389, 16
    %v4453 = vpack.i.b16 %v4452, %v4451
    %v4456 = vpack.i.b16 %v4437, %v4413
    %v4457 = vshrl.u32 %v4413, 16
    %v4458 = vshrl.u32 %v4437, 16
    %v4459 = vpack.i.b16 %v4458, %v4457
    %v4462 = vpack.i.b16 %v4399, %v4375
    %v4463 = vshrl.u32 %v4375, 16
    %v4464 = vshrl.u32 %v4399, 16
    %v4465 = vpack.i.b16 %v4464, %v4463
    %v4468 = vpack.i.b16 %v4447, %v4423
    %v4469 = vshrl.u32 %v4423, 16
    %v4470 = vshrl.u32 %v4447, 16
    %v4471 = vpack.i.b16 %v4470, %v4469
    %v4474 = vunpack.c.l.s4 1983009808
    %v4475 = vunpack.c.0.s8 %v4474
    %v4476 = vlaneseq
    %v4477 = vshrl.u32 %v4476, 7
    %v4478 = vsub.s32 %v4475, %v4477
    %v4479 = vrot.slane %v4450, %v4478
    %v4482 = vunpack.c.l.s4 1983009808
    %v4483 = vunpack.c.0.s8 %v4482
    %v4484 = vlaneseq
    %v4485 = vshrl.u32 %v4484, 7
    %v4486 = vsub.s32 %v4483, %v4485
    %v4487 = vrot.slane %v4456, %v4486
    %v4488 = vcombine.low %v4479, %v4487
    %v4489 = vcombine.high %v4479, %v4487
    %v4491 = vunpack.c.l.s4 1934713408
    %v4492 = vunpack.c.0.s8 %v4491
    %v4493 = vlaneseq
    %v4494 = vshrl.u32 %v4493, 7
    %v4495 = vsub.s32 %v4492, %v4494
    %v4496 = vrot.slane %v4488, %v4495
    %v4498 = vunpack.c.l.s4 1934713408
    %v4499 = vunpack.c.0.s8 %v4498
    %v4500 = vlaneseq
    %v4501 = vshrl.u32 %v4500, 7
    %v4502 = vsub.s32 %v4499, %v4501
    %v4503 = vrot.slane %v4489, %v4502
    %v4504 = vcombine.high %v4496, 0
    %v4505 = vcombine.high %v4503, 0
    %v4508 = vunpack.c.l.s4 1983009808
    %v4509 = vunpack.c.0.s8 %v4508
    %v4510 = vlaneseq
    %v4511 = vshrl.u32 %v4510, 7
    %v4512 = vsub.s32 %v4509, %v4511
    %v4513 = vrot.slane %v4453, %v4512
    %v4516 = vunpack.c.l.s4 1983009808
    %v4517 = vunpack.c.0.s8 %v4516
    %v4518 = vlaneseq
    %v4519 = vshrl.u32 %v4518, 7
    %v4520 = vsub.s32 %v4517, %v4519
    %v4521 = vrot.slane %v4459, %v4520
    %v4522 = vcombine.low %v4513, %v4521
    %v4523 = vcombine.high %v4513, %v4521
    %v4525 = vunpack.c.l.s4 1934713408
    %v4526 = vunpack.c.0.s8 %v4525
    %v4527 = vlaneseq
    %v4528 = vshrl.u32 %v4527, 7
    %v4529 = vsub.s32 %v4526, %v4528
    %v4530 = vrot.slane %v4522, %v4529
    %v4532 = vunpack.c.l.s4 1934713408
    %v4533 = vunpack.c.0.s8 %v4532
    %v4534 = vlaneseq
    %v4535 = vshrl.u32 %v4534, 7
    %v4536 = vsub.s32 %v4533, %v4535
    %v4537 = vrot.slane %v4523, %v4536
    %v4538 = vcombine.high %v4530, 0
    %v4539 = vcombine.high %v4537, 0
    %v4542 = vunpack.c.l.s4 1983009808
    %v4543 = vunpack.c.0.s8 %v4542
    %v4544 = vlaneseq
    %v4545 = vshrl.u32 %v4544, 7
    %v4546 = vsub.s32 %v4543, %v4545
    %v4547 = vrot.slane %v4462, %v4546
    %v4550 = vunpack.c.l.s4 1983009808
    %v4551 = vunpack.c.0.s8 %v4550
    %v4552 = vlaneseq
    %v4553 = vshrl.u32 %v4552, 7
    %v4554 = vsub.s32 %v4551, %v4553
    %v4555 = vrot.slane %v4468, %v4554
    %v4556 = vcombine.low %v4547, %v4555
    %v4557 = vcombine.high %v4547, %v4555
    %v4559 = vunpack.c.l.s4 1934713408
    %v4560 = vunpack.c.0.s8 %v4559
    %v4561 = vlaneseq
    %v4562 = vshrl.u32 %v4561, 7
    %v4563 = vsub.s32 %v4560, %v4562
    %v4564 = vrot.slane %v4556, %v4563
    %v4566 = vunpack.c.l.s4 1934713408
    %v4567 = vunpack.c.0.s8 %v4566
    %v4568 = vlaneseq
    %v4569 = vshrl.u32 %v4568, 7
    %v4570 = vsub.s32 %v4567, %v4569
    %v4571 = vrot.slane %v4557, %v4570
    %v4572 = vcombine.high %v4564, 0
    %v4573 = vcombine.high %v4571, 0
    %v4576 = vunpack.c.l.s4 1983009808
    %v4577 = vunpack.c.0.s8 %v4576
    %v4578 = vlaneseq
    %v4579 = vshrl.u32 %v4578, 7
    %v4580 = vsub.s32 %v4577, %v4579
    %v4581 = vrot.slane %v4465, %v4580
    %v4584 = vunpack.c.l.s4 1983009808
    %v4585 = vunpack.c.0.s8 %v4584
    %v4586 = vlaneseq
    %v4587 = vshrl.u32 %v4586, 7
    %v4588 = vsub.s32 %v4585, %v4587
    %v4589 = vrot.slane %v4471, %v4588
    %v4590 = vcombine.low %v4581, %v4589
    %v4591 = vcombine.high %v4581, %v4589
    %v4593 = vunpack.c.l.s4 1934713408
    %v4594 = vunpack.c.0.s8 %v4593
    %v4595 = vlaneseq
    %v4596 = vshrl.u32 %v4595, 7
    %v4597 = vsub.s32 %v4594, %v4596
    %v4598 = vrot.slane %v4590, %v4597
    %v4600 = vunpack.c.l.s4 1934713408
    %v4601 = vunpack.c.0.s8 %v4600
    %v4602 = vlaneseq
    %v4603 = vshrl.u32 %v4602, 7
    %v4604 = vsub.s32 %v4601, %v4603
    %v4605 = vrot.slane %v4591, %v4604
    %v4606 = vcombine.high %v4598, 0
    %v4607 = vcombine.high %v4605, 0
    %v4609 = vunpack.c.l.b16 %v4530
    %v4610 = vpack.c.b16 %v4609, %v4609
    %4611 = vrot.lane.b32.xlu0 %v4610, 16
    %v4612 = vpop.permute.xlu0 %4611
    %v4614 = vunpack.c.l.b16 %v4504
    %v4615 = vpack.c.b16 %v4614, %v4614
    %4616 = vrot.lane.b32.xlu0 %v4615, 32
    %v4617 = vpop.permute.xlu0 %4616
    %v4619 = vunpack.c.l.b16 %v4538
    %v4620 = vpack.c.b16 %v4619, %v4619
    %4621 = vrot.lane.b32.xlu0 %v4620, 48
    %v4622 = vpop.permute.xlu0 %4621
    %v4624 = vunpack.c.l.b16 %v4503
    %v4625 = vpack.c.b16 %v4624, %v4624
    %4626 = vrot.lane.b32.xlu0 %v4625, 64
    %v4627 = vpop.permute.xlu0 %4626
    %v4629 = vunpack.c.l.b16 %v4537
    %v4630 = vpack.c.b16 %v4629, %v4629
    %4631 = vrot.lane.b32.xlu0 %v4630, 80
    %v4632 = vpop.permute.xlu0 %4631
    %v4634 = vunpack.c.l.b16 %v4505
    %v4635 = vpack.c.b16 %v4634, %v4634
    %4636 = vrot.lane.b32.xlu0 %v4635, 96
    %v4637 = vpop.permute.xlu0 %4636
    %v4639 = vunpack.c.l.b16 %v4539
    %v4640 = vpack.c.b16 %v4639, %v4639
    %4641 = vrot.lane.b32.xlu0 %v4640, 112
    %v4642 = vpop.permute.xlu0 %4641
    %v4644 = vunpack.c.l.b16 %v4598
    %v4645 = vpack.c.b16 %v4644, %v4644
    %4646 = vrot.lane.b32.xlu0 %v4645, 16
    %v4647 = vpop.permute.xlu0 %4646
    %v4649 = vunpack.c.l.b16 %v4572
    %v4650 = vpack.c.b16 %v4649, %v4649
    %4651 = vrot.lane.b32.xlu0 %v4650, 32
    %v4652 = vpop.permute.xlu0 %4651
    %v4654 = vunpack.c.l.b16 %v4606
    %v4655 = vpack.c.b16 %v4654, %v4654
    %4656 = vrot.lane.b32.xlu0 %v4655, 48
    %v4657 = vpop.permute.xlu0 %4656
    %v4659 = vunpack.c.l.b16 %v4571
    %v4660 = vpack.c.b16 %v4659, %v4659
    %4661 = vrot.lane.b32.xlu0 %v4660, 64
    %v4662 = vpop.permute.xlu0 %4661
    %v4664 = vunpack.c.l.b16 %v4605
    %v4665 = vpack.c.b16 %v4664, %v4664
    %4666 = vrot.lane.b32.xlu0 %v4665, 80
    %v4667 = vpop.permute.xlu0 %4666
    %v4669 = vunpack.c.l.b16 %v4573
    %v4670 = vpack.c.b16 %v4669, %v4669
    %4671 = vrot.lane.b32.xlu0 %v4670, 96
    %v4672 = vpop.permute.xlu0 %4671
    %v4674 = vunpack.c.l.b16 %v4607
    %v4675 = vpack.c.b16 %v4674, %v4674
    %4676 = vrot.lane.b32.xlu0 %v4675, 112
    %v4677 = vpop.permute.xlu0 %4676
    %v4680 = vsel %vm673, %v4496, %v4612
    %v4682 = vsel %vm677, %v4680, %v4617
    %v4684 = vsel %vm680, %v4682, %v4622
    %v4686 = vsel %vm683, %v4684, %v4627
    %v4688 = vsel %vm686, %v4686, %v4632
    %v4690 = vsel %vm689, %v4688, %v4637
    %v4692 = vsel %vm692, %v4690, %v4642
    %v4695 = vsel %vm673, %v4564, %v4647
    %v4697 = vsel %vm677, %v4695, %v4652
    %v4699 = vsel %vm680, %v4697, %v4657
    %v4701 = vsel %vm683, %v4699, %v4662
    %v4703 = vsel %vm686, %v4701, %v4667
    %v4705 = vsel %vm689, %v4703, %v4672
    %v4707 = vsel %vm692, %v4705, %v4677
    %v4710 = vunpack.c.l.b16 %v4692
    %v4711 = vunpack.c.l.b16 %v4707
    %v4712 = vpack.c.b16 %v4711, %v4710
    %4714 = vst [vmem:[#allocation3 + $0x68] sm:$0x33] %v4712
    %v4715 = vld [vmem:[%s406] sm:$0xf]
    %v4716 = vld [vmem:[%s406 + $0x4] sm:$0xf]
    %v4717 = vld [vmem:[%s406 + $0x8] sm:$0x1]
    %v4718 = vld [vmem:[%s406 + $0xc] sm:$0xf]
    %v4719 = vld [vmem:[%s406 + $0x10] sm:$0xf]
    %v4720 = vld [vmem:[%s406 + $0x14] sm:$0x1]
    %v4721 = vld [vmem:[%s406 + $0x18] sm:$0xf]
    %v4722 = vld [vmem:[%s406 + $0x1c] sm:$0xf]
    %v4723 = vld [vmem:[%s406 + $0x20] sm:$0x1]
    %v4724 = vld [vmem:[%s406 + $0x24] sm:$0xf]
    %v4725 = vld [vmem:[%s406 + $0x28] sm:$0xf]
    %v4726 = vld [vmem:[%s406 + $0x2c] sm:$0x1]
    %v4728 = vshrl.u32 %v4715, 16
    %v4730 = vrot.slane %v4728, 4
    %v4731 = vshll.u32 %v4715, 16
    %v4733 = vrot.slane %v4731, 5
    %v4734 = vor.u32 %v4730, %v4733
    %v4735 = vrot.slane %v4734, 4
    %v4737 = vshll.u32 %v4716, 16
    %v4739 = vrot.slane %v4737, 5
    %v4740 = vsel %vm1329, %v4735, %v4739
    %v4741 = vshrl.u32 %v4716, 16
    %v4743 = vrot.slane %v4741, 4
    %v4744 = vor.u32 %v4743, %v4739
    %v4745 = vrot.slane %v4744, 4
    %v4747 = vshll.u32 %v4717, 16
    %v4749 = vrot.slane %v4747, 5
    %v4750 = vsel %vm1329, %v4745, %v4749
    %v4752 = vshrl.u32 %v4718, 16
    %v4754 = vrot.slane %v4752, 4
    %v4755 = vshll.u32 %v4718, 16
    %v4757 = vrot.slane %v4755, 5
    %v4758 = vor.u32 %v4754, %v4757
    %v4759 = vrot.slane %v4758, 4
    %v4761 = vshll.u32 %v4719, 16
    %v4763 = vrot.slane %v4761, 5
    %v4764 = vsel %vm1329, %v4759, %v4763
    %v4765 = vshrl.u32 %v4719, 16
    %v4767 = vrot.slane %v4765, 4
    %v4768 = vor.u32 %v4767, %v4763
    %v4769 = vrot.slane %v4768, 4
    %v4771 = vshll.u32 %v4720, 16
    %v4773 = vrot.slane %v4771, 5
    %v4774 = vsel %vm1329, %v4769, %v4773
    %v4776 = vshrl.u32 %v4721, 16
    %v4778 = vrot.slane %v4776, 4
    %v4779 = vshll.u32 %v4721, 16
    %v4781 = vrot.slane %v4779, 5
    %v4782 = vor.u32 %v4778, %v4781
    %v4783 = vrot.slane %v4782, 4
    %v4785 = vshll.u32 %v4722, 16
    %v4787 = vrot.slane %v4785, 5
    %v4788 = vsel %vm1329, %v4783, %v4787
    %v4789 = vshrl.u32 %v4722, 16
    %v4791 = vrot.slane %v4789, 4
    %v4792 = vor.u32 %v4791, %v4787
    %v4793 = vrot.slane %v4792, 4
    %v4795 = vshll.u32 %v4723, 16
    %v4797 = vrot.slane %v4795, 5
    %v4798 = vsel %vm1329, %v4793, %v4797
    %v4800 = vshrl.u32 %v4724, 16
    %v4802 = vrot.slane %v4800, 4
    %v4803 = vshll.u32 %v4724, 16
    %v4805 = vrot.slane %v4803, 5
    %v4806 = vor.u32 %v4802, %v4805
    %v4807 = vrot.slane %v4806, 4
    %v4809 = vshll.u32 %v4725, 16
    %v4811 = vrot.slane %v4809, 5
    %v4812 = vsel %vm1329, %v4807, %v4811
    %v4813 = vshrl.u32 %v4725, 16
    %v4815 = vrot.slane %v4813, 4
    %v4816 = vor.u32 %v4815, %v4811
    %v4817 = vrot.slane %v4816, 4
    %v4819 = vshll.u32 %v4726, 16
    %v4821 = vrot.slane %v4819, 5
    %v4822 = vsel %vm1329, %v4817, %v4821
    %4823 = vrot.lane.b32.xlu0 %v4740, 127
    %v4824 = vpop.permute.xlu0 %4823
    %4825 = vrot.lane.b32.xlu0 %v4750, 127
    %v4826 = vpop.permute.xlu0 %4825
    %4827 = vrot.lane.b32.xlu0 %v4764, 127
    %v4828 = vpop.permute.xlu0 %4827
    %4829 = vrot.lane.b32.xlu0 %v4774, 127
    %v4830 = vpop.permute.xlu0 %4829
    %4831 = vrot.lane.b32.xlu0 %v4788, 127
    %v4832 = vpop.permute.xlu0 %4831
    %4833 = vrot.lane.b32.xlu0 %v4798, 127
    %v4834 = vpop.permute.xlu0 %4833
    %4835 = vrot.lane.b32.xlu0 %v4812, 127
    %v4836 = vpop.permute.xlu0 %4835
    %4837 = vrot.lane.b32.xlu0 %v4822, 127
    %v4838 = vpop.permute.xlu0 %4837
    %v4841 = vpack.i.b16 %v4828, %v4824
    %v4842 = vshrl.u32 %v4824, 16
    %v4843 = vshrl.u32 %v4828, 16
    %v4844 = vpack.i.b16 %v4843, %v4842
    %v4847 = vpack.i.b16 %v4836, %v4832
    %v4848 = vshrl.u32 %v4832, 16
    %v4849 = vshrl.u32 %v4836, 16
    %v4850 = vpack.i.b16 %v4849, %v4848
    %v4853 = vpack.i.b16 %v4830, %v4826
    %v4854 = vshrl.u32 %v4826, 16
    %v4855 = vshrl.u32 %v4830, 16
    %v4856 = vpack.i.b16 %v4855, %v4854
    %v4859 = vpack.i.b16 %v4838, %v4834
    %v4860 = vshrl.u32 %v4834, 16
    %v4861 = vshrl.u32 %v4838, 16
    %v4862 = vpack.i.b16 %v4861, %v4860
    %v4865 = vunpack.c.l.s4 1983009808
    %v4866 = vunpack.c.0.s8 %v4865
    %v4867 = vlaneseq
    %v4868 = vshrl.u32 %v4867, 7
    %v4869 = vsub.s32 %v4866, %v4868
    %v4870 = vrot.slane %v4841, %v4869
    %v4873 = vunpack.c.l.s4 1983009808
    %v4874 = vunpack.c.0.s8 %v4873
    %v4875 = vlaneseq
    %v4876 = vshrl.u32 %v4875, 7
    %v4877 = vsub.s32 %v4874, %v4876
    %v4878 = vrot.slane %v4847, %v4877
    %v4879 = vcombine.low %v4870, %v4878
    %v4880 = vcombine.high %v4870, %v4878
    %v4882 = vunpack.c.l.s4 1934713408
    %v4883 = vunpack.c.0.s8 %v4882
    %v4884 = vlaneseq
    %v4885 = vshrl.u32 %v4884, 7
    %v4886 = vsub.s32 %v4883, %v4885
    %v4887 = vrot.slane %v4879, %v4886
    %v4889 = vunpack.c.l.s4 1934713408
    %v4890 = vunpack.c.0.s8 %v4889
    %v4891 = vlaneseq
    %v4892 = vshrl.u32 %v4891, 7
    %v4893 = vsub.s32 %v4890, %v4892
    %v4894 = vrot.slane %v4880, %v4893
    %v4895 = vcombine.high %v4887, 0
    %v4896 = vcombine.high %v4894, 0
    %v4899 = vunpack.c.l.s4 1983009808
    %v4900 = vunpack.c.0.s8 %v4899
    %v4901 = vlaneseq
    %v4902 = vshrl.u32 %v4901, 7
    %v4903 = vsub.s32 %v4900, %v4902
    %v4904 = vrot.slane %v4844, %v4903
    %v4907 = vunpack.c.l.s4 1983009808
    %v4908 = vunpack.c.0.s8 %v4907
    %v4909 = vlaneseq
    %v4910 = vshrl.u32 %v4909, 7
    %v4911 = vsub.s32 %v4908, %v4910
    %v4912 = vrot.slane %v4850, %v4911
    %v4913 = vcombine.low %v4904, %v4912
    %v4914 = vcombine.high %v4904, %v4912
    %v4916 = vunpack.c.l.s4 1934713408
    %v4917 = vunpack.c.0.s8 %v4916
    %v4918 = vlaneseq
    %v4919 = vshrl.u32 %v4918, 7
    %v4920 = vsub.s32 %v4917, %v4919
    %v4921 = vrot.slane %v4913, %v4920
    %v4923 = vunpack.c.l.s4 1934713408
    %v4924 = vunpack.c.0.s8 %v4923
    %v4925 = vlaneseq
    %v4926 = vshrl.u32 %v4925, 7
    %v4927 = vsub.s32 %v4924, %v4926
    %v4928 = vrot.slane %v4914, %v4927
    %v4929 = vcombine.high %v4921, 0
    %v4930 = vcombine.high %v4928, 0
    %v4933 = vunpack.c.l.s4 1983009808
    %v4934 = vunpack.c.0.s8 %v4933
    %v4935 = vlaneseq
    %v4936 = vshrl.u32 %v4935, 7
    %v4937 = vsub.s32 %v4934, %v4936
    %v4938 = vrot.slane %v4853, %v4937
    %v4941 = vunpack.c.l.s4 1983009808
    %v4942 = vunpack.c.0.s8 %v4941
    %v4943 = vlaneseq
    %v4944 = vshrl.u32 %v4943, 7
    %v4945 = vsub.s32 %v4942, %v4944
    %v4946 = vrot.slane %v4859, %v4945
    %v4947 = vcombine.low %v4938, %v4946
    %v4948 = vcombine.high %v4938, %v4946
    %v4950 = vunpack.c.l.s4 1934713408
    %v4951 = vunpack.c.0.s8 %v4950
    %v4952 = vlaneseq
    %v4953 = vshrl.u32 %v4952, 7
    %v4954 = vsub.s32 %v4951, %v4953
    %v4955 = vrot.slane %v4947, %v4954
    %v4957 = vunpack.c.l.s4 1934713408
    %v4958 = vunpack.c.0.s8 %v4957
    %v4959 = vlaneseq
    %v4960 = vshrl.u32 %v4959, 7
    %v4961 = vsub.s32 %v4958, %v4960
    %v4962 = vrot.slane %v4948, %v4961
    %v4963 = vcombine.high %v4955, 0
    %v4964 = vcombine.high %v4962, 0
    %v4967 = vunpack.c.l.s4 1983009808
    %v4968 = vunpack.c.0.s8 %v4967
    %v4969 = vlaneseq
    %v4970 = vshrl.u32 %v4969, 7
    %v4971 = vsub.s32 %v4968, %v4970
    %v4972 = vrot.slane %v4856, %v4971
    %v4975 = vunpack.c.l.s4 1983009808
    %v4976 = vunpack.c.0.s8 %v4975
    %v4977 = vlaneseq
    %v4978 = vshrl.u32 %v4977, 7
    %v4979 = vsub.s32 %v4976, %v4978
    %v4980 = vrot.slane %v4862, %v4979
    %v4981 = vcombine.low %v4972, %v4980
    %v4982 = vcombine.high %v4972, %v4980
    %v4984 = vunpack.c.l.s4 1934713408
    %v4985 = vunpack.c.0.s8 %v4984
    %v4986 = vlaneseq
    %v4987 = vshrl.u32 %v4986, 7
    %v4988 = vsub.s32 %v4985, %v4987
    %v4989 = vrot.slane %v4981, %v4988
    %v4991 = vunpack.c.l.s4 1934713408
    %v4992 = vunpack.c.0.s8 %v4991
    %v4993 = vlaneseq
    %v4994 = vshrl.u32 %v4993, 7
    %v4995 = vsub.s32 %v4992, %v4994
    %v4996 = vrot.slane %v4982, %v4995
    %v4997 = vcombine.high %v4989, 0
    %v4998 = vcombine.high %v4996, 0
    %v5000 = vunpack.c.l.b16 %v4921
    %v5001 = vpack.c.b16 %v5000, %v5000
    %5002 = vrot.lane.b32.xlu0 %v5001, 16
    %v5003 = vpop.permute.xlu0 %5002
    %v5005 = vunpack.c.l.b16 %v4895
    %v5006 = vpack.c.b16 %v5005, %v5005
    %5007 = vrot.lane.b32.xlu0 %v5006, 32
    %v5008 = vpop.permute.xlu0 %5007
    %v5010 = vunpack.c.l.b16 %v4929
    %v5011 = vpack.c.b16 %v5010, %v5010
    %5012 = vrot.lane.b32.xlu0 %v5011, 48
    %v5013 = vpop.permute.xlu0 %5012
    %v5015 = vunpack.c.l.b16 %v4894
    %v5016 = vpack.c.b16 %v5015, %v5015
    %5017 = vrot.lane.b32.xlu0 %v5016, 64
    %v5018 = vpop.permute.xlu0 %5017
    %v5020 = vunpack.c.l.b16 %v4928
    %v5021 = vpack.c.b16 %v5020, %v5020
    %5022 = vrot.lane.b32.xlu0 %v5021, 80
    %v5023 = vpop.permute.xlu0 %5022
    %v5025 = vunpack.c.l.b16 %v4896
    %v5026 = vpack.c.b16 %v5025, %v5025
    %5027 = vrot.lane.b32.xlu0 %v5026, 96
    %v5028 = vpop.permute.xlu0 %5027
    %v5030 = vunpack.c.l.b16 %v4930
    %v5031 = vpack.c.b16 %v5030, %v5030
    %5032 = vrot.lane.b32.xlu0 %v5031, 112
    %v5033 = vpop.permute.xlu0 %5032
    %v5035 = vunpack.c.l.b16 %v4989
    %v5036 = vpack.c.b16 %v5035, %v5035
    %5037 = vrot.lane.b32.xlu0 %v5036, 16
    %v5038 = vpop.permute.xlu0 %5037
    %v5040 = vunpack.c.l.b16 %v4963
    %v5041 = vpack.c.b16 %v5040, %v5040
    %5042 = vrot.lane.b32.xlu0 %v5041, 32
    %v5043 = vpop.permute.xlu0 %5042
    %v5045 = vunpack.c.l.b16 %v4997
    %v5046 = vpack.c.b16 %v5045, %v5045
    %5047 = vrot.lane.b32.xlu0 %v5046, 48
    %v5048 = vpop.permute.xlu0 %5047
    %v5050 = vunpack.c.l.b16 %v4962
    %v5051 = vpack.c.b16 %v5050, %v5050
    %5052 = vrot.lane.b32.xlu0 %v5051, 64
    %v5053 = vpop.permute.xlu0 %5052
    %v5055 = vunpack.c.l.b16 %v4996
    %v5056 = vpack.c.b16 %v5055, %v5055
    %5057 = vrot.lane.b32.xlu0 %v5056, 80
    %v5058 = vpop.permute.xlu0 %5057
    %v5060 = vunpack.c.l.b16 %v4964
    %v5061 = vpack.c.b16 %v5060, %v5060
    %5062 = vrot.lane.b32.xlu0 %v5061, 96
    %v5063 = vpop.permute.xlu0 %5062
    %v5065 = vunpack.c.l.b16 %v4998
    %v5066 = vpack.c.b16 %v5065, %v5065
    %5067 = vrot.lane.b32.xlu0 %v5066, 112
    %v5068 = vpop.permute.xlu0 %5067
    %v5071 = vsel %vm673, %v4887, %v5003
    %v5073 = vsel %vm677, %v5071, %v5008
    %v5075 = vsel %vm680, %v5073, %v5013
    %v5077 = vsel %vm683, %v5075, %v5018
    %v5079 = vsel %vm686, %v5077, %v5023
    %v5081 = vsel %vm689, %v5079, %v5028
    %v5083 = vsel %vm692, %v5081, %v5033
    %v5086 = vsel %vm673, %v4955, %v5038
    %v5088 = vsel %vm677, %v5086, %v5043
    %v5090 = vsel %vm680, %v5088, %v5048
    %v5092 = vsel %vm683, %v5090, %v5053
    %v5094 = vsel %vm686, %v5092, %v5058
    %v5096 = vsel %vm689, %v5094, %v5063
    %v5098 = vsel %vm692, %v5096, %v5068
    %v5101 = vunpack.c.l.b16 %v5083
    %v5102 = vunpack.c.l.b16 %v5098
    %v5103 = vpack.c.b16 %v5102, %v5101
    %5105 = vst [vmem:[#allocation3 + $0x88] sm:$0x33] %v5103
    %v5106 = vld [vmem:[%s406] sm:$0xf]
    %v5107 = vld [vmem:[%s406 + $0x4] sm:$0xf]
    %v5108 = vld [vmem:[%s406 + $0x8] sm:$0x1]
    %v5109 = vld [vmem:[%s406 + $0xc] sm:$0xf]
    %v5110 = vld [vmem:[%s406 + $0x10] sm:$0xf]
    %v5111 = vld [vmem:[%s406 + $0x14] sm:$0x1]
    %v5112 = vld [vmem:[%s406 + $0x18] sm:$0xf]
    %v5113 = vld [vmem:[%s406 + $0x1c] sm:$0xf]
    %v5114 = vld [vmem:[%s406 + $0x20] sm:$0x1]
    %v5115 = vld [vmem:[%s406 + $0x24] sm:$0xf]
    %v5116 = vld [vmem:[%s406 + $0x28] sm:$0xf]
    %v5117 = vld [vmem:[%s406 + $0x2c] sm:$0x1]
    %v5119 = vshrl.u32 %v5106, 16
    %v5121 = vrot.slane %v5119, 4
    %v5122 = vshll.u32 %v5106, 16
    %v5124 = vrot.slane %v5122, 5
    %v5125 = vor.u32 %v5121, %v5124
    %v5126 = vrot.slane %v5125, 4
    %v5128 = vshll.u32 %v5107, 16
    %v5130 = vrot.slane %v5128, 5
    %v5131 = vsel %vm1329, %v5126, %v5130
    %v5132 = vshrl.u32 %v5107, 16
    %v5134 = vrot.slane %v5132, 4
    %v5135 = vor.u32 %v5134, %v5130
    %v5136 = vrot.slane %v5135, 4
    %v5138 = vshll.u32 %v5108, 16
    %v5140 = vrot.slane %v5138, 5
    %v5141 = vsel %vm1329, %v5136, %v5140
    %v5143 = vshrl.u32 %v5109, 16
    %v5145 = vrot.slane %v5143, 4
    %v5146 = vshll.u32 %v5109, 16
    %v5148 = vrot.slane %v5146, 5
    %v5149 = vor.u32 %v5145, %v5148
    %v5150 = vrot.slane %v5149, 4
    %v5152 = vshll.u32 %v5110, 16
    %v5154 = vrot.slane %v5152, 5
    %v5155 = vsel %vm1329, %v5150, %v5154
    %v5156 = vshrl.u32 %v5110, 16
    %v5158 = vrot.slane %v5156, 4
    %v5159 = vor.u32 %v5158, %v5154
    %v5160 = vrot.slane %v5159, 4
    %v5162 = vshll.u32 %v5111, 16
    %v5164 = vrot.slane %v5162, 5
    %v5165 = vsel %vm1329, %v5160, %v5164
    %v5167 = vshrl.u32 %v5112, 16
    %v5169 = vrot.slane %v5167, 4
    %v5170 = vshll.u32 %v5112, 16
    %v5172 = vrot.slane %v5170, 5
    %v5173 = vor.u32 %v5169, %v5172
    %v5174 = vrot.slane %v5173, 4
    %v5176 = vshll.u32 %v5113, 16
    %v5178 = vrot.slane %v5176, 5
    %v5179 = vsel %vm1329, %v5174, %v5178
    %v5180 = vshrl.u32 %v5113, 16
    %v5182 = vrot.slane %v5180, 4
    %v5183 = vor.u32 %v5182, %v5178
    %v5184 = vrot.slane %v5183, 4
    %v5186 = vshll.u32 %v5114, 16
    %v5188 = vrot.slane %v5186, 5
    %v5189 = vsel %vm1329, %v5184, %v5188
    %v5191 = vshrl.u32 %v5115, 16
    %v5193 = vrot.slane %v5191, 4
    %v5194 = vshll.u32 %v5115, 16
    %v5196 = vrot.slane %v5194, 5
    %v5197 = vor.u32 %v5193, %v5196
    %v5198 = vrot.slane %v5197, 4
    %v5200 = vshll.u32 %v5116, 16
    %v5202 = vrot.slane %v5200, 5
    %v5203 = vsel %vm1329, %v5198, %v5202
    %v5204 = vshrl.u32 %v5116, 16
    %v5206 = vrot.slane %v5204, 4
    %v5207 = vor.u32 %v5206, %v5202
    %v5208 = vrot.slane %v5207, 4
    %v5210 = vshll.u32 %v5117, 16
    %v5212 = vrot.slane %v5210, 5
    %v5213 = vsel %vm1329, %v5208, %v5212
    %5214 = vrot.lane.b32.xlu0 %v5131, 126
    %v5215 = vpop.permute.xlu0 %5214
    %5216 = vrot.lane.b32.xlu0 %v5141, 126
    %v5217 = vpop.permute.xlu0 %5216
    %5218 = vrot.lane.b32.xlu0 %v5155, 126
    %v5219 = vpop.permute.xlu0 %5218
    %5220 = vrot.lane.b32.xlu0 %v5165, 126
    %v5221 = vpop.permute.xlu0 %5220
    %5222 = vrot.lane.b32.xlu0 %v5179, 126
    %v5223 = vpop.permute.xlu0 %5222
    %5224 = vrot.lane.b32.xlu0 %v5189, 126
    %v5225 = vpop.permute.xlu0 %5224
    %5226 = vrot.lane.b32.xlu0 %v5203, 126
    %v5227 = vpop.permute.xlu0 %5226
    %5228 = vrot.lane.b32.xlu0 %v5213, 126
    %v5229 = vpop.permute.xlu0 %5228
    %v5232 = vpack.i.b16 %v5219, %v5215
    %v5233 = vshrl.u32 %v5215, 16
    %v5234 = vshrl.u32 %v5219, 16
    %v5235 = vpack.i.b16 %v5234, %v5233
    %v5238 = vpack.i.b16 %v5227, %v5223
    %v5239 = vshrl.u32 %v5223, 16
    %v5240 = vshrl.u32 %v5227, 16
    %v5241 = vpack.i.b16 %v5240, %v5239
    %v5244 = vpack.i.b16 %v5221, %v5217
    %v5245 = vshrl.u32 %v5217, 16
    %v5246 = vshrl.u32 %v5221, 16
    %v5247 = vpack.i.b16 %v5246, %v5245
    %v5250 = vpack.i.b16 %v5229, %v5225
    %v5251 = vshrl.u32 %v5225, 16
    %v5252 = vshrl.u32 %v5229, 16
    %v5253 = vpack.i.b16 %v5252, %v5251
    %v5256 = vunpack.c.l.s4 1983009808
    %v5257 = vunpack.c.0.s8 %v5256
    %v5258 = vlaneseq
    %v5259 = vshrl.u32 %v5258, 7
    %v5260 = vsub.s32 %v5257, %v5259
    %v5261 = vrot.slane %v5232, %v5260
    %v5264 = vunpack.c.l.s4 1983009808
    %v5265 = vunpack.c.0.s8 %v5264
    %v5266 = vlaneseq
    %v5267 = vshrl.u32 %v5266, 7
    %v5268 = vsub.s32 %v5265, %v5267
    %v5269 = vrot.slane %v5238, %v5268
    %v5270 = vcombine.low %v5261, %v5269
    %v5271 = vcombine.high %v5261, %v5269
    %v5273 = vunpack.c.l.s4 1934713408
    %v5274 = vunpack.c.0.s8 %v5273
    %v5275 = vlaneseq
    %v5276 = vshrl.u32 %v5275, 7
    %v5277 = vsub.s32 %v5274, %v5276
    %v5278 = vrot.slane %v5270, %v5277
    %v5280 = vunpack.c.l.s4 1934713408
    %v5281 = vunpack.c.0.s8 %v5280
    %v5282 = vlaneseq
    %v5283 = vshrl.u32 %v5282, 7
    %v5284 = vsub.s32 %v5281, %v5283
    %v5285 = vrot.slane %v5271, %v5284
    %v5286 = vcombine.high %v5278, 0
    %v5287 = vcombine.high %v5285, 0
    %v5290 = vunpack.c.l.s4 1983009808
    %v5291 = vunpack.c.0.s8 %v5290
    %v5292 = vlaneseq
    %v5293 = vshrl.u32 %v5292, 7
    %v5294 = vsub.s32 %v5291, %v5293
    %v5295 = vrot.slane %v5235, %v5294
    %v5298 = vunpack.c.l.s4 1983009808
    %v5299 = vunpack.c.0.s8 %v5298
    %v5300 = vlaneseq
    %v5301 = vshrl.u32 %v5300, 7
    %v5302 = vsub.s32 %v5299, %v5301
    %v5303 = vrot.slane %v5241, %v5302
    %v5304 = vcombine.low %v5295, %v5303
    %v5305 = vcombine.high %v5295, %v5303
    %v5307 = vunpack.c.l.s4 1934713408
    %v5308 = vunpack.c.0.s8 %v5307
    %v5309 = vlaneseq
    %v5310 = vshrl.u32 %v5309, 7
    %v5311 = vsub.s32 %v5308, %v5310
    %v5312 = vrot.slane %v5304, %v5311
    %v5314 = vunpack.c.l.s4 1934713408
    %v5315 = vunpack.c.0.s8 %v5314
    %v5316 = vlaneseq
    %v5317 = vshrl.u32 %v5316, 7
    %v5318 = vsub.s32 %v5315, %v5317
    %v5319 = vrot.slane %v5305, %v5318
    %v5320 = vcombine.high %v5312, 0
    %v5321 = vcombine.high %v5319, 0
    %v5324 = vunpack.c.l.s4 1983009808
    %v5325 = vunpack.c.0.s8 %v5324
    %v5326 = vlaneseq
    %v5327 = vshrl.u32 %v5326, 7
    %v5328 = vsub.s32 %v5325, %v5327
    %v5329 = vrot.slane %v5244, %v5328
    %v5332 = vunpack.c.l.s4 1983009808
    %v5333 = vunpack.c.0.s8 %v5332
    %v5334 = vlaneseq
    %v5335 = vshrl.u32 %v5334, 7
    %v5336 = vsub.s32 %v5333, %v5335
    %v5337 = vrot.slane %v5250, %v5336
    %v5338 = vcombine.low %v5329, %v5337
    %v5339 = vcombine.high %v5329, %v5337
    %v5341 = vunpack.c.l.s4 1934713408
    %v5342 = vunpack.c.0.s8 %v5341
    %v5343 = vlaneseq
    %v5344 = vshrl.u32 %v5343, 7
    %v5345 = vsub.s32 %v5342, %v5344
    %v5346 = vrot.slane %v5338, %v5345
    %v5348 = vunpack.c.l.s4 1934713408
    %v5349 = vunpack.c.0.s8 %v5348
    %v5350 = vlaneseq
    %v5351 = vshrl.u32 %v5350, 7
    %v5352 = vsub.s32 %v5349, %v5351
    %v5353 = vrot.slane %v5339, %v5352
    %v5354 = vcombine.high %v5346, 0
    %v5355 = vcombine.high %v5353, 0
    %v5358 = vunpack.c.l.s4 1983009808
    %v5359 = vunpack.c.0.s8 %v5358
    %v5360 = vlaneseq
    %v5361 = vshrl.u32 %v5360, 7
    %v5362 = vsub.s32 %v5359, %v5361
    %v5363 = vrot.slane %v5247, %v5362
    %v5366 = vunpack.c.l.s4 1983009808
    %v5367 = vunpack.c.0.s8 %v5366
    %v5368 = vlaneseq
    %v5369 = vshrl.u32 %v5368, 7
    %v5370 = vsub.s32 %v5367, %v5369
    %v5371 = vrot.slane %v5253, %v5370
    %v5372 = vcombine.low %v5363, %v5371
    %v5373 = vcombine.high %v5363, %v5371
    %v5375 = vunpack.c.l.s4 1934713408
    %v5376 = vunpack.c.0.s8 %v5375
    %v5377 = vlaneseq
    %v5378 = vshrl.u32 %v5377, 7
    %v5379 = vsub.s32 %v5376, %v5378
    %v5380 = vrot.slane %v5372, %v5379
    %v5382 = vunpack.c.l.s4 1934713408
    %v5383 = vunpack.c.0.s8 %v5382
    %v5384 = vlaneseq
    %v5385 = vshrl.u32 %v5384, 7
    %v5386 = vsub.s32 %v5383, %v5385
    %v5387 = vrot.slane %v5373, %v5386
    %v5388 = vcombine.high %v5380, 0
    %v5389 = vcombine.high %v5387, 0
    %v5391 = vunpack.c.l.b16 %v5312
    %v5392 = vpack.c.b16 %v5391, %v5391
    %5393 = vrot.lane.b32.xlu0 %v5392, 16
    %v5394 = vpop.permute.xlu0 %5393
    %v5396 = vunpack.c.l.b16 %v5286
    %v5397 = vpack.c.b16 %v5396, %v5396
    %5398 = vrot.lane.b32.xlu0 %v5397, 32
    %v5399 = vpop.permute.xlu0 %5398
    %v5401 = vunpack.c.l.b16 %v5320
    %v5402 = vpack.c.b16 %v5401, %v5401
    %5403 = vrot.lane.b32.xlu0 %v5402, 48
    %v5404 = vpop.permute.xlu0 %5403
    %v5406 = vunpack.c.l.b16 %v5285
    %v5407 = vpack.c.b16 %v5406, %v5406
    %5408 = vrot.lane.b32.xlu0 %v5407, 64
    %v5409 = vpop.permute.xlu0 %5408
    %v5411 = vunpack.c.l.b16 %v5319
    %v5412 = vpack.c.b16 %v5411, %v5411
    %5413 = vrot.lane.b32.xlu0 %v5412, 80
    %v5414 = vpop.permute.xlu0 %5413
    %v5416 = vunpack.c.l.b16 %v5287
    %v5417 = vpack.c.b16 %v5416, %v5416
    %5418 = vrot.lane.b32.xlu0 %v5417, 96
    %v5419 = vpop.permute.xlu0 %5418
    %v5421 = vunpack.c.l.b16 %v5321
    %v5422 = vpack.c.b16 %v5421, %v5421
    %5423 = vrot.lane.b32.xlu0 %v5422, 112
    %v5424 = vpop.permute.xlu0 %5423
    %v5426 = vunpack.c.l.b16 %v5380
    %v5427 = vpack.c.b16 %v5426, %v5426
    %5428 = vrot.lane.b32.xlu0 %v5427, 16
    %v5429 = vpop.permute.xlu0 %5428
    %v5431 = vunpack.c.l.b16 %v5354
    %v5432 = vpack.c.b16 %v5431, %v5431
    %5433 = vrot.lane.b32.xlu0 %v5432, 32
    %v5434 = vpop.permute.xlu0 %5433
    %v5436 = vunpack.c.l.b16 %v5388
    %v5437 = vpack.c.b16 %v5436, %v5436
    %5438 = vrot.lane.b32.xlu0 %v5437, 48
    %v5439 = vpop.permute.xlu0 %5438
    %v5441 = vunpack.c.l.b16 %v5353
    %v5442 = vpack.c.b16 %v5441, %v5441
    %5443 = vrot.lane.b32.xlu0 %v5442, 64
    %v5444 = vpop.permute.xlu0 %5443
    %v5446 = vunpack.c.l.b16 %v5387
    %v5447 = vpack.c.b16 %v5446, %v5446
    %5448 = vrot.lane.b32.xlu0 %v5447, 80
    %v5449 = vpop.permute.xlu0 %5448
    %v5451 = vunpack.c.l.b16 %v5355
    %v5452 = vpack.c.b16 %v5451, %v5451
    %5453 = vrot.lane.b32.xlu0 %v5452, 96
    %v5454 = vpop.permute.xlu0 %5453
    %v5456 = vunpack.c.l.b16 %v5389
    %v5457 = vpack.c.b16 %v5456, %v5456
    %5458 = vrot.lane.b32.xlu0 %v5457, 112
    %v5459 = vpop.permute.xlu0 %5458
    %v5462 = vsel %vm673, %v5278, %v5394
    %v5464 = vsel %vm677, %v5462, %v5399
    %v5466 = vsel %vm680, %v5464, %v5404
    %v5468 = vsel %vm683, %v5466, %v5409
    %v5470 = vsel %vm686, %v5468, %v5414
    %v5472 = vsel %vm689, %v5470, %v5419
    %v5474 = vsel %vm692, %v5472, %v5424
    %v5477 = vsel %vm673, %v5346, %v5429
    %v5479 = vsel %vm677, %v5477, %v5434
    %v5481 = vsel %vm680, %v5479, %v5439
    %v5483 = vsel %vm683, %v5481, %v5444
    %v5485 = vsel %vm686, %v5483, %v5449
    %v5487 = vsel %vm689, %v5485, %v5454
    %v5489 = vsel %vm692, %v5487, %v5459
    %v5492 = vunpack.c.l.b16 %v5474
    %v5493 = vunpack.c.l.b16 %v5489
    %v5494 = vpack.c.b16 %v5493, %v5492
    %5496 = vst [vmem:[#allocation3 + $0xa8] sm:$0x33] %v5494
    %v5497 = vld [vmem:[%s406] sm:$0xe]
    %v5498 = vld [vmem:[%s406 + $0x4] sm:$0xf]
    %v5499 = vld [vmem:[%s406 + $0x8] sm:$0x1]
    %v5500 = vld [vmem:[%s406 + $0xc] sm:$0xe]
    %v5501 = vld [vmem:[%s406 + $0x10] sm:$0xf]
    %v5502 = vld [vmem:[%s406 + $0x14] sm:$0x1]
    %v5503 = vld [vmem:[%s406 + $0x18] sm:$0xe]
    %v5504 = vld [vmem:[%s406 + $0x1c] sm:$0xf]
    %v5505 = vld [vmem:[%s406 + $0x20] sm:$0x1]
    %v5506 = vld [vmem:[%s406 + $0x24] sm:$0xe]
    %v5507 = vld [vmem:[%s406 + $0x28] sm:$0xf]
    %v5508 = vld [vmem:[%s406 + $0x2c] sm:$0x1]
    %v5521 = vrot.slane %v5497, 5
    %v5522 = vrot.slane %v5521, 4
    %v5523 = vrot.slane %v5498, 5
    %v5524 = vsel %vm2501, %v5522, %v5523
    %v5525 = vrot.slane %v5523, 4
    %v5526 = vrot.slane %v5499, 5
    %v5527 = vsel %vm2501, %v5525, %v5526
    %v5528 = vrot.slane %v5500, 5
    %v5529 = vrot.slane %v5528, 4
    %v5530 = vrot.slane %v5501, 5
    %v5531 = vsel %vm2501, %v5529, %v5530
    %v5532 = vrot.slane %v5530, 4
    %v5533 = vrot.slane %v5502, 5
    %v5534 = vsel %vm2501, %v5532, %v5533
    %v5535 = vrot.slane %v5503, 5
    %v5536 = vrot.slane %v5535, 4
    %v5537 = vrot.slane %v5504, 5
    %v5538 = vsel %vm2501, %v5536, %v5537
    %v5539 = vrot.slane %v5537, 4
    %v5540 = vrot.slane %v5505, 5
    %v5541 = vsel %vm2501, %v5539, %v5540
    %v5542 = vrot.slane %v5506, 5
    %v5543 = vrot.slane %v5542, 4
    %v5544 = vrot.slane %v5507, 5
    %v5545 = vsel %vm2501, %v5543, %v5544
    %v5546 = vrot.slane %v5544, 4
    %v5547 = vrot.slane %v5508, 5
    %v5548 = vsel %vm2501, %v5546, %v5547
    %v5551 = vpack.i.b16 %v5531, %v5524
    %v5552 = vshrl.u32 %v5524, 16
    %v5553 = vshrl.u32 %v5531, 16
    %v5554 = vpack.i.b16 %v5553, %v5552
    %v5557 = vpack.i.b16 %v5545, %v5538
    %v5558 = vshrl.u32 %v5538, 16
    %v5559 = vshrl.u32 %v5545, 16
    %v5560 = vpack.i.b16 %v5559, %v5558
    %v5563 = vpack.i.b16 %v5534, %v5527
    %v5564 = vshrl.u32 %v5527, 16
    %v5565 = vshrl.u32 %v5534, 16
    %v5566 = vpack.i.b16 %v5565, %v5564
    %v5569 = vpack.i.b16 %v5548, %v5541
    %v5570 = vshrl.u32 %v5541, 16
    %v5571 = vshrl.u32 %v5548, 16
    %v5572 = vpack.i.b16 %v5571, %v5570
    %v5575 = vunpack.c.l.s4 1983009808
    %v5576 = vunpack.c.0.s8 %v5575
    %v5577 = vlaneseq
    %v5578 = vshrl.u32 %v5577, 7
    %v5579 = vsub.s32 %v5576, %v5578
    %v5580 = vrot.slane %v5551, %v5579
    %v5583 = vunpack.c.l.s4 1983009808
    %v5584 = vunpack.c.0.s8 %v5583
    %v5585 = vlaneseq
    %v5586 = vshrl.u32 %v5585, 7
    %v5587 = vsub.s32 %v5584, %v5586
    %v5588 = vrot.slane %v5557, %v5587
    %v5589 = vcombine.low %v5580, %v5588
    %v5590 = vcombine.high %v5580, %v5588
    %v5592 = vunpack.c.l.s4 1934713408
    %v5593 = vunpack.c.0.s8 %v5592
    %v5594 = vlaneseq
    %v5595 = vshrl.u32 %v5594, 7
    %v5596 = vsub.s32 %v5593, %v5595
    %v5597 = vrot.slane %v5589, %v5596
    %v5599 = vunpack.c.l.s4 1934713408
    %v5600 = vunpack.c.0.s8 %v5599
    %v5601 = vlaneseq
    %v5602 = vshrl.u32 %v5601, 7
    %v5603 = vsub.s32 %v5600, %v5602
    %v5604 = vrot.slane %v5590, %v5603
    %v5605 = vcombine.high %v5597, 0
    %v5606 = vcombine.high %v5604, 0
    %v5609 = vunpack.c.l.s4 1983009808
    %v5610 = vunpack.c.0.s8 %v5609
    %v5611 = vlaneseq
    %v5612 = vshrl.u32 %v5611, 7
    %v5613 = vsub.s32 %v5610, %v5612
    %v5614 = vrot.slane %v5554, %v5613
    %v5617 = vunpack.c.l.s4 1983009808
    %v5618 = vunpack.c.0.s8 %v5617
    %v5619 = vlaneseq
    %v5620 = vshrl.u32 %v5619, 7
    %v5621 = vsub.s32 %v5618, %v5620
    %v5622 = vrot.slane %v5560, %v5621
    %v5623 = vcombine.low %v5614, %v5622
    %v5624 = vcombine.high %v5614, %v5622
    %v5626 = vunpack.c.l.s4 1934713408
    %v5627 = vunpack.c.0.s8 %v5626
    %v5628 = vlaneseq
    %v5629 = vshrl.u32 %v5628, 7
    %v5630 = vsub.s32 %v5627, %v5629
    %v5631 = vrot.slane %v5623, %v5630
    %v5633 = vunpack.c.l.s4 1934713408
    %v5634 = vunpack.c.0.s8 %v5633
    %v5635 = vlaneseq
    %v5636 = vshrl.u32 %v5635, 7
    %v5637 = vsub.s32 %v5634, %v5636
    %v5638 = vrot.slane %v5624, %v5637
    %v5639 = vcombine.high %v5631, 0
    %v5640 = vcombine.high %v5638, 0
    %v5643 = vunpack.c.l.s4 1983009808
    %v5644 = vunpack.c.0.s8 %v5643
    %v5645 = vlaneseq
    %v5646 = vshrl.u32 %v5645, 7
    %v5647 = vsub.s32 %v5644, %v5646
    %v5648 = vrot.slane %v5563, %v5647
    %v5651 = vunpack.c.l.s4 1983009808
    %v5652 = vunpack.c.0.s8 %v5651
    %v5653 = vlaneseq
    %v5654 = vshrl.u32 %v5653, 7
    %v5655 = vsub.s32 %v5652, %v5654
    %v5656 = vrot.slane %v5569, %v5655
    %v5657 = vcombine.low %v5648, %v5656
    %v5658 = vcombine.high %v5648, %v5656
    %v5660 = vunpack.c.l.s4 1934713408
    %v5661 = vunpack.c.0.s8 %v5660
    %v5662 = vlaneseq
    %v5663 = vshrl.u32 %v5662, 7
    %v5664 = vsub.s32 %v5661, %v5663
    %v5665 = vrot.slane %v5657, %v5664
    %v5667 = vunpack.c.l.s4 1934713408
    %v5668 = vunpack.c.0.s8 %v5667
    %v5669 = vlaneseq
    %v5670 = vshrl.u32 %v5669, 7
    %v5671 = vsub.s32 %v5668, %v5670
    %v5672 = vrot.slane %v5658, %v5671
    %v5673 = vcombine.high %v5665, 0
    %v5674 = vcombine.high %v5672, 0
    %v5677 = vunpack.c.l.s4 1983009808
    %v5678 = vunpack.c.0.s8 %v5677
    %v5679 = vlaneseq
    %v5680 = vshrl.u32 %v5679, 7
    %v5681 = vsub.s32 %v5678, %v5680
    %v5682 = vrot.slane %v5566, %v5681
    %v5685 = vunpack.c.l.s4 1983009808
    %v5686 = vunpack.c.0.s8 %v5685
    %v5687 = vlaneseq
    %v5688 = vshrl.u32 %v5687, 7
    %v5689 = vsub.s32 %v5686, %v5688
    %v5690 = vrot.slane %v5572, %v5689
    %v5691 = vcombine.low %v5682, %v5690
    %v5692 = vcombine.high %v5682, %v5690
    %v5694 = vunpack.c.l.s4 1934713408
    %v5695 = vunpack.c.0.s8 %v5694
    %v5696 = vlaneseq
    %v5697 = vshrl.u32 %v5696, 7
    %v5698 = vsub.s32 %v5695, %v5697
    %v5699 = vrot.slane %v5691, %v5698
    %v5701 = vunpack.c.l.s4 1934713408
    %v5702 = vunpack.c.0.s8 %v5701
    %v5703 = vlaneseq
    %v5704 = vshrl.u32 %v5703, 7
    %v5705 = vsub.s32 %v5702, %v5704
    %v5706 = vrot.slane %v5692, %v5705
    %v5707 = vcombine.high %v5699, 0
    %v5708 = vcombine.high %v5706, 0
    %v5710 = vunpack.c.l.b16 %v5631
    %v5711 = vpack.c.b16 %v5710, %v5710
    %5712 = vrot.lane.b32.xlu0 %v5711, 16
    %v5713 = vpop.permute.xlu0 %5712
    %v5715 = vunpack.c.l.b16 %v5605
    %v5716 = vpack.c.b16 %v5715, %v5715
    %5717 = vrot.lane.b32.xlu0 %v5716, 32
    %v5718 = vpop.permute.xlu0 %5717
    %v5720 = vunpack.c.l.b16 %v5639
    %v5721 = vpack.c.b16 %v5720, %v5720
    %5722 = vrot.lane.b32.xlu0 %v5721, 48
    %v5723 = vpop.permute.xlu0 %5722
    %v5725 = vunpack.c.l.b16 %v5604
    %v5726 = vpack.c.b16 %v5725, %v5725
    %5727 = vrot.lane.b32.xlu0 %v5726, 64
    %v5728 = vpop.permute.xlu0 %5727
    %v5730 = vunpack.c.l.b16 %v5638
    %v5731 = vpack.c.b16 %v5730, %v5730
    %5732 = vrot.lane.b32.xlu0 %v5731, 80
    %v5733 = vpop.permute.xlu0 %5732
    %v5735 = vunpack.c.l.b16 %v5606
    %v5736 = vpack.c.b16 %v5735, %v5735
    %5737 = vrot.lane.b32.xlu0 %v5736, 96
    %v5738 = vpop.permute.xlu0 %5737
    %v5740 = vunpack.c.l.b16 %v5640
    %v5741 = vpack.c.b16 %v5740, %v5740
    %5742 = vrot.lane.b32.xlu0 %v5741, 112
    %v5743 = vpop.permute.xlu0 %5742
    %v5745 = vunpack.c.l.b16 %v5699
    %v5746 = vpack.c.b16 %v5745, %v5745
    %5747 = vrot.lane.b32.xlu0 %v5746, 16
    %v5748 = vpop.permute.xlu0 %5747
    %v5750 = vunpack.c.l.b16 %v5673
    %v5751 = vpack.c.b16 %v5750, %v5750
    %5752 = vrot.lane.b32.xlu0 %v5751, 32
    %v5753 = vpop.permute.xlu0 %5752
    %v5755 = vunpack.c.l.b16 %v5707
    %v5756 = vpack.c.b16 %v5755, %v5755
    %5757 = vrot.lane.b32.xlu0 %v5756, 48
    %v5758 = vpop.permute.xlu0 %5757
    %v5760 = vunpack.c.l.b16 %v5672
    %v5761 = vpack.c.b16 %v5760, %v5760
    %5762 = vrot.lane.b32.xlu0 %v5761, 64
    %v5763 = vpop.permute.xlu0 %5762
    %v5765 = vunpack.c.l.b16 %v5706
    %v5766 = vpack.c.b16 %v5765, %v5765
    %5767 = vrot.lane.b32.xlu0 %v5766, 80
    %v5768 = vpop.permute.xlu0 %5767
    %v5770 = vunpack.c.l.b16 %v5674
    %v5771 = vpack.c.b16 %v5770, %v5770
    %5772 = vrot.lane.b32.xlu0 %v5771, 96
    %v5773 = vpop.permute.xlu0 %5772
    %v5775 = vunpack.c.l.b16 %v5708
    %v5776 = vpack.c.b16 %v5775, %v5775
    %5777 = vrot.lane.b32.xlu0 %v5776, 112
    %v5778 = vpop.permute.xlu0 %5777
    %v5781 = vsel %vm673, %v5597, %v5713
    %v5783 = vsel %vm677, %v5781, %v5718
    %v5785 = vsel %vm680, %v5783, %v5723
    %v5787 = vsel %vm683, %v5785, %v5728
    %v5789 = vsel %vm686, %v5787, %v5733
    %v5791 = vsel %vm689, %v5789, %v5738
    %v5793 = vsel %vm692, %v5791, %v5743
    %v5796 = vsel %vm673, %v5665, %v5748
    %v5798 = vsel %vm677, %v5796, %v5753
    %v5800 = vsel %vm680, %v5798, %v5758
    %v5802 = vsel %vm683, %v5800, %v5763
    %v5804 = vsel %vm686, %v5802, %v5768
    %v5806 = vsel %vm689, %v5804, %v5773
    %v5808 = vsel %vm692, %v5806, %v5778
    %v5811 = vunpack.c.l.b16 %v5793
    %v5812 = vunpack.c.l.b16 %v5808
    %v5813 = vpack.c.b16 %v5812, %v5811
    %5815 = vst [vmem:[#allocation3 + $0xc8] sm:$0x33] %v5813
    %v5816 = vld [vmem:[%s406] sm:$0xe]
    %v5817 = vld [vmem:[%s406 + $0x4] sm:$0xf]
    %v5818 = vld [vmem:[%s406 + $0x8] sm:$0x1]
    %v5819 = vld [vmem:[%s406 + $0xc] sm:$0xe]
    %v5820 = vld [vmem:[%s406 + $0x10] sm:$0xf]
    %v5821 = vld [vmem:[%s406 + $0x14] sm:$0x1]
    %v5822 = vld [vmem:[%s406 + $0x18] sm:$0xe]
    %v5823 = vld [vmem:[%s406 + $0x1c] sm:$0xf]
    %v5824 = vld [vmem:[%s406 + $0x20] sm:$0x1]
    %v5825 = vld [vmem:[%s406 + $0x24] sm:$0xe]
    %v5826 = vld [vmem:[%s406 + $0x28] sm:$0xf]
    %v5827 = vld [vmem:[%s406 + $0x2c] sm:$0x1]
    %v5840 = vrot.slane %v5816, 5
    %v5841 = vrot.slane %v5840, 4
    %v5842 = vrot.slane %v5817, 5
    %v5843 = vsel %vm2501, %v5841, %v5842
    %v5844 = vrot.slane %v5842, 4
    %v5845 = vrot.slane %v5818, 5
    %v5846 = vsel %vm2501, %v5844, %v5845
    %v5847 = vrot.slane %v5819, 5
    %v5848 = vrot.slane %v5847, 4
    %v5849 = vrot.slane %v5820, 5
    %v5850 = vsel %vm2501, %v5848, %v5849
    %v5851 = vrot.slane %v5849, 4
    %v5852 = vrot.slane %v5821, 5
    %v5853 = vsel %vm2501, %v5851, %v5852
    %v5854 = vrot.slane %v5822, 5
    %v5855 = vrot.slane %v5854, 4
    %v5856 = vrot.slane %v5823, 5
    %v5857 = vsel %vm2501, %v5855, %v5856
    %v5858 = vrot.slane %v5856, 4
    %v5859 = vrot.slane %v5824, 5
    %v5860 = vsel %vm2501, %v5858, %v5859
    %v5861 = vrot.slane %v5825, 5
    %v5862 = vrot.slane %v5861, 4
    %v5863 = vrot.slane %v5826, 5
    %v5864 = vsel %vm2501, %v5862, %v5863
    %v5865 = vrot.slane %v5863, 4
    %v5866 = vrot.slane %v5827, 5
    %v5867 = vsel %vm2501, %v5865, %v5866
    %5868 = vrot.lane.b32.xlu0 %v5843, 127
    %v5869 = vpop.permute.xlu0 %5868
    %5870 = vrot.lane.b32.xlu0 %v5846, 127
    %v5871 = vpop.permute.xlu0 %5870
    %5872 = vrot.lane.b32.xlu0 %v5850, 127
    %v5873 = vpop.permute.xlu0 %5872
    %5874 = vrot.lane.b32.xlu0 %v5853, 127
    %v5875 = vpop.permute.xlu0 %5874
    %5876 = vrot.lane.b32.xlu0 %v5857, 127
    %v5877 = vpop.permute.xlu0 %5876
    %5878 = vrot.lane.b32.xlu0 %v5860, 127
    %v5879 = vpop.permute.xlu0 %5878
    %5880 = vrot.lane.b32.xlu0 %v5864, 127
    %v5881 = vpop.permute.xlu0 %5880
    %5882 = vrot.lane.b32.xlu0 %v5867, 127
    %v5883 = vpop.permute.xlu0 %5882
    %v5886 = vpack.i.b16 %v5873, %v5869
    %v5887 = vshrl.u32 %v5869, 16
    %v5888 = vshrl.u32 %v5873, 16
    %v5889 = vpack.i.b16 %v5888, %v5887
    %v5892 = vpack.i.b16 %v5881, %v5877
    %v5893 = vshrl.u32 %v5877, 16
    %v5894 = vshrl.u32 %v5881, 16
    %v5895 = vpack.i.b16 %v5894, %v5893
    %v5898 = vpack.i.b16 %v5875, %v5871
    %v5899 = vshrl.u32 %v5871, 16
    %v5900 = vshrl.u32 %v5875, 16
    %v5901 = vpack.i.b16 %v5900, %v5899
    %v5904 = vpack.i.b16 %v5883, %v5879
    %v5905 = vshrl.u32 %v5879, 16
    %v5906 = vshrl.u32 %v5883, 16
    %v5907 = vpack.i.b16 %v5906, %v5905
    %v5910 = vunpack.c.l.s4 1983009808
    %v5911 = vunpack.c.0.s8 %v5910
    %v5912 = vlaneseq
    %v5913 = vshrl.u32 %v5912, 7
    %v5914 = vsub.s32 %v5911, %v5913
    %v5915 = vrot.slane %v5886, %v5914
    %v5918 = vunpack.c.l.s4 1983009808
    %v5919 = vunpack.c.0.s8 %v5918
    %v5920 = vlaneseq
    %v5921 = vshrl.u32 %v5920, 7
    %v5922 = vsub.s32 %v5919, %v5921
    %v5923 = vrot.slane %v5892, %v5922
    %v5924 = vcombine.low %v5915, %v5923
    %v5925 = vcombine.high %v5915, %v5923
    %v5927 = vunpack.c.l.s4 1934713408
    %v5928 = vunpack.c.0.s8 %v5927
    %v5929 = vlaneseq
    %v5930 = vshrl.u32 %v5929, 7
    %v5931 = vsub.s32 %v5928, %v5930
    %v5932 = vrot.slane %v5924, %v5931
    %v5934 = vunpack.c.l.s4 1934713408
    %v5935 = vunpack.c.0.s8 %v5934
    %v5936 = vlaneseq
    %v5937 = vshrl.u32 %v5936, 7
    %v5938 = vsub.s32 %v5935, %v5937
    %v5939 = vrot.slane %v5925, %v5938
    %v5940 = vcombine.high %v5932, 0
    %v5941 = vcombine.high %v5939, 0
    %v5944 = vunpack.c.l.s4 1983009808
    %v5945 = vunpack.c.0.s8 %v5944
    %v5946 = vlaneseq
    %v5947 = vshrl.u32 %v5946, 7
    %v5948 = vsub.s32 %v5945, %v5947
    %v5949 = vrot.slane %v5889, %v5948
    %v5952 = vunpack.c.l.s4 1983009808
    %v5953 = vunpack.c.0.s8 %v5952
    %v5954 = vlaneseq
    %v5955 = vshrl.u32 %v5954, 7
    %v5956 = vsub.s32 %v5953, %v5955
    %v5957 = vrot.slane %v5895, %v5956
    %v5958 = vcombine.low %v5949, %v5957
    %v5959 = vcombine.high %v5949, %v5957
    %v5961 = vunpack.c.l.s4 1934713408
    %v5962 = vunpack.c.0.s8 %v5961
    %v5963 = vlaneseq
    %v5964 = vshrl.u32 %v5963, 7
    %v5965 = vsub.s32 %v5962, %v5964
    %v5966 = vrot.slane %v5958, %v5965
    %v5968 = vunpack.c.l.s4 1934713408
    %v5969 = vunpack.c.0.s8 %v5968
    %v5970 = vlaneseq
    %v5971 = vshrl.u32 %v5970, 7
    %v5972 = vsub.s32 %v5969, %v5971
    %v5973 = vrot.slane %v5959, %v5972
    %v5974 = vcombine.high %v5966, 0
    %v5975 = vcombine.high %v5973, 0
    %v5978 = vunpack.c.l.s4 1983009808
    %v5979 = vunpack.c.0.s8 %v5978
    %v5980 = vlaneseq
    %v5981 = vshrl.u32 %v5980, 7
    %v5982 = vsub.s32 %v5979, %v5981
    %v5983 = vrot.slane %v5898, %v5982
    %v5986 = vunpack.c.l.s4 1983009808
    %v5987 = vunpack.c.0.s8 %v5986
    %v5988 = vlaneseq
    %v5989 = vshrl.u32 %v5988, 7
    %v5990 = vsub.s32 %v5987, %v5989
    %v5991 = vrot.slane %v5904, %v5990
    %v5992 = vcombine.low %v5983, %v5991
    %v5993 = vcombine.high %v5983, %v5991
    %v5995 = vunpack.c.l.s4 1934713408
    %v5996 = vunpack.c.0.s8 %v5995
    %v5997 = vlaneseq
    %v5998 = vshrl.u32 %v5997, 7
    %v5999 = vsub.s32 %v5996, %v5998
    %v6000 = vrot.slane %v5992, %v5999
    %v6002 = vunpack.c.l.s4 1934713408
    %v6003 = vunpack.c.0.s8 %v6002
    %v6004 = vlaneseq
    %v6005 = vshrl.u32 %v6004, 7
    %v6006 = vsub.s32 %v6003, %v6005
    %v6007 = vrot.slane %v5993, %v6006
    %v6008 = vcombine.high %v6000, 0
    %v6009 = vcombine.high %v6007, 0
    %v6012 = vunpack.c.l.s4 1983009808
    %v6013 = vunpack.c.0.s8 %v6012
    %v6014 = vlaneseq
    %v6015 = vshrl.u32 %v6014, 7
    %v6016 = vsub.s32 %v6013, %v6015
    %v6017 = vrot.slane %v5901, %v6016
    %v6020 = vunpack.c.l.s4 1983009808
    %v6021 = vunpack.c.0.s8 %v6020
    %v6022 = vlaneseq
    %v6023 = vshrl.u32 %v6022, 7
    %v6024 = vsub.s32 %v6021, %v6023
    %v6025 = vrot.slane %v5907, %v6024
    %v6026 = vcombine.low %v6017, %v6025
    %v6027 = vcombine.high %v6017, %v6025
    %v6029 = vunpack.c.l.s4 1934713408
    %v6030 = vunpack.c.0.s8 %v6029
    %v6031 = vlaneseq
    %v6032 = vshrl.u32 %v6031, 7
    %v6033 = vsub.s32 %v6030, %v6032
    %v6034 = vrot.slane %v6026, %v6033
    %v6036 = vunpack.c.l.s4 1934713408
    %v6037 = vunpack.c.0.s8 %v6036
    %v6038 = vlaneseq
    %v6039 = vshrl.u32 %v6038, 7
    %v6040 = vsub.s32 %v6037, %v6039
    %v6041 = vrot.slane %v6027, %v6040
    %v6042 = vcombine.high %v6034, 0
    %v6043 = vcombine.high %v6041, 0
    %v6045 = vunpack.c.l.b16 %v5966
    %v6046 = vpack.c.b16 %v6045, %v6045
    %6047 = vrot.lane.b32.xlu0 %v6046, 16
    %v6048 = vpop.permute.xlu0 %6047
    %v6050 = vunpack.c.l.b16 %v5940
    %v6051 = vpack.c.b16 %v6050, %v6050
    %6052 = vrot.lane.b32.xlu0 %v6051, 32
    %v6053 = vpop.permute.xlu0 %6052
    %v6055 = vunpack.c.l.b16 %v5974
    %v6056 = vpack.c.b16 %v6055, %v6055
    %6057 = vrot.lane.b32.xlu0 %v6056, 48
    %v6058 = vpop.permute.xlu0 %6057
    %v6060 = vunpack.c.l.b16 %v5939
    %v6061 = vpack.c.b16 %v6060, %v6060
    %6062 = vrot.lane.b32.xlu0 %v6061, 64
    %v6063 = vpop.permute.xlu0 %6062
    %v6065 = vunpack.c.l.b16 %v5973
    %v6066 = vpack.c.b16 %v6065, %v6065
    %6067 = vrot.lane.b32.xlu0 %v6066, 80
    %v6068 = vpop.permute.xlu0 %6067
    %v6070 = vunpack.c.l.b16 %v5941
    %v6071 = vpack.c.b16 %v6070, %v6070
    %6072 = vrot.lane.b32.xlu0 %v6071, 96
    %v6073 = vpop.permute.xlu0 %6072
    %v6075 = vunpack.c.l.b16 %v5975
    %v6076 = vpack.c.b16 %v6075, %v6075
    %6077 = vrot.lane.b32.xlu0 %v6076, 112
    %v6078 = vpop.permute.xlu0 %6077
    %v6080 = vunpack.c.l.b16 %v6034
    %v6081 = vpack.c.b16 %v6080, %v6080
    %6082 = vrot.lane.b32.xlu0 %v6081, 16
    %v6083 = vpop.permute.xlu0 %6082
    %v6085 = vunpack.c.l.b16 %v6008
    %v6086 = vpack.c.b16 %v6085, %v6085
    %6087 = vrot.lane.b32.xlu0 %v6086, 32
    %v6088 = vpop.permute.xlu0 %6087
    %v6090 = vunpack.c.l.b16 %v6042
    %v6091 = vpack.c.b16 %v6090, %v6090
    %6092 = vrot.lane.b32.xlu0 %v6091, 48
    %v6093 = vpop.permute.xlu0 %6092
    %v6095 = vunpack.c.l.b16 %v6007
    %v6096 = vpack.c.b16 %v6095, %v6095
    %6097 = vrot.lane.b32.xlu0 %v6096, 64
    %v6098 = vpop.permute.xlu0 %6097
    %v6100 = vunpack.c.l.b16 %v6041
    %v6101 = vpack.c.b16 %v6100, %v6100
    %6102 = vrot.lane.b32.xlu0 %v6101, 80
    %v6103 = vpop.permute.xlu0 %6102
    %v6105 = vunpack.c.l.b16 %v6009
    %v6106 = vpack.c.b16 %v6105, %v6105
    %6107 = vrot.lane.b32.xlu0 %v6106, 96
    %v6108 = vpop.permute.xlu0 %6107
    %v6110 = vunpack.c.l.b16 %v6043
    %v6111 = vpack.c.b16 %v6110, %v6110
    %6112 = vrot.lane.b32.xlu0 %v6111, 112
    %v6113 = vpop.permute.xlu0 %6112
    %v6116 = vsel %vm673, %v5932, %v6048
    %v6118 = vsel %vm677, %v6116, %v6053
    %v6120 = vsel %vm680, %v6118, %v6058
    %v6122 = vsel %vm683, %v6120, %v6063
    %v6124 = vsel %vm686, %v6122, %v6068
    %v6126 = vsel %vm689, %v6124, %v6073
    %v6128 = vsel %vm692, %v6126, %v6078
    %v6131 = vsel %vm673, %v6000, %v6083
    %v6133 = vsel %vm677, %v6131, %v6088
    %v6135 = vsel %vm680, %v6133, %v6093
    %v6137 = vsel %vm683, %v6135, %v6098
    %v6139 = vsel %vm686, %v6137, %v6103
    %v6141 = vsel %vm689, %v6139, %v6108
    %v6143 = vsel %vm692, %v6141, %v6113
    %v6146 = vunpack.c.l.b16 %v6128
    %v6147 = vunpack.c.l.b16 %v6143
    %v6148 = vpack.c.b16 %v6147, %v6146
    %6150 = vst [vmem:[#allocation3 + $0xe8] sm:$0x33] %v6148
    %v6151 = vld [vmem:[%s406] sm:$0xe]
    %v6152 = vld [vmem:[%s406 + $0x4] sm:$0xf]
    %v6153 = vld [vmem:[%s406 + $0x8] sm:$0x1]
    %v6154 = vld [vmem:[%s406 + $0xc] sm:$0xe]
    %v6155 = vld [vmem:[%s406 + $0x10] sm:$0xf]
    %v6156 = vld [vmem:[%s406 + $0x14] sm:$0x1]
    %v6157 = vld [vmem:[%s406 + $0x18] sm:$0xe]
    %v6158 = vld [vmem:[%s406 + $0x1c] sm:$0xf]
    %v6159 = vld [vmem:[%s406 + $0x20] sm:$0x1]
    %v6160 = vld [vmem:[%s406 + $0x24] sm:$0xe]
    %v6161 = vld [vmem:[%s406 + $0x28] sm:$0xf]
    %v6162 = vld [vmem:[%s406 + $0x2c] sm:$0x1]
    %v6175 = vrot.slane %v6151, 5
    %v6176 = vrot.slane %v6175, 4
    %v6177 = vrot.slane %v6152, 5
    %v6178 = vsel %vm2501, %v6176, %v6177
    %v6179 = vrot.slane %v6177, 4
    %v6180 = vrot.slane %v6153, 5
    %v6181 = vsel %vm2501, %v6179, %v6180
    %v6182 = vrot.slane %v6154, 5
    %v6183 = vrot.slane %v6182, 4
    %v6184 = vrot.slane %v6155, 5
    %v6185 = vsel %vm2501, %v6183, %v6184
    %v6186 = vrot.slane %v6184, 4
    %v6187 = vrot.slane %v6156, 5
    %v6188 = vsel %vm2501, %v6186, %v6187
    %v6189 = vrot.slane %v6157, 5
    %v6190 = vrot.slane %v6189, 4
    %v6191 = vrot.slane %v6158, 5
    %v6192 = vsel %vm2501, %v6190, %v6191
    %v6193 = vrot.slane %v6191, 4
    %v6194 = vrot.slane %v6159, 5
    %v6195 = vsel %vm2501, %v6193, %v6194
    %v6196 = vrot.slane %v6160, 5
    %v6197 = vrot.slane %v6196, 4
    %v6198 = vrot.slane %v6161, 5
    %v6199 = vsel %vm2501, %v6197, %v6198
    %v6200 = vrot.slane %v6198, 4
    %v6201 = vrot.slane %v6162, 5
    %v6202 = vsel %vm2501, %v6200, %v6201
    %6203 = vrot.lane.b32.xlu0 %v6178, 126
    %v6204 = vpop.permute.xlu0 %6203
    %6205 = vrot.lane.b32.xlu0 %v6181, 126
    %v6206 = vpop.permute.xlu0 %6205
    %6207 = vrot.lane.b32.xlu0 %v6185, 126
    %v6208 = vpop.permute.xlu0 %6207
    %6209 = vrot.lane.b32.xlu0 %v6188, 126
    %v6210 = vpop.permute.xlu0 %6209
    %6211 = vrot.lane.b32.xlu0 %v6192, 126
    %v6212 = vpop.permute.xlu0 %6211
    %6213 = vrot.lane.b32.xlu0 %v6195, 126
    %v6214 = vpop.permute.xlu0 %6213
    %6215 = vrot.lane.b32.xlu0 %v6199, 126
    %v6216 = vpop.permute.xlu0 %6215
    %6217 = vrot.lane.b32.xlu0 %v6202, 126
    %v6218 = vpop.permute.xlu0 %6217
    %v6221 = vpack.i.b16 %v6208, %v6204
    %v6222 = vshrl.u32 %v6204, 16
    %v6223 = vshrl.u32 %v6208, 16
    %v6224 = vpack.i.b16 %v6223, %v6222
    %v6227 = vpack.i.b16 %v6216, %v6212
    %v6228 = vshrl.u32 %v6212, 16
    %v6229 = vshrl.u32 %v6216, 16
    %v6230 = vpack.i.b16 %v6229, %v6228
    %v6233 = vpack.i.b16 %v6210, %v6206
    %v6234 = vshrl.u32 %v6206, 16
    %v6235 = vshrl.u32 %v6210, 16
    %v6236 = vpack.i.b16 %v6235, %v6234
    %v6239 = vpack.i.b16 %v6218, %v6214
    %v6240 = vshrl.u32 %v6214, 16
    %v6241 = vshrl.u32 %v6218, 16
    %v6242 = vpack.i.b16 %v6241, %v6240
    %v6245 = vunpack.c.l.s4 1983009808
    %v6246 = vunpack.c.0.s8 %v6245
    %v6247 = vlaneseq
    %v6248 = vshrl.u32 %v6247, 7
    %v6249 = vsub.s32 %v6246, %v6248
    %v6250 = vrot.slane %v6221, %v6249
    %v6253 = vunpack.c.l.s4 1983009808
    %v6254 = vunpack.c.0.s8 %v6253
    %v6255 = vlaneseq
    %v6256 = vshrl.u32 %v6255, 7
    %v6257 = vsub.s32 %v6254, %v6256
    %v6258 = vrot.slane %v6227, %v6257
    %v6259 = vcombine.low %v6250, %v6258
    %v6260 = vcombine.high %v6250, %v6258
    %v6262 = vunpack.c.l.s4 1934713408
    %v6263 = vunpack.c.0.s8 %v6262
    %v6264 = vlaneseq
    %v6265 = vshrl.u32 %v6264, 7
    %v6266 = vsub.s32 %v6263, %v6265
    %v6267 = vrot.slane %v6259, %v6266
    %v6269 = vunpack.c.l.s4 1934713408
    %v6270 = vunpack.c.0.s8 %v6269
    %v6271 = vlaneseq
    %v6272 = vshrl.u32 %v6271, 7
    %v6273 = vsub.s32 %v6270, %v6272
    %v6274 = vrot.slane %v6260, %v6273
    %v6275 = vcombine.high %v6267, 0
    %v6276 = vcombine.high %v6274, 0
    %v6279 = vunpack.c.l.s4 1983009808
    %v6280 = vunpack.c.0.s8 %v6279
    %v6281 = vlaneseq
    %v6282 = vshrl.u32 %v6281, 7
    %v6283 = vsub.s32 %v6280, %v6282
    %v6284 = vrot.slane %v6224, %v6283
    %v6287 = vunpack.c.l.s4 1983009808
    %v6288 = vunpack.c.0.s8 %v6287
    %v6289 = vlaneseq
    %v6290 = vshrl.u32 %v6289, 7
    %v6291 = vsub.s32 %v6288, %v6290
    %v6292 = vrot.slane %v6230, %v6291
    %v6293 = vcombine.low %v6284, %v6292
    %v6294 = vcombine.high %v6284, %v6292
    %v6296 = vunpack.c.l.s4 1934713408
    %v6297 = vunpack.c.0.s8 %v6296
    %v6298 = vlaneseq
    %v6299 = vshrl.u32 %v6298, 7
    %v6300 = vsub.s32 %v6297, %v6299
    %v6301 = vrot.slane %v6293, %v6300
    %v6303 = vunpack.c.l.s4 1934713408
    %v6304 = vunpack.c.0.s8 %v6303
    %v6305 = vlaneseq
    %v6306 = vshrl.u32 %v6305, 7
    %v6307 = vsub.s32 %v6304, %v6306
    %v6308 = vrot.slane %v6294, %v6307
    %v6309 = vcombine.high %v6301, 0
    %v6310 = vcombine.high %v6308, 0
    %v6313 = vunpack.c.l.s4 1983009808
    %v6314 = vunpack.c.0.s8 %v6313
    %v6315 = vlaneseq
    %v6316 = vshrl.u32 %v6315, 7
    %v6317 = vsub.s32 %v6314, %v6316
    %v6318 = vrot.slane %v6233, %v6317
    %v6321 = vunpack.c.l.s4 1983009808
    %v6322 = vunpack.c.0.s8 %v6321
    %v6323 = vlaneseq
    %v6324 = vshrl.u32 %v6323, 7
    %v6325 = vsub.s32 %v6322, %v6324
    %v6326 = vrot.slane %v6239, %v6325
    %v6327 = vcombine.low %v6318, %v6326
    %v6328 = vcombine.high %v6318, %v6326
    %v6330 = vunpack.c.l.s4 1934713408
    %v6331 = vunpack.c.0.s8 %v6330
    %v6332 = vlaneseq
    %v6333 = vshrl.u32 %v6332, 7
    %v6334 = vsub.s32 %v6331, %v6333
    %v6335 = vrot.slane %v6327, %v6334
    %v6337 = vunpack.c.l.s4 1934713408
    %v6338 = vunpack.c.0.s8 %v6337
    %v6339 = vlaneseq
    %v6340 = vshrl.u32 %v6339, 7
    %v6341 = vsub.s32 %v6338, %v6340
    %v6342 = vrot.slane %v6328, %v6341
    %v6343 = vcombine.high %v6335, 0
    %v6344 = vcombine.high %v6342, 0
    %v6347 = vunpack.c.l.s4 1983009808
    %v6348 = vunpack.c.0.s8 %v6347
    %v6349 = vlaneseq
    %v6350 = vshrl.u32 %v6349, 7
    %v6351 = vsub.s32 %v6348, %v6350
    %v6352 = vrot.slane %v6236, %v6351
    %v6355 = vunpack.c.l.s4 1983009808
    %v6356 = vunpack.c.0.s8 %v6355
    %v6357 = vlaneseq
    %v6358 = vshrl.u32 %v6357, 7
    %v6359 = vsub.s32 %v6356, %v6358
    %v6360 = vrot.slane %v6242, %v6359
    %v6361 = vcombine.low %v6352, %v6360
    %v6362 = vcombine.high %v6352, %v6360
    %v6364 = vunpack.c.l.s4 1934713408
    %v6365 = vunpack.c.0.s8 %v6364
    %v6366 = vlaneseq
    %v6367 = vshrl.u32 %v6366, 7
    %v6368 = vsub.s32 %v6365, %v6367
    %v6369 = vrot.slane %v6361, %v6368
    %v6371 = vunpack.c.l.s4 1934713408
    %v6372 = vunpack.c.0.s8 %v6371
    %v6373 = vlaneseq
    %v6374 = vshrl.u32 %v6373, 7
    %v6375 = vsub.s32 %v6372, %v6374
    %v6376 = vrot.slane %v6362, %v6375
    %v6377 = vcombine.high %v6369, 0
    %v6378 = vcombine.high %v6376, 0
    %v6380 = vunpack.c.l.b16 %v6301
    %v6381 = vpack.c.b16 %v6380, %v6380
    %6382 = vrot.lane.b32.xlu0 %v6381, 16
    %v6383 = vpop.permute.xlu0 %6382
    %v6385 = vunpack.c.l.b16 %v6275
    %v6386 = vpack.c.b16 %v6385, %v6385
    %6387 = vrot.lane.b32.xlu0 %v6386, 32
    %v6388 = vpop.permute.xlu0 %6387
    %v6390 = vunpack.c.l.b16 %v6309
    %v6391 = vpack.c.b16 %v6390, %v6390
    %6392 = vrot.lane.b32.xlu0 %v6391, 48
    %v6393 = vpop.permute.xlu0 %6392
    %v6395 = vunpack.c.l.b16 %v6274
    %v6396 = vpack.c.b16 %v6395, %v6395
    %6397 = vrot.lane.b32.xlu0 %v6396, 64
    %v6398 = vpop.permute.xlu0 %6397
    %v6400 = vunpack.c.l.b16 %v6308
    %v6401 = vpack.c.b16 %v6400, %v6400
    %6402 = vrot.lane.b32.xlu0 %v6401, 80
    %v6403 = vpop.permute.xlu0 %6402
    %v6405 = vunpack.c.l.b16 %v6276
    %v6406 = vpack.c.b16 %v6405, %v6405
    %6407 = vrot.lane.b32.xlu0 %v6406, 96
    %v6408 = vpop.permute.xlu0 %6407
    %v6410 = vunpack.c.l.b16 %v6310
    %v6411 = vpack.c.b16 %v6410, %v6410
    %6412 = vrot.lane.b32.xlu0 %v6411, 112
    %v6413 = vpop.permute.xlu0 %6412
    %v6415 = vunpack.c.l.b16 %v6369
    %v6416 = vpack.c.b16 %v6415, %v6415
    %6417 = vrot.lane.b32.xlu0 %v6416, 16
    %v6418 = vpop.permute.xlu0 %6417
    %v6420 = vunpack.c.l.b16 %v6343
    %v6421 = vpack.c.b16 %v6420, %v6420
    %6422 = vrot.lane.b32.xlu0 %v6421, 32
    %v6423 = vpop.permute.xlu0 %6422
    %v6425 = vunpack.c.l.b16 %v6377
    %v6426 = vpack.c.b16 %v6425, %v6425
    %6427 = vrot.lane.b32.xlu0 %v6426, 48
    %v6428 = vpop.permute.xlu0 %6427
    %v6430 = vunpack.c.l.b16 %v6342
    %v6431 = vpack.c.b16 %v6430, %v6430
    %6432 = vrot.lane.b32.xlu0 %v6431, 64
    %v6433 = vpop.permute.xlu0 %6432
    %v6435 = vunpack.c.l.b16 %v6376
    %v6436 = vpack.c.b16 %v6435, %v6435
    %6437 = vrot.lane.b32.xlu0 %v6436, 80
    %v6438 = vpop.permute.xlu0 %6437
    %v6440 = vunpack.c.l.b16 %v6344
    %v6441 = vpack.c.b16 %v6440, %v6440
    %6442 = vrot.lane.b32.xlu0 %v6441, 96
    %v6443 = vpop.permute.xlu0 %6442
    %v6445 = vunpack.c.l.b16 %v6378
    %v6446 = vpack.c.b16 %v6445, %v6445
    %6447 = vrot.lane.b32.xlu0 %v6446, 112
    %v6448 = vpop.permute.xlu0 %6447
    %v6451 = vsel %vm673, %v6267, %v6383
    %v6453 = vsel %vm677, %v6451, %v6388
    %v6455 = vsel %vm680, %v6453, %v6393
    %v6457 = vsel %vm683, %v6455, %v6398
    %v6459 = vsel %vm686, %v6457, %v6403
    %v6461 = vsel %vm689, %v6459, %v6408
    %v6463 = vsel %vm692, %v6461, %v6413
    %v6466 = vsel %vm673, %v6335, %v6418
    %v6468 = vsel %vm677, %v6466, %v6423
    %v6470 = vsel %vm680, %v6468, %v6428
    %v6472 = vsel %vm683, %v6470, %v6433
    %v6474 = vsel %vm686, %v6472, %v6438
    %v6476 = vsel %vm689, %v6474, %v6443
    %v6478 = vsel %vm692, %v6476, %v6448
    %v6481 = vunpack.c.l.b16 %v6463
    %v6482 = vunpack.c.l.b16 %v6478
    %v6483 = vpack.c.b16 %v6482, %v6481
    %6485 = vst [vmem:[#allocation3 + $0x108] sm:$0x33] %v6483
    %v6486 = vld [vmem:[%s1] sm:$0xff]
    %v6487 = vld [vmem:[#allocation3] sm:$0xff]
    %v6488 = vld [vmem:[#allocation3 + $0x8] sm:$0xff]
    %v6489 = vld [vmem:[#allocation3 + $0x10] sm:$0xff]
    %v6490 = vld [vmem:[#allocation3 + $0x18] sm:$0xff]
    %v6491 = vld [vmem:[#allocation3 + $0x20] sm:$0xff]
    %v6492 = vld [vmem:[#allocation3 + $0x28] sm:$0xff]
    %v6493 = vld [vmem:[#allocation3 + $0x30] sm:$0xff]
    %v6494 = vld [vmem:[#allocation3 + $0x38] sm:$0xff]
    %v6495 = vld [vmem:[#allocation3 + $0x40] sm:$0xff]
    %v6496 = vld [vmem:[#allocation3 + $0x48] sm:$0xff]
    %v6497 = vld [vmem:[#allocation3 + $0x50] sm:$0xff]
    %v6498 = vld [vmem:[#allocation3 + $0x58] sm:$0xff]
    %v6499 = vld [vmem:[#allocation3 + $0x60] sm:$0xff]
    %v6500 = vld [vmem:[#allocation3 + $0x68] sm:$0xff]
    %v6501 = vld [vmem:[#allocation3 + $0x70] sm:$0xff]
    %v6502 = vld [vmem:[#allocation3 + $0x78] sm:$0xff]
    %v6503 = vld [vmem:[#allocation3 + $0x80] sm:$0xff]
    %v6504 = vld [vmem:[#allocation3 + $0x88] sm:$0xff]
    %v6505 = vld [vmem:[#allocation3 + $0x90] sm:$0xff]
    %v6506 = vld [vmem:[#allocation3 + $0x98] sm:$0xff]
    %v6507 = vld [vmem:[#allocation3 + $0xa0] sm:$0xff]
    %v6508 = vld [vmem:[#allocation3 + $0xa8] sm:$0xff]
    %v6509 = vld [vmem:[#allocation3 + $0xb0] sm:$0xff]
    %v6510 = vld [vmem:[#allocation3 + $0xb8] sm:$0xff]
    %v6511 = vld [vmem:[#allocation3 + $0xc0] sm:$0xff]
    %v6512 = vld [vmem:[#allocation3 + $0xc8] sm:$0xff]
    %v6513 = vld [vmem:[#allocation3 + $0xd0] sm:$0xff]
    %v6514 = vld [vmem:[#allocation3 + $0xd8] sm:$0xff]
    %v6515 = vld [vmem:[#allocation3 + $0xe0] sm:$0xff]
    %v6516 = vld [vmem:[#allocation3 + $0xe8] sm:$0xff]
    %v6517 = vld [vmem:[#allocation3 + $0xf0] sm:$0xff]
    %v6518 = vld [vmem:[#allocation3 + $0xf8] sm:$0xff]
    %v6519 = vld [vmem:[#allocation3 + $0x100] sm:$0xff]
    %v6520 = vld [vmem:[#allocation3 + $0x108] sm:$0xff]
    %v6521 = vld [vmem:[#allocation3 + $0x110] sm:$0xff]
    %v6522 = vld [vmem:[#allocation3 + $0x118] sm:$0xff]
    %v6523 = vld [vmem:[%s2] sm:$0xff]
    %6525 = vset.pattern.permute.xlu0 0
    %6526 = vperm.xlu0 %6525, %v6523
    %v6527 = vpop.permute.xlu0 %6526
    %v6530 = vunpack.c.l.b16 %v6486
    %v6531 = vunpack.c.h.b16 %v6486
    %v6532 = vpack.c.b16 %v6530, %v6530
    %v6533 = vpack.c.b16 %v6531, %v6531
    %v6571 = vunpack.c.l.b16 %v6487
    %v6572 = vunpack.c.h.b16 %v6487
    %v6573 = vunpack.c.l.b16 %v6488
    %v6574 = vunpack.c.h.b16 %v6488
    %v6575 = vunpack.c.l.b16 %v6489
    %v6576 = vunpack.c.h.b16 %v6489
    %v6577 = vunpack.c.l.b16 %v6490
    %v6578 = vunpack.c.h.b16 %v6490
    %v6579 = vunpack.c.l.b16 %v6491
    %v6580 = vunpack.c.h.b16 %v6491
    %v6581 = vunpack.c.l.b16 %v6492
    %v6582 = vunpack.c.h.b16 %v6492
    %v6583 = vunpack.c.l.b16 %v6493
    %v6584 = vunpack.c.h.b16 %v6493
    %v6585 = vunpack.c.l.b16 %v6494
    %v6586 = vunpack.c.h.b16 %v6494
    %v6587 = vunpack.c.l.b16 %v6495
    %v6588 = vunpack.c.h.b16 %v6495
    %v6589 = vunpack.c.l.b16 %v6496
    %v6590 = vunpack.c.h.b16 %v6496
    %v6591 = vunpack.c.l.b16 %v6497
    %v6592 = vunpack.c.h.b16 %v6497
    %v6593 = vunpack.c.l.b16 %v6498
    %v6594 = vunpack.c.h.b16 %v6498
    %v6595 = vunpack.c.l.b16 %v6499
    %v6596 = vunpack.c.h.b16 %v6499
    %v6597 = vunpack.c.l.b16 %v6500
    %v6598 = vunpack.c.h.b16 %v6500
    %v6599 = vunpack.c.l.b16 %v6501
    %v6600 = vunpack.c.h.b16 %v6501
    %v6601 = vunpack.c.l.b16 %v6502
    %v6602 = vunpack.c.h.b16 %v6502
    %v6603 = vunpack.c.l.b16 %v6503
    %v6604 = vunpack.c.h.b16 %v6503
    %v6605 = vunpack.c.l.b16 %v6504
    %v6606 = vunpack.c.h.b16 %v6504
    %v6607 = vunpack.c.l.b16 %v6505
    %v6608 = vunpack.c.h.b16 %v6505
    %v6609 = vunpack.c.l.b16 %v6506
    %v6610 = vunpack.c.h.b16 %v6506
    %v6611 = vunpack.c.l.b16 %v6507
    %v6612 = vunpack.c.h.b16 %v6507
    %v6613 = vunpack.c.l.b16 %v6508
    %v6614 = vunpack.c.h.b16 %v6508
    %v6615 = vunpack.c.l.b16 %v6509
    %v6616 = vunpack.c.h.b16 %v6509
    %v6617 = vunpack.c.l.b16 %v6510
    %v6618 = vunpack.c.h.b16 %v6510
    %v6619 = vunpack.c.l.b16 %v6511
    %v6620 = vunpack.c.h.b16 %v6511
    %v6621 = vunpack.c.l.b16 %v6512
    %v6622 = vunpack.c.h.b16 %v6512
    %v6623 = vunpack.c.l.b16 %v6513
    %v6624 = vunpack.c.h.b16 %v6513
    %v6625 = vunpack.c.l.b16 %v6514
    %v6626 = vunpack.c.h.b16 %v6514
    %v6627 = vunpack.c.l.b16 %v6515
    %v6628 = vunpack.c.h.b16 %v6515
    %v6629 = vunpack.c.l.b16 %v6516
    %v6630 = vunpack.c.h.b16 %v6516
    %v6631 = vunpack.c.l.b16 %v6517
    %v6632 = vunpack.c.h.b16 %v6517
    %v6633 = vunpack.c.l.b16 %v6518
    %v6634 = vunpack.c.h.b16 %v6518
    %v6635 = vunpack.c.l.b16 %v6519
    %v6636 = vunpack.c.h.b16 %v6519
    %v6637 = vunpack.c.l.b16 %v6520
    %v6638 = vunpack.c.h.b16 %v6520
    %v6639 = vunpack.c.l.b16 %v6521
    %v6640 = vunpack.c.h.b16 %v6521
    %v6641 = vunpack.c.l.b16 %v6522
    %v6642 = vunpack.c.h.b16 %v6522
    %v6643 = vpack.c.b16 %v6575, %v6571
    %v6644 = vpack.c.b16 %v6576, %v6572
    %v6645 = vpack.c.b16 %v6577, %v6573
    %v6646 = vpack.c.b16 %v6578, %v6574
    %v6647 = vpack.c.b16 %v6583, %v6579
    %v6648 = vpack.c.b16 %v6584, %v6580
    %v6649 = vpack.c.b16 %v6585, %v6581
    %v6650 = vpack.c.b16 %v6586, %v6582
    %v6651 = vpack.c.b16 %v6591, %v6587
    %v6652 = vpack.c.b16 %v6592, %v6588
    %v6653 = vpack.c.b16 %v6593, %v6589
    %v6654 = vpack.c.b16 %v6594, %v6590
    %v6655 = vpack.c.b16 %v6599, %v6595
    %v6656 = vpack.c.b16 %v6600, %v6596
    %v6657 = vpack.c.b16 %v6601, %v6597
    %v6658 = vpack.c.b16 %v6602, %v6598
    %v6659 = vpack.c.b16 %v6607, %v6603
    %v6660 = vpack.c.b16 %v6608, %v6604
    %v6661 = vpack.c.b16 %v6609, %v6605
    %v6662 = vpack.c.b16 %v6610, %v6606
    %v6663 = vpack.c.b16 %v6615, %v6611
    %v6664 = vpack.c.b16 %v6616, %v6612
    %v6665 = vpack.c.b16 %v6617, %v6613
    %v6666 = vpack.c.b16 %v6618, %v6614
    %v6667 = vpack.c.b16 %v6623, %v6619
    %v6668 = vpack.c.b16 %v6624, %v6620
    %v6669 = vpack.c.b16 %v6625, %v6621
    %v6670 = vpack.c.b16 %v6626, %v6622
    %v6671 = vpack.c.b16 %v6631, %v6627
    %v6672 = vpack.c.b16 %v6632, %v6628
    %v6673 = vpack.c.b16 %v6633, %v6629
    %v6674 = vpack.c.b16 %v6634, %v6630
    %v6675 = vpack.c.b16 %v6639, %v6635
    %v6676 = vpack.c.b16 %v6640, %v6636
    %v6677 = vpack.c.b16 %v6641, %v6637
    %v6678 = vpack.c.b16 %v6642, %v6638
    %v6716 = vsel %vm673, %v6533, 0
    %6718 = vmatprep.subr.bf16.mxu0 %v6672
    %6719 = vmatpush1.bf16.msra.mxu0 %v6671
    %6720 = vmatprep.subr.bf16.mxu0 %v6668
    %6721 = vmatpush1.bf16.msra.mxu0 %v6667
    %6722 = vmatprep.subr.bf16.mxu0 %v6664
    %6723 = vmatpush1.bf16.msra.mxu0 %v6663
    %6724 = vmatprep.subr.bf16.mxu0 %v6660
    %6725 = vmatpush1.bf16.msra.mxu0 %v6659
    %6726 = vmatprep.subr.bf16.mxu0 %v6656
    %6727 = vmatpush1.bf16.msra.mxu0 %v6655
    %6728 = vmatprep.subr.bf16.mxu0 %v6652
    %6729 = vmatpush1.bf16.msra.mxu0 %v6651
    %6730 = vmatprep.subr.bf16.mxu0 %v6648
    %6731 = vmatpush1.bf16.msra.mxu0 %v6647
    %6732 = vmatprep.subr.bf16.mxu0 %v6644
    %6733 = vmatpush1.bf16.msra.mxu0 %v6643
    %6734 = vmatprep.subr.bf16.mxu0 0
    %6735 = vmatpush2.bf16.msra.mxu0 0
    %6736 = vmatprep.subr.bf16.mxu0 0
    %6737 = vmatpush2.bf16.msra.mxu0 0
    %6738 = vmatprep.subr.bf16.mxu0 0
    %6739 = vmatpush2.bf16.msra.mxu0 0
    %6740 = vmatprep.subr.bf16.mxu0 0
    %6741 = vmatpush2.bf16.msra.mxu0 0
    %6742 = vmatprep.subr.bf16.mxu0 0
    %6743 = vmatpush2.bf16.msra.mxu0 0
    %6744 = vmatprep.subr.bf16.mxu0 0
    %6745 = vmatpush2.bf16.msra.mxu0 0
    %6746 = vmatprep.subr.bf16.mxu0 0
    %6747 = vmatpush2.bf16.msra.mxu0 0
    %6748 = vmatprep.subr.bf16.mxu0 %v6676
    %6749 = vmatpush2.bf16.msra.mxu0 %v6675
    %6750 = vmatprep.mubr.bf16.mxu0 %v6716
    %6751 = vmatmul.mubr.bf16.gmra.mxu0 %v6532
    %v6752 = vpop.f32.mrf.mxu0
    %v6753 = vadd.f32 %v6527, %v6752
    %v6754 = vpop.f32.mrf.mxu0
    %v6755 = vadd.f32 %v6527, %v6754
    %v6756 = vpop.f32.mrf.mxu0
    %v6757 = vpop.f32.mrf.mxu0
    %6758 = vdwg.mxu0
    %6759 = vmatprep.subr.bf16.mxu0 %v6674
    %6760 = vmatpush1.bf16.msra.mxu0 %v6673
    %6761 = vmatprep.subr.bf16.mxu0 %v6670
    %6762 = vmatpush1.bf16.msra.mxu0 %v6669
    %6763 = vmatprep.subr.bf16.mxu0 %v6666
    %6764 = vmatpush1.bf16.msra.mxu0 %v6665
    %6765 = vmatprep.subr.bf16.mxu0 %v6662
    %6766 = vmatpush1.bf16.msra.mxu0 %v6661
    %6767 = vmatprep.subr.bf16.mxu0 %v6658
    %6768 = vmatpush1.bf16.msra.mxu0 %v6657
    %6769 = vmatprep.subr.bf16.mxu0 %v6654
    %6770 = vmatpush1.bf16.msra.mxu0 %v6653
    %6771 = vmatprep.subr.bf16.mxu0 %v6650
    %6772 = vmatpush1.bf16.msra.mxu0 %v6649
    %6773 = vmatprep.subr.bf16.mxu0 %v6646
    %6774 = vmatpush1.bf16.msra.mxu0 %v6645
    %6775 = vmatprep.subr.bf16.mxu0 0
    %6776 = vmatpush2.bf16.msra.mxu0 0
    %6777 = vmatprep.subr.bf16.mxu0 0
    %6778 = vmatpush2.bf16.msra.mxu0 0
    %6779 = vmatprep.subr.bf16.mxu0 0
    %6780 = vmatpush2.bf16.msra.mxu0 0
    %6781 = vmatprep.subr.bf16.mxu0 0
    %6782 = vmatpush2.bf16.msra.mxu0 0
    %6783 = vmatprep.subr.bf16.mxu0 0
    %6784 = vmatpush2.bf16.msra.mxu0 0
    %6785 = vmatprep.subr.bf16.mxu0 0
    %6786 = vmatpush2.bf16.msra.mxu0 0
    %6787 = vmatprep.subr.bf16.mxu0 0
    %6788 = vmatpush2.bf16.msra.mxu0 0
    %6789 = vmatprep.subr.bf16.mxu0 %v6678
    %6790 = vmatpush2.bf16.msra.mxu0 %v6677
    %6791 = vmatprep.mubr.bf16.mxu0 %v6716
    %6792 = vmatmul.mubr.bf16.gmra.mxu0 %v6532
    %v6793 = vpop.f32.mrf.mxu0
    %v6794 = vadd.f32 %v6527, %v6793
    %v6795 = vpop.f32.mrf.mxu0
    %v6796 = vadd.f32 %v6527, %v6795
    %v6797 = vpop.f32.mrf.mxu0
    %v6798 = vpop.f32.mrf.mxu0
    %6799 = vdwg.mxu0
    %6800 = vst [vmem:[#allocation7] sm:$0xff] %v6753
    %6801 = vst [vmem:[#allocation7 + $0x8] sm:$0xff] %v6755
    %s6802 = scalar_lea.vmem [#allocation7], 16
    %6803 = vst [vmem:[%s6802] sm:$0xff] %v6794
    %6804 = vst [vmem:[%s6802 + $0x8] sm:$0xff] %v6796
    // Predicated region
    $region22: #{tpu_custom_call.1} parent=1 // pred_check
      _
    $region23: #{tpu_custom_call.1} parent=1 // pred_check_branch
      %6806 = sbr.rel (0) target = $region25
    $region24: #{tpu_custom_call.1} parent=1 // pred_region
      %s6808 = ssub.s32 512, 512
      %6809 = vsyncadd [#allocation6], %s6808
      %s6810 = sshll.u32 [#allocation7], 4
      %s6811 = int_to_ptr.vmem [resolvable:$true] %s6810
      %6816 = dma.vmem_to_hbm [thread:$0]  %s6811, 512, %s3, [#allocation6], 256, 256, 16
    $region25: #{tpu_custom_call.1} parent=1 // pred_fallthru
      _
    // Predicated region
    $region26: #{tpu_custom_call.1} parent=1 // pred_check
      _
    $region27: #{tpu_custom_call.1} parent=1 // pred_check_branch
      %6818 = sbr.rel (0) target = $region29
    $region28: #{tpu_custom_call.1} parent=1 // pred_region
      %6819 = dma.done [#allocation6], 512
    $region29: #{tpu_custom_call.1} parent=1 // pred_fallthru
      _
    %6820 = vsyncpa [#allocation5], 1
    %6821 = vsyncpa [#allocation6], 1

</llo_original>
